<compile_context>
chip_gen: v6e
topology: v6e:2x2x1
jax: 0.10.0
libtpu: 0.0.40
codegen_flags: <defaults>
</compile_context>

<pallas_src>
import functools

import jax
import jax.numpy as jnp
from jax.experimental import pallas as pl
from jax.experimental.pallas import tpu as pltpu

BN_EPS = 1e-5


# ----------------------------- Pallas kernels ------------------------------

def _conv_bn_kernel(w_ref, x_ref, scale_ref, shift_ref, o_ref, *, relu):
    # out^T = W @ cols -> (Cout, tm): the big M dimension is lane-dense.
    acc = jnp.dot(w_ref[...], x_ref[...], preferred_element_type=jnp.float32)
    y = acc * scale_ref[...] + shift_ref[...]
    if relu:
        y = jnp.maximum(y, 0.0)
    o_ref[...] = y.astype(o_ref.dtype)


def _conv_bn_res_relu_kernel(w_ref, x_ref, scale_ref, shift_ref, res_ref, o_ref):
    acc = jnp.dot(w_ref[...], x_ref[...], preferred_element_type=jnp.float32)
    y = acc * scale_ref[...] + shift_ref[...] + res_ref[...]
    o_ref[...] = jnp.maximum(y, 0.0).astype(o_ref.dtype)


def _conv_bn_shortcut_kernel(w_ref, x_ref, scale_ref, shift_ref,
                             wsc_ref, ssc_ref, bsc_ref,
                             o_ref, sc_ref, *, center_start, cin):
    cols = x_ref[...]
    acc = jnp.dot(w_ref[...], cols, preferred_element_type=jnp.float32)
    y = acc * scale_ref[...] + shift_ref[...]
    o_ref[...] = jnp.maximum(y, 0.0).astype(o_ref.dtype)
    # Fused 1x1 shortcut conv + BN: its input is exactly the centre tap
    # (i=j=1) of the 3x3 im2col already resident in VMEM -> no extra x DMA.
    center = cols[center_start:center_start + cin, :]
    acc_sc = jnp.dot(wsc_ref[...], center, preferred_element_type=jnp.float32)
    sc_ref[...] = (acc_sc * ssc_ref[...] + bsc_ref[...]).astype(sc_ref.dtype)


def _head_kernel(x_ref, pool_ref, w_ref, b_ref, o_ref):
    # Global average pool expressed as a matmul with a block-diagonal pooling
    # matrix (avoids in-kernel lane-splitting reshapes), then the linear layer.
    pooled = jnp.dot(x_ref[...], pool_ref[...],
                     preferred_element_type=jnp.float32)          # (C, N)
    y = jnp.dot(w_ref[...], pooled,
                preferred_element_type=jnp.float32) + b_ref[...]  # (classes, N)
    o_ref[...] = y.astype(o_ref.dtype)


# --------------------------- pallas_call wrappers ---------------------------

def _choose_tile_m(M):
    """Largest lane tile (multiple of 128) dividing M, capped at 1024 lanes,
    preferring >=2 grid blocks so v7x's 2 TensorCores both get work."""
    if M % 128 != 0:
        return M                                   # full-dim exemption
    cands = [t for t in range(128, min(M, 1024) + 1, 128) if M % t == 0]
    multi = [t for t in cands if M // t >= 2]
    if multi:
        return max(multi)
    return max(cands)


def conv_bn_pallas(cols, w_t, scale, shift, *, relu, residual=None, shortcut=None):
    """out^T = [relu]((W @ cols) * scale + shift [+ residual]).

    cols: (K, M) bf16, w_t: (Cout, K) bf16; returns (Cout, M) f32, plus the
    fused 1x1-shortcut output when `shortcut` is given.
    """
    Cout, K = w_t.shape
    M = cols.shape[1]
    tm = _choose_tile_m(M)
    grid = (M // tm,)
    scale2 = scale.reshape(Cout, 1).astype(jnp.float32)
    shift2 = shift.reshape(Cout, 1).astype(jnp.float32)

    in_specs = [
        pl.BlockSpec((Cout, K), lambda i: (0, 0)),      # weight stays resident
        pl.BlockSpec((K, tm), lambda i: (0, i)),        # im2col columns (bf16)
        pl.BlockSpec((Cout, 1), lambda i: (0, 0)),
        pl.BlockSpec((Cout, 1), lambda i: (0, 0)),
    ]
    args = [w_t, cols, scale2, shift2]
    flops = 2 * Cout * K * M
    bytes_accessed = cols.size * 2 + w_t.size * 2 + Cout * M * 4 + Cout * 8

    if shortcut is not None:
        wsc_t, ssc, bsc, cin = shortcut
        kernel = functools.partial(_conv_bn_shortcut_kernel,
                                   center_start=4 * cin, cin=cin)
        in_specs += [
            pl.BlockSpec((Cout, cin), lambda i: (0, 0)),
            pl.BlockSpec((Cout, 1), lambda i: (0, 0)),
            pl.BlockSpec((Cout, 1), lambda i: (0, 0)),
        ]
        args += [wsc_t,
                 ssc.reshape(Cout, 1).astype(jnp.float32),
                 bsc.reshape(Cout, 1).astype(jnp.float32)]
        out_shape = (jax.ShapeDtypeStruct((Cout, M), jnp.float32),
                     jax.ShapeDtypeStruct((Cout, M), jnp.float32))
        out_specs = (pl.BlockSpec((Cout, tm), lambda i: (0, i)),
                     pl.BlockSpec((Cout, tm), lambda i: (0, i)))
        flops += 2 * Cout * cin * M
        bytes_accessed += wsc_t.size * 2 + Cout * M * 4 + Cout * 8
    elif residual is not None:
        kernel = _conv_bn_res_relu_kernel
        in_specs.append(pl.BlockSpec((Cout, tm), lambda i: (0, i)))
        args.append(residual)
        out_shape = jax.ShapeDtypeStruct((Cout, M), jnp.float32)
        out_specs = pl.BlockSpec((Cout, tm), lambda i: (0, i))
        bytes_accessed += Cout * M * 4
    else:
        kernel = functools.partial(_conv_bn_kernel, relu=relu)
        out_shape = jax.ShapeDtypeStruct((Cout, M), jnp.float32)
        out_specs = pl.BlockSpec((Cout, tm), lambda i: (0, i))

    return pl.pallas_call(
        kernel,
        out_shape=out_shape,
        grid=grid,
        in_specs=in_specs,
        out_specs=out_specs,
        compiler_params=pltpu.CompilerParams(
            dimension_semantics=("parallel",)),
        cost_estimate=pl.CostEstimate(
            flops=flops, transcendentals=0, bytes_accessed=bytes_accessed),
    )(*args)


def head_pallas(x_t, hw, n, w, b):
    """Global average pool over HxW (per image) + linear, fused.  x_t: (C, M)."""
    C, M = x_t.shape
    num_classes = w.shape[0]
    pool = (jnp.arange(M)[:, None] // hw == jnp.arange(n)[None, :]
            ).astype(jnp.float32) / float(hw)                      # (M, N)
    logits_t = pl.pallas_call(
        _head_kernel,
        out_shape=jax.ShapeDtypeStruct((num_classes, n), jnp.float32),
        grid=(1,),
        in_specs=[
            pl.BlockSpec((C, M), lambda i: (0, 0)),
            pl.BlockSpec((M, n), lambda i: (0, 0)),
            pl.BlockSpec((num_classes, C), lambda i: (0, 0)),
            pl.BlockSpec((num_classes, 1), lambda i: (0, 0)),
        ],
        out_specs=pl.BlockSpec((num_classes, n), lambda i: (0, 0)),
        cost_estimate=pl.CostEstimate(
            flops=2 * C * M * n + 2 * num_classes * C * n,
            transcendentals=0,
            bytes_accessed=x_t.size * 4 + pool.size * 4 + w.size * 4
            + num_classes * n * 4),
    )(x_t, pool, w.astype(jnp.float32),
      b.reshape(num_classes, 1).astype(jnp.float32))
    return logits_t.T                                              # (N, classes)


# ------------------------------- JAX glue -----------------------------------

def im2col_t(x, kh, kw, stride, pad):
    """x: (C, N, H, W) -> cols (kh*kw*C, N*Hout*Wout), tap-major/channel-minor."""
    if pad:
        x = jnp.pad(x, ((0, 0), (0, 0), (pad, pad), (pad, pad)))
    C, N, Hp, Wp = x.shape
    Hout = (Hp - kh) // stride + 1
    Wout = (Wp - kw) // stride + 1
    taps = []
    for i in range(kh):
        for j in range(kw):
            taps.append(
                x[:, :, i:i + stride * Hout:stride, j:j + stride * Wout:stride])
    cols = jnp.concatenate(taps, axis=0)              # (kh*kw*C, N, Hout, Wout)
    return cols.reshape(kh * kw * C, N * Hout * Wout), Hout, Wout


def conv_bn(x_cnhw, w_oihw, bn, *, stride, pad, relu, residual=None, shortcut=None):
    """Conv2d (no bias) + BatchNorm (+ fused 1x1 shortcut | residual) (+ ReLU)."""
    Cout, Cin, kh, kw = w_oihw.shape
    N = x_cnhw.shape[1]
    cols, Hout, Wout = im2col_t(x_cnhw, kh, kw, stride, pad)
    cols = cols.astype(jnp.bfloat16)                  # MXU-native operands
    # PyTorch (Cout, Cin, kh, kw) -> (Cout, kh*kw*Cin), matching im2col rows.
    w_t = jnp.transpose(w_oihw, (0, 2, 3, 1)).reshape(Cout, kh * kw * Cin)
    w_t = w_t.astype(jnp.bfloat16)
    scale, shift = bn
    if shortcut is not None:
        wsc_oihw, (ssc, bsc) = shortcut
        wsc_t = wsc_oihw.reshape(Cout, Cin).astype(jnp.bfloat16)
        out, sc = conv_bn_pallas(cols, w_t, scale, shift, relu=relu,
                                 shortcut=(wsc_t, ssc, bsc, Cin))
        return (out.reshape(Cout, N, Hout, Wout),
                sc.reshape(Cout, N, Hout, Wout))
    res2d = None if residual is None else residual.reshape(Cout, -1)
    out = conv_bn_pallas(cols, w_t, scale, shift, relu=relu, residual=res2d)
    return out.reshape(Cout, N, Hout, Wout)


# ----------------------------- parameter init -------------------------------

def kaiming_conv(key, cout, cin, kh, kw):
    fan_in = cin * kh * kw
    std = (2.0 / fan_in) ** 0.5
    return jax.random.normal(key, (cout, cin, kh, kw), jnp.float32) * std


def bn_params(c):
    gamma = jnp.ones((c,), jnp.float32)
    beta = jnp.zeros((c,), jnp.float32)
    running_mean = jnp.zeros((c,), jnp.float32)
    running_var = jnp.ones((c,), jnp.float32)
    scale = gamma / jnp.sqrt(running_var + BN_EPS)
    shift = beta - running_mean * scale
    return scale, shift


def init_params(key, num_blocks=(1,), num_classes=10):
    keys = iter(jax.random.split(key, 64))
    params = {
        "conv1": kaiming_conv(next(keys), 16, 3, 3, 3),
        "bn1": bn_params(16),
    }
    in_planes = 16
    layers = []
    for layer_idx, out_planes in enumerate((16, 32, 64)):
        first_stride = 1 if layer_idx == 0 else 2
        strides = [first_stride] + [1] * (num_blocks[0] - 1)
        blocks = []
        for s in strides:
            blk = {
                "stride": s,
                "conv1": kaiming_conv(next(keys), out_planes, in_planes, 3, 3),
                "bn1": bn_params(out_planes),
                "conv2": kaiming_conv(next(keys), out_planes, out_planes, 3, 3),
                "bn2": bn_params(out_planes),
            }
            if s != 1 or in_planes != out_planes:
                blk["shortcut_conv"] = kaiming_conv(next(keys), out_planes, in_planes, 1, 1)
                blk["shortcut_bn"] = bn_params(out_planes)
            blocks.append(blk)
            in_planes = out_planes
        layers.append(blocks)
    params["layers"] = layers
    fan_in = 64
    std = (2.0 / fan_in) ** 0.5
    params["linear_w"] = jax.random.normal(next(keys), (num_classes, 64), jnp.float32) * std
    bound = 1.0 / (fan_in ** 0.5)
    params["linear_b"] = jax.random.uniform(
        next(keys), (num_classes,), jnp.float32, -bound, bound)
    return params


# ------------------------------- forward ------------------------------------

def basic_block_forward(x, blk):
    s = blk["stride"]
    if "shortcut_conv" in blk:
        # conv1+bn1+relu and the 1x1 shortcut conv+bn share one Pallas call.
        out, shortcut = conv_bn(
            x, blk["conv1"], blk["bn1"], stride=s, pad=1, relu=True,
            shortcut=(blk["shortcut_conv"], blk["shortcut_bn"]))
    else:
        out = conv_bn(x, blk["conv1"], blk["bn1"], stride=s, pad=1, relu=True)
        shortcut = x
    # conv2 + bn2 + residual add + relu, fused in one Pallas call.
    out = conv_bn(out, blk["conv2"], blk["bn2"], stride=1, pad=1, relu=True,
                  residual=shortcut)
    return out


def cifar_resnet_forward(params, x_nchw):
    x = jnp.transpose(x_nchw, (1, 0, 2, 3))        # NCHW -> (C, N, H, W)
    out = conv_bn(x, params["conv1"], params["bn1"], stride=1, pad=1, relu=True)
    for blocks in params["layers"]:
        for blk in blocks:
            out = basic_block_forward(out, blk)
    C, N, H, W = out.shape
    logits = head_pallas(out.reshape(C, N * H * W), H * W, N,
                         params["linear_w"], params["linear_b"])
    return logits


if __name__ == "__main__":
    key = jax.random.PRNGKey(0)
    pkey, xkey = jax.random.split(key)
    params = init_params(pkey, num_blocks=(1,), num_classes=10)
    # NCHW like PyTorch: batch=2, 3 channels, 16x16 spatial.
    x = jax.random.normal(xkey, (2, 3, 16, 16), jnp.float32)
    logits = jax.jit(lambda xx: cifar_resnet_forward(params, xx))(x)
    jax.block_until_ready(logits)
    assert logits.shape == (2, 10) and logits.dtype == jnp.float32
    print("KERNEL_OK")
</pallas_src>

<mosaic_0001>
module attributes {stable_mosaic.version = 11 : i64} {
  func.func @_conv_bn_kernel(%arg0: i32, %arg1: memref<16x27xbf16, #tpu.memory_space<vmem>>, %arg2: memref<27x256xbf16, #tpu.memory_space<vmem>>, %arg3: memref<16x1xf32, #tpu.memory_space<vmem>>, %arg4: memref<16x1xf32, #tpu.memory_space<vmem>>, %arg5: memref<16x256xf32, #tpu.memory_space<vmem>>) attributes {dimension_semantics = [#tpu.dimension_semantics<parallel>], iteration_bounds = array<i64: 2>, scalar_prefetch = 0 : i64, scratch_operands = 0 : i64, tpu.core_type = #tpu.core_type<tc>, window_params = [{pipeline_mode = #tpu.pipeline_mode<synchronous>, transform_indices = @transform_0, window_bounds = array<i64: 16, 27>}, {transform_indices = @transform_1, window_bounds = array<i64: 27, 256>}, {pipeline_mode = #tpu.pipeline_mode<synchronous>, transform_indices = @transform_2, window_bounds = array<i64: 16, 1>}, {pipeline_mode = #tpu.pipeline_mode<synchronous>, transform_indices = @transform_3, window_bounds = array<i64: 16, 1>}, {transform_indices = @transform_4, window_bounds = array<i64: 16, 256>}]} {
    %c0 = arith.constant 0 : index
    %c0_0 = arith.constant 0 : index
    %0 = vector.load %arg1[%c0, %c0_0] : memref<16x27xbf16, #tpu.memory_space<vmem>>, vector<16x27xbf16>
    %c0_1 = arith.constant 0 : index
    %c0_2 = arith.constant 0 : index
    %1 = vector.load %arg2[%c0_1, %c0_2] : memref<27x256xbf16, #tpu.memory_space<vmem>>, vector<27x256xbf16>
    %cst = arith.constant dense<0.000000e+00> : vector<16x256xf32>
    %2 = tpu.matmul %0, %1, %cst {dimension_numbers = #tpu.dot_dimension_numbers<[1], [0], [0], [1], [0, 0, 1, 1], [], []>} : vector<16x27xbf16>, vector<27x256xbf16>, vector<16x256xf32> -> vector<16x256xf32>
    %c0_3 = arith.constant 0 : index
    %c0_4 = arith.constant 0 : index
    %3 = vector.load %arg3[%c0_3, %c0_4] : memref<16x1xf32, #tpu.memory_space<vmem>>, vector<16x1xf32>
    %4 = vector.broadcast %3 : vector<16x1xf32> to vector<16x256xf32>
    %5 = arith.mulf %2, %4 : vector<16x256xf32>
    %c0_5 = arith.constant 0 : index
    %c0_6 = arith.constant 0 : index
    %6 = vector.load %arg4[%c0_5, %c0_6] : memref<16x1xf32, #tpu.memory_space<vmem>>, vector<16x1xf32>
    %7 = vector.broadcast %6 : vector<16x1xf32> to vector<16x256xf32>
    %8 = arith.addf %5, %7 : vector<16x256xf32>
    %cst_7 = arith.constant 0.000000e+00 : f32
    %9 = vector.broadcast %cst_7 : f32 to vector<16x256xf32>
    %10 = arith.maximumf %8, %9 : vector<16x256xf32>
    %c0_8 = arith.constant 0 : index
    %c0_9 = arith.constant 0 : index
    %11 = vector.load %arg5[%c0_8, %c0_9] : memref<16x256xf32, #tpu.memory_space<vmem>>, vector<16x256xf32>
    tpu.vector_store %arg5[%c0_8, %c0_9], %10 {strides = array<i32>} : memref<16x256xf32, #tpu.memory_space<vmem>>, vector<16x256xf32>,
    return
  }
  func.func @transform_0(%arg0: i32) -> (i32, i32) {
    %c0_i32 = arith.constant 0 : i32
    %c0_i32_0 = arith.constant 0 : i32
    %c0_i32_1 = arith.constant 0 : i32
    return %c0_i32, %c0_i32_0 : i32, i32
  }
  func.func @transform_1(%arg0: i32) -> (i32, i32) {
    %c0_i32 = arith.constant 0 : i32
    %c0_i32_0 = arith.constant 0 : i32
    return %c0_i32, %arg0 : i32, i32
  }
  func.func @transform_2(%arg0: i32) -> (i32, i32) {
    %c0_i32 = arith.constant 0 : i32
    %c0_i32_0 = arith.constant 0 : i32
    %c0_i32_1 = arith.constant 0 : i32
    return %c0_i32, %c0_i32_0 : i32, i32
  }
  func.func @transform_3(%arg0: i32) -> (i32, i32) {
    %c0_i32 = arith.constant 0 : i32
    %c0_i32_0 = arith.constant 0 : i32
    %c0_i32_1 = arith.constant 0 : i32
    return %c0_i32, %c0_i32_0 : i32, i32
  }
  func.func @transform_4(%arg0: i32) -> (i32, i32) {
    %c0_i32 = arith.constant 0 : i32
    %c0_i32_0 = arith.constant 0 : i32
    return %c0_i32, %arg0 : i32, i32
  }
}

module attributes {stable_mosaic.version = 11 : i64} {
  func.func @_conv_bn_kernel(%arg0: i32, %arg1: memref<16x144xbf16, #tpu.memory_space<vmem>>, %arg2: memref<144x256xbf16, #tpu.memory_space<vmem>>, %arg3: memref<16x1xf32, #tpu.memory_space<vmem>>, %arg4: memref<16x1xf32, #tpu.memory_space<vmem>>, %arg5: memref<16x256xf32, #tpu.memory_space<vmem>>) attributes {dimension_semantics = [#tpu.dimension_semantics<parallel>], iteration_bounds = array<i64: 2>, scalar_prefetch = 0 : i64, scratch_operands = 0 : i64, tpu.core_type = #tpu.core_type<tc>, window_params = [{pipeline_mode = #tpu.pipeline_mode<synchronous>, transform_indices = @transform_0, window_bounds = array<i64: 16, 144>}, {transform_indices = @transform_1, window_bounds = array<i64: 144, 256>}, {pipeline_mode = #tpu.pipeline_mode<synchronous>, transform_indices = @transform_2, window_bounds = array<i64: 16, 1>}, {pipeline_mode = #tpu.pipeline_mode<synchronous>, transform_indices = @transform_3, window_bounds = array<i64: 16, 1>}, {transform_indices = @transform_4, window_bounds = array<i64: 16, 256>}]} {
    %c0 = arith.constant 0 : index
    %c0_0 = arith.constant 0 : index
    %0 = vector.load %arg1[%c0, %c0_0] : memref<16x144xbf16, #tpu.memory_space<vmem>>, vector<16x144xbf16>
    %c0_1 = arith.constant 0 : index
    %c0_2 = arith.constant 0 : index
    %1 = vector.load %arg2[%c0_1, %c0_2] : memref<144x256xbf16, #tpu.memory_space<vmem>>, vector<144x256xbf16>
    %cst = arith.constant dense<0.000000e+00> : vector<16x256xf32>
    %2 = tpu.matmul %0, %1, %cst {dimension_numbers = #tpu.dot_dimension_numbers<[1], [0], [0], [1], [0, 0, 1, 1], [], []>} : vector<16x144xbf16>, vector<144x256xbf16>, vector<16x256xf32> -> vector<16x256xf32>
    %c0_3 = arith.constant 0 : index
    %c0_4 = arith.constant 0 : index
    %3 = vector.load %arg3[%c0_3, %c0_4] : memref<16x1xf32, #tpu.memory_space<vmem>>, vector<16x1xf32>
    %4 = vector.broadcast %3 : vector<16x1xf32> to vector<16x256xf32>
    %5 = arith.mulf %2, %4 : vector<16x256xf32>
    %c0_5 = arith.constant 0 : index
    %c0_6 = arith.constant 0 : index
    %6 = vector.load %arg4[%c0_5, %c0_6] : memref<16x1xf32, #tpu.memory_space<vmem>>, vector<16x1xf32>
    %7 = vector.broadcast %6 : vector<16x1xf32> to vector<16x256xf32>
    %8 = arith.addf %5, %7 : vector<16x256xf32>
    %cst_7 = arith.constant 0.000000e+00 : f32
    %9 = vector.broadcast %cst_7 : f32 to vector<16x256xf32>
    %10 = arith.maximumf %8, %9 : vector<16x256xf32>
    %c0_8 = arith.constant 0 : index
    %c0_9 = arith.constant 0 : index
    %11 = vector.load %arg5[%c0_8, %c0_9] : memref<16x256xf32, #tpu.memory_space<vmem>>, vector<16x256xf32>
    tpu.vector_store %arg5[%c0_8, %c0_9], %10 {strides = array<i32>} : memref<16x256xf32, #tpu.memory_space<vmem>>, vector<16x256xf32>,
    return
  }
  func.func @transform_0(%arg0: i32) -> (i32, i32) {
    %c0_i32 = arith.constant 0 : i32
    %c0_i32_0 = arith.constant 0 : i32
    %c0_i32_1 = arith.constant 0 : i32
    return %c0_i32, %c0_i32_0 : i32, i32
  }
  func.func @transform_1(%arg0: i32) -> (i32, i32) {
    %c0_i32 = arith.constant 0 : i32
    %c0_i32_0 = arith.constant 0 : i32
    return %c0_i32, %arg0 : i32, i32
  }
  func.func @transform_2(%arg0: i32) -> (i32, i32) {
    %c0_i32 = arith.constant 0 : i32
    %c0_i32_0 = arith.constant 0 : i32
    %c0_i32_1 = arith.constant 0 : i32
    return %c0_i32, %c0_i32_0 : i32, i32
  }
  func.func @transform_3(%arg0: i32) -> (i32, i32) {
    %c0_i32 = arith.constant 0 : i32
    %c0_i32_0 = arith.constant 0 : i32
    %c0_i32_1 = arith.constant 0 : i32
    return %c0_i32, %c0_i32_0 : i32, i32
  }
  func.func @transform_4(%arg0: i32) -> (i32, i32) {
    %c0_i32 = arith.constant 0 : i32
    %c0_i32_0 = arith.constant 0 : i32
    return %c0_i32, %arg0 : i32, i32
  }
}

module attributes {stable_mosaic.version = 11 : i64} {
  func.func @_conv_bn_res_relu_kernel(%arg0: i32, %arg1: memref<16x144xbf16, #tpu.memory_space<vmem>>, %arg2: memref<144x256xbf16, #tpu.memory_space<vmem>>, %arg3: memref<16x1xf32, #tpu.memory_space<vmem>>, %arg4: memref<16x1xf32, #tpu.memory_space<vmem>>, %arg5: memref<16x256xf32, #tpu.memory_space<vmem>>, %arg6: memref<16x256xf32, #tpu.memory_space<vmem>>) attributes {dimension_semantics = [#tpu.dimension_semantics<parallel>], iteration_bounds = array<i64: 2>, scalar_prefetch = 0 : i64, scratch_operands = 0 : i64, tpu.core_type = #tpu.core_type<tc>, window_params = [{pipeline_mode = #tpu.pipeline_mode<synchronous>, transform_indices = @transform_0, window_bounds = array<i64: 16, 144>}, {transform_indices = @transform_1, window_bounds = array<i64: 144, 256>}, {pipeline_mode = #tpu.pipeline_mode<synchronous>, transform_indices = @transform_2, window_bounds = array<i64: 16, 1>}, {pipeline_mode = #tpu.pipeline_mode<synchronous>, transform_indices = @transform_3, window_bounds = array<i64: 16, 1>}, {transform_indices = @transform_4, window_bounds = array<i64: 16, 256>}, {transform_indices = @transform_5, window_bounds = array<i64: 16, 256>}]} {
    %c0 = arith.constant 0 : index
    %c0_0 = arith.constant 0 : index
    %0 = vector.load %arg1[%c0, %c0_0] : memref<16x144xbf16, #tpu.memory_space<vmem>>, vector<16x144xbf16>
    %c0_1 = arith.constant 0 : index
    %c0_2 = arith.constant 0 : index
    %1 = vector.load %arg2[%c0_1, %c0_2] : memref<144x256xbf16, #tpu.memory_space<vmem>>, vector<144x256xbf16>
    %cst = arith.constant dense<0.000000e+00> : vector<16x256xf32>
    %2 = tpu.matmul %0, %1, %cst {dimension_numbers = #tpu.dot_dimension_numbers<[1], [0], [0], [1], [0, 0, 1, 1], [], []>} : vector<16x144xbf16>, vector<144x256xbf16>, vector<16x256xf32> -> vector<16x256xf32>
    %c0_3 = arith.constant 0 : index
    %c0_4 = arith.constant 0 : index
    %3 = vector.load %arg3[%c0_3, %c0_4] : memref<16x1xf32, #tpu.memory_space<vmem>>, vector<16x1xf32>
    %4 = vector.broadcast %3 : vector<16x1xf32> to vector<16x256xf32>
    %5 = arith.mulf %2, %4 : vector<16x256xf32>
    %c0_5 = arith.constant 0 : index
    %c0_6 = arith.constant 0 : index
    %6 = vector.load %arg4[%c0_5, %c0_6] : memref<16x1xf32, #tpu.memory_space<vmem>>, vector<16x1xf32>
    %7 = vector.broadcast %6 : vector<16x1xf32> to vector<16x256xf32>
    %8 = arith.addf %5, %7 : vector<16x256xf32>
    %c0_7 = arith.constant 0 : index
    %c0_8 = arith.constant 0 : index
    %9 = vector.load %arg5[%c0_7, %c0_8] : memref<16x256xf32, #tpu.memory_space<vmem>>, vector<16x256xf32>
    %10 = arith.addf %8, %9 : vector<16x256xf32>
    %cst_9 = arith.constant 0.000000e+00 : f32
    %11 = vector.broadcast %cst_9 : f32 to vector<16x256xf32>
    %12 = arith.maximumf %10, %11 : vector<16x256xf32>
    %c0_10 = arith.constant 0 : index
    %c0_11 = arith.constant 0 : index
    %13 = vector.load %arg6[%c0_10, %c0_11] : memref<16x256xf32, #tpu.memory_space<vmem>>, vector<16x256xf32>
    tpu.vector_store %arg6[%c0_10, %c0_11], %12 {strides = array<i32>} : memref<16x256xf32, #tpu.memory_space<vmem>>, vector<16x256xf32>,
    return
  }
  func.func @transform_0(%arg0: i32) -> (i32, i32) {
    %c0_i32 = arith.constant 0 : i32
    %c0_i32_0 = arith.constant 0 : i32
    %c0_i32_1 = arith.constant 0 : i32
    return %c0_i32, %c0_i32_0 : i32, i32
  }
  func.func @transform_1(%arg0: i32) -> (i32, i32) {
    %c0_i32 = arith.constant 0 : i32
    %c0_i32_0 = arith.constant 0 : i32
    return %c0_i32, %arg0 : i32, i32
  }
  func.func @transform_2(%arg0: i32) -> (i32, i32) {
    %c0_i32 = arith.constant 0 : i32
    %c0_i32_0 = arith.constant 0 : i32
    %c0_i32_1 = arith.constant 0 : i32
    return %c0_i32, %c0_i32_0 : i32, i32
  }
  func.func @transform_3(%arg0: i32) -> (i32, i32) {
    %c0_i32 = arith.constant 0 : i32
    %c0_i32_0 = arith.constant 0 : i32
    %c0_i32_1 = arith.constant 0 : i32
    return %c0_i32, %c0_i32_0 : i32, i32
  }
  func.func @transform_4(%arg0: i32) -> (i32, i32) {
    %c0_i32 = arith.constant 0 : i32
    %c0_i32_0 = arith.constant 0 : i32
    return %c0_i32, %arg0 : i32, i32
  }
  func.func @transform_5(%arg0: i32) -> (i32, i32) {
    %c0_i32 = arith.constant 0 : i32
    %c0_i32_0 = arith.constant 0 : i32
    return %c0_i32, %arg0 : i32, i32
  }
}

module attributes {stable_mosaic.version = 11 : i64} {
  func.func @_conv_bn_shortcut_kernel(%arg0: i32, %arg1: memref<32x144xbf16, #tpu.memory_space<vmem>>, %arg2: memref<144x128xbf16, #tpu.memory_space<vmem>>, %arg3: memref<32x1xf32, #tpu.memory_space<vmem>>, %arg4: memref<32x1xf32, #tpu.memory_space<vmem>>, %arg5: memref<32x16xbf16, #tpu.memory_space<vmem>>, %arg6: memref<32x1xf32, #tpu.memory_space<vmem>>, %arg7: memref<32x1xf32, #tpu.memory_space<vmem>>, %arg8: memref<32x128xf32, #tpu.memory_space<vmem>>, %arg9: memref<32x128xf32, #tpu.memory_space<vmem>>) attributes {dimension_semantics = [#tpu.dimension_semantics<parallel>], iteration_bounds = array<i64: 1>, scalar_prefetch = 0 : i64, scratch_operands = 0 : i64, tpu.core_type = #tpu.core_type<tc>, window_params = [{pipeline_mode = #tpu.pipeline_mode<synchronous>, transform_indices = @transform_0, window_bounds = array<i64: 32, 144>}, {transform_indices = @transform_1, window_bounds = array<i64: 144, 128>}, {pipeline_mode = #tpu.pipeline_mode<synchronous>, transform_indices = @transform_2, window_bounds = array<i64: 32, 1>}, {pipeline_mode = #tpu.pipeline_mode<synchronous>, transform_indices = @transform_3, window_bounds = array<i64: 32, 1>}, {pipeline_mode = #tpu.pipeline_mode<synchronous>, transform_indices = @transform_4, window_bounds = array<i64: 32, 16>}, {pipeline_mode = #tpu.pipeline_mode<synchronous>, transform_indices = @transform_5, window_bounds = array<i64: 32, 1>}, {pipeline_mode = #tpu.pipeline_mode<synchronous>, transform_indices = @transform_6, window_bounds = array<i64: 32, 1>}, {transform_indices = @transform_7, window_bounds = array<i64: 32, 128>}, {transform_indices = @transform_8, window_bounds = array<i64: 32, 128>}]} {
    %c0 = arith.constant 0 : index
    %c0_0 = arith.constant 0 : index
    %0 = vector.load %arg2[%c0, %c0_0] : memref<144x128xbf16, #tpu.memory_space<vmem>>, vector<144x128xbf16>
    %c0_1 = arith.constant 0 : index
    %c0_2 = arith.constant 0 : index
    %1 = vector.load %arg1[%c0_1, %c0_2] : memref<32x144xbf16, #tpu.memory_space<vmem>>, vector<32x144xbf16>
    %cst = arith.constant dense<0.000000e+00> : vector<32x128xf32>
    %2 = tpu.matmul %1, %0, %cst {dimension_numbers = #tpu.dot_dimension_numbers<[1], [0], [0], [1], [0, 0, 1, 1], [], []>} : vector<32x144xbf16>, vector<144x128xbf16>, vector<32x128xf32> -> vector<32x128xf32>
    %c0_3 = arith.constant 0 : index
    %c0_4 = arith.constant 0 : index
    %3 = vector.load %arg3[%c0_3, %c0_4] : memref<32x1xf32, #tpu.memory_space<vmem>>, vector<32x1xf32>
    %4 = vector.broadcast %3 : vector<32x1xf32> to vector<32x128xf32>
    %5 = arith.mulf %2, %4 : vector<32x128xf32>
    %c0_5 = arith.constant 0 : index
    %c0_6 = arith.constant 0 : index
    %6 = vector.load %arg4[%c0_5, %c0_6] : memref<32x1xf32, #tpu.memory_space<vmem>>, vector<32x1xf32>
    %7 = vector.broadcast %6 : vector<32x1xf32> to vector<32x128xf32>
    %8 = arith.addf %5, %7 : vector<32x128xf32>
    %cst_7 = arith.constant 0.000000e+00 : f32
    %9 = vector.broadcast %cst_7 : f32 to vector<32x128xf32>
    %10 = arith.maximumf %8, %9 : vector<32x128xf32>
    %c0_8 = arith.constant 0 : index
    %c0_9 = arith.constant 0 : index
    %11 = vector.load %arg8[%c0_8, %c0_9] : memref<32x128xf32, #tpu.memory_space<vmem>>, vector<32x128xf32>
    tpu.vector_store %arg8[%c0_8, %c0_9], %10 {strides = array<i32>} : memref<32x128xf32, #tpu.memory_space<vmem>>, vector<32x128xf32>,
    %12 = vector.extract_strided_slice %0 {offsets = [64, 0], sizes = [16, 128], strides = [1, 1]} : vector<144x128xbf16> to vector<16x128xbf16>
    %c0_10 = arith.constant 0 : index
    %c0_11 = arith.constant 0 : index
    %13 = vector.load %arg5[%c0_10, %c0_11] : memref<32x16xbf16, #tpu.memory_space<vmem>>, vector<32x16xbf16>
    %cst_12 = arith.constant dense<0.000000e+00> : vector<32x128xf32>
    %14 = tpu.matmul %13, %12, %cst_12 {dimension_numbers = #tpu.dot_dimension_numbers<[1], [0], [0], [1], [0, 0, 1, 1], [], []>} : vector<32x16xbf16>, vector<16x128xbf16>, vector<32x128xf32> -> vector<32x128xf32>
    %c0_13 = arith.constant 0 : index
    %c0_14 = arith.constant 0 : index
    %15 = vector.load %arg6[%c0_13, %c0_14] : memref<32x1xf32, #tpu.memory_space<vmem>>, vector<32x1xf32>
    %16 = vector.broadcast %15 : vector<32x1xf32> to vector<32x128xf32>
    %17 = arith.mulf %14, %16 : vector<32x128xf32>
    %c0_15 = arith.constant 0 : index
    %c0_16 = arith.constant 0 : index
    %18 = vector.load %arg7[%c0_15, %c0_16] : memref<32x1xf32, #tpu.memory_space<vmem>>, vector<32x1xf32>
    %19 = vector.broadcast %18 : vector<32x1xf32> to vector<32x128xf32>
    %20 = arith.addf %17, %19 : vector<32x128xf32>
    %c0_17 = arith.constant 0 : index
    %c0_18 = arith.constant 0 : index
    %21 = vector.load %arg9[%c0_17, %c0_18] : memref<32x128xf32, #tpu.memory_space<vmem>>, vector<32x128xf32>
    tpu.vector_store %arg9[%c0_17, %c0_18], %20 {strides = array<i32>} : memref<32x128xf32, #tpu.memory_space<vmem>>, vector<32x128xf32>,
    return
  }
  func.func @transform_0(%arg0: i32) -> (i32, i32) {
    %c0_i32 = arith.constant 0 : i32
    %c0_i32_0 = arith.constant 0 : i32
    %c0_i32_1 = arith.constant 0 : i32
    return %c0_i32, %c0_i32_0 : i32, i32
  }
  func.func @transform_1(%arg0: i32) -> (i32, i32) {
    %c0_i32 = arith.constant 0 : i32
    %c0_i32_0 = arith.constant 0 : i32
    return %c0_i32, %arg0 : i32, i32
  }
  func.func @transform_2(%arg0: i32) -> (i32, i32) {
    %c0_i32 = arith.constant 0 : i32
    %c0_i32_0 = arith.constant 0 : i32
    %c0_i32_1 = arith.constant 0 : i32
    return %c0_i32, %c0_i32_0 : i32, i32
  }
  func.func @transform_3(%arg0: i32) -> (i32, i32) {
    %c0_i32 = arith.constant 0 : i32
    %c0_i32_0 = arith.constant 0 : i32
    %c0_i32_1 = arith.constant 0 : i32
    return %c0_i32, %c0_i32_0 : i32, i32
  }
  func.func @transform_4(%arg0: i32) -> (i32, i32) {
    %c0_i32 = arith.constant 0 : i32
    %c0_i32_0 = arith.constant 0 : i32
    %c0_i32_1 = arith.constant 0 : i32
    return %c0_i32, %c0_i32_0 : i32, i32
  }
  func.func @transform_5(%arg0: i32) -> (i32, i32) {
    %c0_i32 = arith.constant 0 : i32
    %c0_i32_0 = arith.constant 0 : i32
    %c0_i32_1 = arith.constant 0 : i32
    return %c0_i32, %c0_i32_0 : i32, i32
  }
  func.func @transform_6(%arg0: i32) -> (i32, i32) {
    %c0_i32 = arith.constant 0 : i32
    %c0_i32_0 = arith.constant 0 : i32
    %c0_i32_1 = arith.constant 0 : i32
    return %c0_i32, %c0_i32_0 : i32, i32
  }
  func.func @transform_7(%arg0: i32) -> (i32, i32) {
    %c0_i32 = arith.constant 0 : i32
    %c0_i32_0 = arith.constant 0 : i32
    return %c0_i32, %arg0 : i32, i32
  }
  func.func @transform_8(%arg0: i32) -> (i32, i32) {
    %c0_i32 = arith.constant 0 : i32
    %c0_i32_0 = arith.constant 0 : i32
    return %c0_i32, %arg0 : i32, i32
  }
}

module attributes {stable_mosaic.version = 11 : i64} {
  func.func @_conv_bn_res_relu_kernel(%arg0: i32, %arg1: memref<32x288xbf16, #tpu.memory_space<vmem>>, %arg2: memref<288x128xbf16, #tpu.memory_space<vmem>>, %arg3: memref<32x1xf32, #tpu.memory_space<vmem>>, %arg4: memref<32x1xf32, #tpu.memory_space<vmem>>, %arg5: memref<32x128xf32, #tpu.memory_space<vmem>>, %arg6: memref<32x128xf32, #tpu.memory_space<vmem>>) attributes {dimension_semantics = [#tpu.dimension_semantics<parallel>], iteration_bounds = array<i64: 1>, scalar_prefetch = 0 : i64, scratch_operands = 0 : i64, tpu.core_type = #tpu.core_type<tc>, window_params = [{pipeline_mode = #tpu.pipeline_mode<synchronous>, transform_indices = @transform_0, window_bounds = array<i64: 32, 288>}, {transform_indices = @transform_1, window_bounds = array<i64: 288, 128>}, {pipeline_mode = #tpu.pipeline_mode<synchronous>, transform_indices = @transform_2, window_bounds = array<i64: 32, 1>}, {pipeline_mode = #tpu.pipeline_mode<synchronous>, transform_indices = @transform_3, window_bounds = array<i64: 32, 1>}, {transform_indices = @transform_4, window_bounds = array<i64: 32, 128>}, {transform_indices = @transform_5, window_bounds = array<i64: 32, 128>}]} {
    %c0 = arith.constant 0 : index
    %c0_0 = arith.constant 0 : index
    %0 = vector.load %arg1[%c0, %c0_0] : memref<32x288xbf16, #tpu.memory_space<vmem>>, vector<32x288xbf16>
    %c0_1 = arith.constant 0 : index
    %c0_2 = arith.constant 0 : index
    %1 = vector.load %arg2[%c0_1, %c0_2] : memref<288x128xbf16, #tpu.memory_space<vmem>>, vector<288x128xbf16>
    %cst = arith.constant dense<0.000000e+00> : vector<32x128xf32>
    %2 = tpu.matmul %0, %1, %cst {dimension_numbers = #tpu.dot_dimension_numbers<[1], [0], [0], [1], [0, 0, 1, 1], [], []>} : vector<32x288xbf16>, vector<288x128xbf16>, vector<32x128xf32> -> vector<32x128xf32>
    %c0_3 = arith.constant 0 : index
    %c0_4 = arith.constant 0 : index
    %3 = vector.load %arg3[%c0_3, %c0_4] : memref<32x1xf32, #tpu.memory_space<vmem>>, vector<32x1xf32>
    %4 = vector.broadcast %3 : vector<32x1xf32> to vector<32x128xf32>
    %5 = arith.mulf %2, %4 : vector<32x128xf32>
    %c0_5 = arith.constant 0 : index
    %c0_6 = arith.constant 0 : index
    %6 = vector.load %arg4[%c0_5, %c0_6] : memref<32x1xf32, #tpu.memory_space<vmem>>, vector<32x1xf32>
    %7 = vector.broadcast %6 : vector<32x1xf32> to vector<32x128xf32>
    %8 = arith.addf %5, %7 : vector<32x128xf32>
    %c0_7 = arith.constant 0 : index
    %c0_8 = arith.constant 0 : index
    %9 = vector.load %arg5[%c0_7, %c0_8] : memref<32x128xf32, #tpu.memory_space<vmem>>, vector<32x128xf32>
    %10 = arith.addf %8, %9 : vector<32x128xf32>
    %cst_9 = arith.constant 0.000000e+00 : f32
    %11 = vector.broadcast %cst_9 : f32 to vector<32x128xf32>
    %12 = arith.maximumf %10, %11 : vector<32x128xf32>
    %c0_10 = arith.constant 0 : index
    %c0_11 = arith.constant 0 : index
    %13 = vector.load %arg6[%c0_10, %c0_11] : memref<32x128xf32, #tpu.memory_space<vmem>>, vector<32x128xf32>
    tpu.vector_store %arg6[%c0_10, %c0_11], %12 {strides = array<i32>} : memref<32x128xf32, #tpu.memory_space<vmem>>, vector<32x128xf32>,
    return
  }
  func.func @transform_0(%arg0: i32) -> (i32, i32) {
    %c0_i32 = arith.constant 0 : i32
    %c0_i32_0 = arith.constant 0 : i32
    %c0_i32_1 = arith.constant 0 : i32
    return %c0_i32, %c0_i32_0 : i32, i32
  }
  func.func @transform_1(%arg0: i32) -> (i32, i32) {
    %c0_i32 = arith.constant 0 : i32
    %c0_i32_0 = arith.constant 0 : i32
    return %c0_i32, %arg0 : i32, i32
  }
  func.func @transform_2(%arg0: i32) -> (i32, i32) {
    %c0_i32 = arith.constant 0 : i32
    %c0_i32_0 = arith.constant 0 : i32
    %c0_i32_1 = arith.constant 0 : i32
    return %c0_i32, %c0_i32_0 : i32, i32
  }
  func.func @transform_3(%arg0: i32) -> (i32, i32) {
    %c0_i32 = arith.constant 0 : i32
    %c0_i32_0 = arith.constant 0 : i32
    %c0_i32_1 = arith.constant 0 : i32
    return %c0_i32, %c0_i32_0 : i32, i32
  }
  func.func @transform_4(%arg0: i32) -> (i32, i32) {
    %c0_i32 = arith.constant 0 : i32
    %c0_i32_0 = arith.constant 0 : i32
    return %c0_i32, %arg0 : i32, i32
  }
  func.func @transform_5(%arg0: i32) -> (i32, i32) {
    %c0_i32 = arith.constant 0 : i32
    %c0_i32_0 = arith.constant 0 : i32
    return %c0_i32, %arg0 : i32, i32
  }
}

module attributes {stable_mosaic.version = 11 : i64} {
  func.func @_conv_bn_shortcut_kernel(%arg0: i32, %arg1: memref<64x288xbf16, #tpu.memory_space<vmem>>, %arg2: memref<288x32xbf16, #tpu.memory_space<vmem>>, %arg3: memref<64x1xf32, #tpu.memory_space<vmem>>, %arg4: memref<64x1xf32, #tpu.memory_space<vmem>>, %arg5: memref<64x32xbf16, #tpu.memory_space<vmem>>, %arg6: memref<64x1xf32, #tpu.memory_space<vmem>>, %arg7: memref<64x1xf32, #tpu.memory_space<vmem>>, %arg8: memref<64x32xf32, #tpu.memory_space<vmem>>, %arg9: memref<64x32xf32, #tpu.memory_space<vmem>>) attributes {dimension_semantics = [#tpu.dimension_semantics<parallel>], iteration_bounds = array<i64: 1>, scalar_prefetch = 0 : i64, scratch_operands = 0 : i64, tpu.core_type = #tpu.core_type<tc>, window_params = [{pipeline_mode = #tpu.pipeline_mode<synchronous>, transform_indices = @transform_0, window_bounds = array<i64: 64, 288>}, {transform_indices = @transform_1, window_bounds = array<i64: 288, 32>}, {pipeline_mode = #tpu.pipeline_mode<synchronous>, transform_indices = @transform_2, window_bounds = array<i64: 64, 1>}, {pipeline_mode = #tpu.pipeline_mode<synchronous>, transform_indices = @transform_3, window_bounds = array<i64: 64, 1>}, {pipeline_mode = #tpu.pipeline_mode<synchronous>, transform_indices = @transform_4, window_bounds = array<i64: 64, 32>}, {pipeline_mode = #tpu.pipeline_mode<synchronous>, transform_indices = @transform_5, window_bounds = array<i64: 64, 1>}, {pipeline_mode = #tpu.pipeline_mode<synchronous>, transform_indices = @transform_6, window_bounds = array<i64: 64, 1>}, {transform_indices = @transform_7, window_bounds = array<i64: 64, 32>}, {transform_indices = @transform_8, window_bounds = array<i64: 64, 32>}]} {
    %c0 = arith.constant 0 : index
    %c0_0 = arith.constant 0 : index
    %0 = vector.load %arg2[%c0, %c0_0] : memref<288x32xbf16, #tpu.memory_space<vmem>>, vector<288x32xbf16>
    %c0_1 = arith.constant 0 : index
    %c0_2 = arith.constant 0 : index
    %1 = vector.load %arg1[%c0_1, %c0_2] : memref<64x288xbf16, #tpu.memory_space<vmem>>, vector<64x288xbf16>
    %cst = arith.constant dense<0.000000e+00> : vector<64x32xf32>
    %2 = tpu.matmul %1, %0, %cst {dimension_numbers = #tpu.dot_dimension_numbers<[1], [0], [0], [1], [0, 0, 1, 1], [], []>} : vector<64x288xbf16>, vector<288x32xbf16>, vector<64x32xf32> -> vector<64x32xf32>
    %c0_3 = arith.constant 0 : index
    %c0_4 = arith.constant 0 : index
    %3 = vector.load %arg3[%c0_3, %c0_4] : memref<64x1xf32, #tpu.memory_space<vmem>>, vector<64x1xf32>
    %4 = vector.broadcast %3 : vector<64x1xf32> to vector<64x32xf32>
    %5 = arith.mulf %2, %4 : vector<64x32xf32>
    %c0_5 = arith.constant 0 : index
    %c0_6 = arith.constant 0 : index
    %6 = vector.load %arg4[%c0_5, %c0_6] : memref<64x1xf32, #tpu.memory_space<vmem>>, vector<64x1xf32>
    %7 = vector.broadcast %6 : vector<64x1xf32> to vector<64x32xf32>
    %8 = arith.addf %5, %7 : vector<64x32xf32>
    %cst_7 = arith.constant 0.000000e+00 : f32
    %9 = vector.broadcast %cst_7 : f32 to vector<64x32xf32>
    %10 = arith.maximumf %8, %9 : vector<64x32xf32>
    %c0_8 = arith.constant 0 : index
    %c0_9 = arith.constant 0 : index
    %11 = vector.load %arg8[%c0_8, %c0_9] : memref<64x32xf32, #tpu.memory_space<vmem>>, vector<64x32xf32>
    tpu.vector_store %arg8[%c0_8, %c0_9], %10 {strides = array<i32>} : memref<64x32xf32, #tpu.memory_space<vmem>>, vector<64x32xf32>,
    %12 = vector.extract_strided_slice %0 {offsets = [128, 0], sizes = [32, 32], strides = [1, 1]} : vector<288x32xbf16> to vector<32x32xbf16>
    %c0_10 = arith.constant 0 : index
    %c0_11 = arith.constant 0 : index
    %13 = vector.load %arg5[%c0_10, %c0_11] : memref<64x32xbf16, #tpu.memory_space<vmem>>, vector<64x32xbf16>
    %cst_12 = arith.constant dense<0.000000e+00> : vector<64x32xf32>
    %14 = tpu.matmul %13, %12, %cst_12 {dimension_numbers = #tpu.dot_dimension_numbers<[1], [0], [0], [1], [0, 0, 1, 1], [], []>} : vector<64x32xbf16>, vector<32x32xbf16>, vector<64x32xf32> -> vector<64x32xf32>
    %c0_13 = arith.constant 0 : index
    %c0_14 = arith.constant 0 : index
    %15 = vector.load %arg6[%c0_13, %c0_14] : memref<64x1xf32, #tpu.memory_space<vmem>>, vector<64x1xf32>
    %16 = vector.broadcast %15 : vector<64x1xf32> to vector<64x32xf32>
    %17 = arith.mulf %14, %16 : vector<64x32xf32>
    %c0_15 = arith.constant 0 : index
    %c0_16 = arith.constant 0 : index
    %18 = vector.load %arg7[%c0_15, %c0_16] : memref<64x1xf32, #tpu.memory_space<vmem>>, vector<64x1xf32>
    %19 = vector.broadcast %18 : vector<64x1xf32> to vector<64x32xf32>
    %20 = arith.addf %17, %19 : vector<64x32xf32>
    %c0_17 = arith.constant 0 : index
    %c0_18 = arith.constant 0 : index
    %21 = vector.load %arg9[%c0_17, %c0_18] : memref<64x32xf32, #tpu.memory_space<vmem>>, vector<64x32xf32>
    tpu.vector_store %arg9[%c0_17, %c0_18], %20 {strides = array<i32>} : memref<64x32xf32, #tpu.memory_space<vmem>>, vector<64x32xf32>,
    return
  }
  func.func @transform_0(%arg0: i32) -> (i32, i32) {
    %c0_i32 = arith.constant 0 : i32
    %c0_i32_0 = arith.constant 0 : i32
    %c0_i32_1 = arith.constant 0 : i32
    return %c0_i32, %c0_i32_0 : i32, i32
  }
  func.func @transform_1(%arg0: i32) -> (i32, i32) {
    %c0_i32 = arith.constant 0 : i32
    %c0_i32_0 = arith.constant 0 : i32
    return %c0_i32, %arg0 : i32, i32
  }
  func.func @transform_2(%arg0: i32) -> (i32, i32) {
    %c0_i32 = arith.constant 0 : i32
    %c0_i32_0 = arith.constant 0 : i32
    %c0_i32_1 = arith.constant 0 : i32
    return %c0_i32, %c0_i32_0 : i32, i32
  }
  func.func @transform_3(%arg0: i32) -> (i32, i32) {
    %c0_i32 = arith.constant 0 : i32
    %c0_i32_0 = arith.constant 0 : i32
    %c0_i32_1 = arith.constant 0 : i32
    return %c0_i32, %c0_i32_0 : i32, i32
  }
  func.func @transform_4(%arg0: i32) -> (i32, i32) {
    %c0_i32 = arith.constant 0 : i32
    %c0_i32_0 = arith.constant 0 : i32
    %c0_i32_1 = arith.constant 0 : i32
    return %c0_i32, %c0_i32_0 : i32, i32
  }
  func.func @transform_5(%arg0: i32) -> (i32, i32) {
    %c0_i32 = arith.constant 0 : i32
    %c0_i32_0 = arith.constant 0 : i32
    %c0_i32_1 = arith.constant 0 : i32
    return %c0_i32, %c0_i32_0 : i32, i32
  }
  func.func @transform_6(%arg0: i32) -> (i32, i32) {
    %c0_i32 = arith.constant 0 : i32
    %c0_i32_0 = arith.constant 0 : i32
    %c0_i32_1 = arith.constant 0 : i32
    return %c0_i32, %c0_i32_0 : i32, i32
  }
  func.func @transform_7(%arg0: i32) -> (i32, i32) {
    %c0_i32 = arith.constant 0 : i32
    %c0_i32_0 = arith.constant 0 : i32
    return %c0_i32, %arg0 : i32, i32
  }
  func.func @transform_8(%arg0: i32) -> (i32, i32) {
    %c0_i32 = arith.constant 0 : i32
    %c0_i32_0 = arith.constant 0 : i32
    return %c0_i32, %arg0 : i32, i32
  }
}

module attributes {stable_mosaic.version = 11 : i64} {
  func.func @_conv_bn_res_relu_kernel(%arg0: i32, %arg1: memref<64x576xbf16, #tpu.memory_space<vmem>>, %arg2: memref<576x32xbf16, #tpu.memory_space<vmem>>, %arg3: memref<64x1xf32, #tpu.memory_space<vmem>>, %arg4: memref<64x1xf32, #tpu.memory_space<vmem>>, %arg5: memref<64x32xf32, #tpu.memory_space<vmem>>, %arg6: memref<64x32xf32, #tpu.memory_space<vmem>>) attributes {dimension_semantics = [#tpu.dimension_semantics<parallel>], iteration_bounds = array<i64: 1>, scalar_prefetch = 0 : i64, scratch_operands = 0 : i64, tpu.core_type = #tpu.core_type<tc>, window_params = [{pipeline_mode = #tpu.pipeline_mode<synchronous>, transform_indices = @transform_0, window_bounds = array<i64: 64, 576>}, {transform_indices = @transform_1, window_bounds = array<i64: 576, 32>}, {pipeline_mode = #tpu.pipeline_mode<synchronous>, transform_indices = @transform_2, window_bounds = array<i64: 64, 1>}, {pipeline_mode = #tpu.pipeline_mode<synchronous>, transform_indices = @transform_3, window_bounds = array<i64: 64, 1>}, {transform_indices = @transform_4, window_bounds = array<i64: 64, 32>}, {transform_indices = @transform_5, window_bounds = array<i64: 64, 32>}]} {
    %c0 = arith.constant 0 : index
    %c0_0 = arith.constant 0 : index
    %0 = vector.load %arg1[%c0, %c0_0] : memref<64x576xbf16, #tpu.memory_space<vmem>>, vector<64x576xbf16>
    %c0_1 = arith.constant 0 : index
    %c0_2 = arith.constant 0 : index
    %1 = vector.load %arg2[%c0_1, %c0_2] : memref<576x32xbf16, #tpu.memory_space<vmem>>, vector<576x32xbf16>
    %cst = arith.constant dense<0.000000e+00> : vector<64x32xf32>
    %2 = tpu.matmul %0, %1, %cst {dimension_numbers = #tpu.dot_dimension_numbers<[1], [0], [0], [1], [0, 0, 1, 1], [], []>} : vector<64x576xbf16>, vector<576x32xbf16>, vector<64x32xf32> -> vector<64x32xf32>
    %c0_3 = arith.constant 0 : index
    %c0_4 = arith.constant 0 : index
    %3 = vector.load %arg3[%c0_3, %c0_4] : memref<64x1xf32, #tpu.memory_space<vmem>>, vector<64x1xf32>
    %4 = vector.broadcast %3 : vector<64x1xf32> to vector<64x32xf32>
    %5 = arith.mulf %2, %4 : vector<64x32xf32>
    %c0_5 = arith.constant 0 : index
    %c0_6 = arith.constant 0 : index
    %6 = vector.load %arg4[%c0_5, %c0_6] : memref<64x1xf32, #tpu.memory_space<vmem>>, vector<64x1xf32>
    %7 = vector.broadcast %6 : vector<64x1xf32> to vector<64x32xf32>
    %8 = arith.addf %5, %7 : vector<64x32xf32>
    %c0_7 = arith.constant 0 : index
    %c0_8 = arith.constant 0 : index
    %9 = vector.load %arg5[%c0_7, %c0_8] : memref<64x32xf32, #tpu.memory_space<vmem>>, vector<64x32xf32>
    %10 = arith.addf %8, %9 : vector<64x32xf32>
    %cst_9 = arith.constant 0.000000e+00 : f32
    %11 = vector.broadcast %cst_9 : f32 to vector<64x32xf32>
    %12 = arith.maximumf %10, %11 : vector<64x32xf32>
    %c0_10 = arith.constant 0 : index
    %c0_11 = arith.constant 0 : index
    %13 = vector.load %arg6[%c0_10, %c0_11] : memref<64x32xf32, #tpu.memory_space<vmem>>, vector<64x32xf32>
    tpu.vector_store %arg6[%c0_10, %c0_11], %12 {strides = array<i32>} : memref<64x32xf32, #tpu.memory_space<vmem>>, vector<64x32xf32>,
    return
  }
  func.func @transform_0(%arg0: i32) -> (i32, i32) {
    %c0_i32 = arith.constant 0 : i32
    %c0_i32_0 = arith.constant 0 : i32
    %c0_i32_1 = arith.constant 0 : i32
    return %c0_i32, %c0_i32_0 : i32, i32
  }
  func.func @transform_1(%arg0: i32) -> (i32, i32) {
    %c0_i32 = arith.constant 0 : i32
    %c0_i32_0 = arith.constant 0 : i32
    return %c0_i32, %arg0 : i32, i32
  }
  func.func @transform_2(%arg0: i32) -> (i32, i32) {
    %c0_i32 = arith.constant 0 : i32
    %c0_i32_0 = arith.constant 0 : i32
    %c0_i32_1 = arith.constant 0 : i32
    return %c0_i32, %c0_i32_0 : i32, i32
  }
  func.func @transform_3(%arg0: i32) -> (i32, i32) {
    %c0_i32 = arith.constant 0 : i32
    %c0_i32_0 = arith.constant 0 : i32
    %c0_i32_1 = arith.constant 0 : i32
    return %c0_i32, %c0_i32_0 : i32, i32
  }
  func.func @transform_4(%arg0: i32) -> (i32, i32) {
    %c0_i32 = arith.constant 0 : i32
    %c0_i32_0 = arith.constant 0 : i32
    return %c0_i32, %arg0 : i32, i32
  }
  func.func @transform_5(%arg0: i32) -> (i32, i32) {
    %c0_i32 = arith.constant 0 : i32
    %c0_i32_0 = arith.constant 0 : i32
    return %c0_i32, %arg0 : i32, i32
  }
}

module attributes {stable_mosaic.version = 11 : i64} {
  func.func @_head_kernel(%arg0: i32, %arg1: memref<64x32xf32, #tpu.memory_space<vmem>>, %arg2: memref<32x2xf32, #tpu.memory_space<vmem>>, %arg3: memref<10x64xf32, #tpu.memory_space<vmem>>, %arg4: memref<10x1xf32, #tpu.memory_space<vmem>>, %arg5: memref<10x2xf32, #tpu.memory_space<vmem>>) attributes {dimension_semantics = [#tpu.dimension_semantics<arbitrary>], iteration_bounds = array<i64: 1>, scalar_prefetch = 0 : i64, scratch_operands = 0 : i64, tpu.core_type = #tpu.core_type<tc>, window_params = [{pipeline_mode = #tpu.pipeline_mode<synchronous>, transform_indices = @transform_0, window_bounds = array<i64: 64, 32>}, {pipeline_mode = #tpu.pipeline_mode<synchronous>, transform_indices = @transform_1, window_bounds = array<i64: 32, 2>}, {pipeline_mode = #tpu.pipeline_mode<synchronous>, transform_indices = @transform_2, window_bounds = array<i64: 10, 64>}, {pipeline_mode = #tpu.pipeline_mode<synchronous>, transform_indices = @transform_3, window_bounds = array<i64: 10, 1>}, {pipeline_mode = #tpu.pipeline_mode<synchronous>, transform_indices = @transform_4, window_bounds = array<i64: 10, 2>}]} {
    %c0 = arith.constant 0 : index
    %c0_0 = arith.constant 0 : index
    %0 = vector.load %arg1[%c0, %c0_0] : memref<64x32xf32, #tpu.memory_space<vmem>>, vector<64x32xf32>
    %c0_1 = arith.constant 0 : index
    %c0_2 = arith.constant 0 : index
    %1 = vector.load %arg2[%c0_1, %c0_2] : memref<32x2xf32, #tpu.memory_space<vmem>>, vector<32x2xf32>
    %cst = arith.constant dense<0.000000e+00> : vector<64x2xf32>
    %2 = tpu.matmul %0, %1, %cst {dimension_numbers = #tpu.dot_dimension_numbers<[1], [0], [0], [1], [0, 0, 1, 1], [], []>} : vector<64x32xf32>, vector<32x2xf32>, vector<64x2xf32> -> vector<64x2xf32>
    %c0_3 = arith.constant 0 : index
    %c0_4 = arith.constant 0 : index
    %3 = vector.load %arg3[%c0_3, %c0_4] : memref<10x64xf32, #tpu.memory_space<vmem>>, vector<10x64xf32>
    %cst_5 = arith.constant dense<0.000000e+00> : vector<10x2xf32>
    %4 = tpu.matmul %3, %2, %cst_5 {dimension_numbers = #tpu.dot_dimension_numbers<[1], [0], [0], [1], [0, 0, 1, 1], [], []>} : vector<10x64xf32>, vector<64x2xf32>, vector<10x2xf32> -> vector<10x2xf32>
    %c0_6 = arith.constant 0 : index
    %c0_7 = arith.constant 0 : index
    %5 = vector.load %arg4[%c0_6, %c0_7] : memref<10x1xf32, #tpu.memory_space<vmem>>, vector<10x1xf32>
    %6 = vector.broadcast %5 : vector<10x1xf32> to vector<10x2xf32>
    %7 = arith.addf %4, %6 : vector<10x2xf32>
    %c0_8 = arith.constant 0 : index
    %c0_9 = arith.constant 0 : index
    %8 = vector.load %arg5[%c0_8, %c0_9] : memref<10x2xf32, #tpu.memory_space<vmem>>, vector<10x2xf32>
    tpu.vector_store %arg5[%c0_8, %c0_9], %7 {strides = array<i32>} : memref<10x2xf32, #tpu.memory_space<vmem>>, vector<10x2xf32>,
    return
  }
  func.func @transform_0(%arg0: i32) -> (i32, i32) {
    %c0_i32 = arith.constant 0 : i32
    %c0_i32_0 = arith.constant 0 : i32
    %c0_i32_1 = arith.constant 0 : i32
    return %c0_i32, %c0_i32_0 : i32, i32
  }
  func.func @transform_1(%arg0: i32) -> (i32, i32) {
    %c0_i32 = arith.constant 0 : i32
    %c0_i32_0 = arith.constant 0 : i32
    %c0_i32_1 = arith.constant 0 : i32
    return %c0_i32, %c0_i32_0 : i32, i32
  }
  func.func @transform_2(%arg0: i32) -> (i32, i32) {
    %c0_i32 = arith.constant 0 : i32
    %c0_i32_0 = arith.constant 0 : i32
    %c0_i32_1 = arith.constant 0 : i32
    return %c0_i32, %c0_i32_0 : i32, i32
  }
  func.func @transform_3(%arg0: i32) -> (i32, i32) {
    %c0_i32 = arith.constant 0 : i32
    %c0_i32_0 = arith.constant 0 : i32
    %c0_i32_1 = arith.constant 0 : i32
    return %c0_i32, %c0_i32_0 : i32, i32
  }
  func.func @transform_4(%arg0: i32) -> (i32, i32) {
    %c0_i32 = arith.constant 0 : i32
    %c0_i32_0 = arith.constant 0 : i32
    %c0_i32_1 = arith.constant 0 : i32
    return %c0_i32, %c0_i32_0 : i32, i32
  }
}

</mosaic_0001>

<llo_original>
// kernel: _lambda_.8
$region0: #{_lambda_.8}
  #allocation0 [shape = 'u32[]', space=smem, size = 0x4, offset = 0x4, fixed_abs, tag = 'smem constant byte address 0x4 - core index']
  #allocation1 [shape = 'u32[144,128]{1,0:T(1,128)}', space=vmem, size = 0x12000, scoped, tag = 'internal scratch']
  %s0 = inlined_call_operand.vmem [shape: bf16[16,27], index: 0, kind: input, shape index: {}]
  %s1 = inlined_call_operand.vmem [shape: bf16[27,512], index: 1, kind: input, shape index: {}]
  %s2 = inlined_call_operand.vmem [shape: f32[16,1], index: 2, kind: input, shape index: {}]
  %s3 = inlined_call_operand.vmem [shape: f32[16,1], index: 3, kind: input, shape index: {}]
  %s4 = inlined_call_operand.vmem [shape: f32[16,512], index: 4, kind: output, shape index: {}]
  %s5 = sld [smem:[#allocation0]]
  $region106: #{_lambda_.8} parent=0
    _
  %s7 = ssub.s32 1, %s5
  %s8 = scalar_select 0, %s7, %s5
  $region1: #{_lambda_.8} parent=0
    #allocation2 [shape = 'u8[32768]{0}', space=vmem, size = 0x8000, scoped, tag = 'input window, operand 1']
    #allocation3 [shape = 'u8[32768]{0}', space=vmem, size = 0x8000, scoped, tag = 'output window, operand 0']
    loop: start=0, step=1, limit=4
    $region2: #{_lambda_.8} parent=1 // loop_pre_header
      _
    $region3: #{_lambda_.8} parent=1 // loop_header
      %s10 = sphi 0, %s14
      %p11 = scmp.ge.s32.totalorder %s10, 4
      %s18 = sphi 0, %s18
      %s20 = sphi 0, %s18
      %s21 = sphi 0, %s20
      %s35 = sphi 0, %s21
      %s41 = sphi 0, %s43
      %s44 = sphi 0, %s41
      %s45 = sphi 0, %s44
      %s61 = sphi 0, %s45
      %s65 = sphi 0, %s65
      %s67 = sphi 0, %s65
      %s68 = sphi 0, %s67
      %s82 = sphi 0, %s68
      %s86 = sphi 0, %s86
      %s88 = sphi 0, %s86
      %s89 = sphi 0, %s88
      %s103 = sphi 0, %s89
      %s109 = sphi 0, %s111
      %s112 = sphi 0, %s109
      %s113 = sphi 0, %s112
      %s129 = sphi 0, %s113
    $region4: #{_lambda_.8} parent=1 // loop_header_branch
      %13 = sbr.rel (%p11) target = $region8
    $region5: #{_lambda_.8} parent=1 // loop_body
      %s15 = ssub.s32 %s10, 1
      %s16 = ssub.s32 %s10, 2
      %s17 = sadd.s32 %s10, 1
      %s19 = sadd.s32 %s18, 1
      %p22 = scmp.eq.s32.totalorder %s10, 1
      %p23 = scmp.ne.s32.totalorder %s18, %s20
      %p24 = scmp.eq.s32.totalorder %s10, 0
      %p25 = por %p23, %p24
      %p26 = scmp.ne.s32.totalorder %s18, %s20
      %p27 = scmp.eq.s32.totalorder %s15, 1
      %p28 = por %p26, %p27
      %p29 = scmp.ne.s32.totalorder %s20, %s21
      %p30 = scmp.eq.s32.totalorder %s15, 0
      %p31 = por %p29, %p30
      %p32 = scmp.ne.s32.totalorder %s20, %s21
      %p33 = scmp.eq.s32.totalorder %s16, 1
      %p34 = por %p32, %p33
      %p36 = scmp.ne.s32.totalorder %s21, %s35
      %p37 = scmp.eq.s32.totalorder %s16, 0
      %p38 = por %p36, %p37
      %s39 = ssub.s32 %s10, %s17
      %p40 = scmp.eq.s32.totalorder %s39, 0
      %s42 = sadd.s32 %s41, 1
      %s43 = scalar_select %p40, %s41, %s42
      %p46 = pneg %p40
      %p47 = scmp.eq.s32.totalorder %s10, 1
      %p48 = por %p46, %p47
      %p49 = scmp.ne.s32.totalorder %s41, %s44
      %p50 = scmp.eq.s32.totalorder %s10, 0
      %p51 = por %p49, %p50
      %p52 = scmp.ne.s32.totalorder %s41, %s44
      %p53 = scmp.eq.s32.totalorder %s15, 1
      %p54 = por %p52, %p53
      %p55 = scmp.ne.s32.totalorder %s44, %s45
      %p56 = scmp.eq.s32.totalorder %s15, 0
      %p57 = por %p55, %p56
      %p58 = scmp.ne.s32.totalorder %s44, %s45
      %p59 = scmp.eq.s32.totalorder %s16, 1
      %p60 = por %p58, %p59
      %p62 = scmp.ne.s32.totalorder %s45, %s61
      %p63 = scmp.eq.s32.totalorder %s16, 0
      %p64 = por %p62, %p63
      %s66 = sadd.s32 %s65, 1
      %p69 = scmp.eq.s32.totalorder %s10, 1
      %p70 = scmp.ne.s32.totalorder %s65, %s67
      %p71 = scmp.eq.s32.totalorder %s10, 0
      %p72 = por %p70, %p71
      %p73 = scmp.ne.s32.totalorder %s65, %s67
      %p74 = scmp.eq.s32.totalorder %s15, 1
      %p75 = por %p73, %p74
      %p76 = scmp.ne.s32.totalorder %s67, %s68
      %p77 = scmp.eq.s32.totalorder %s15, 0
      %p78 = por %p76, %p77
      %p79 = scmp.ne.s32.totalorder %s67, %s68
      %p80 = scmp.eq.s32.totalorder %s16, 1
      %p81 = por %p79, %p80
      %p83 = scmp.ne.s32.totalorder %s68, %s82
      %p84 = scmp.eq.s32.totalorder %s16, 0
      %p85 = por %p83, %p84
      %s87 = sadd.s32 %s86, 1
      %p90 = scmp.eq.s32.totalorder %s10, 1
      %p91 = scmp.ne.s32.totalorder %s86, %s88
      %p92 = scmp.eq.s32.totalorder %s10, 0
      %p93 = por %p91, %p92
      %p94 = scmp.ne.s32.totalorder %s86, %s88
      %p95 = scmp.eq.s32.totalorder %s15, 1
      %p96 = por %p94, %p95
      %p97 = scmp.ne.s32.totalorder %s88, %s89
      %p98 = scmp.eq.s32.totalorder %s15, 0
      %p99 = por %p97, %p98
      %p100 = scmp.ne.s32.totalorder %s88, %s89
      %p101 = scmp.eq.s32.totalorder %s16, 1
      %p102 = por %p100, %p101
      %p104 = scmp.ne.s32.totalorder %s89, %s103
      %p105 = scmp.eq.s32.totalorder %s16, 0
      %p106 = por %p104, %p105
      %s107 = ssub.s32 %s10, %s17
      %p108 = scmp.eq.s32.totalorder %s107, 0
      %s110 = sadd.s32 %s109, 1
      %s111 = scalar_select %p108, %s109, %s110
      %p114 = pneg %p108
      %p115 = scmp.eq.s32.totalorder %s10, 1
      %p116 = por %p114, %p115
      %p117 = scmp.ne.s32.totalorder %s109, %s112
      %p118 = scmp.eq.s32.totalorder %s10, 0
      %p119 = por %p117, %p118
      %p120 = scmp.ne.s32.totalorder %s109, %s112
      %p121 = scmp.eq.s32.totalorder %s15, 1
      %p122 = por %p120, %p121
      %p123 = scmp.ne.s32.totalorder %s112, %s113
      %p124 = scmp.eq.s32.totalorder %s15, 0
      %p125 = por %p123, %p124
      %p126 = scmp.ne.s32.totalorder %s112, %s113
      %p127 = scmp.eq.s32.totalorder %s16, 1
      %p128 = por %p126, %p127
      %p130 = scmp.ne.s32.totalorder %s113, %s129
      %p131 = scmp.eq.s32.totalorder %s16, 0
      %p132 = por %p130, %p131
      %p133 = scmp.le.s32.totalorder 1, %s10
      %p134 = scmp.lt.s32.totalorder %s10, 3
      %p135 = pnand %p133, %p134
      %p136 = pneg %p135
      // Predicated region
      $region9: #{_lambda_.8} parent=5 // pred_check
        _
      $region10: #{_lambda_.8} parent=5 // pred_check_branch
        %138 = sbr.rel (%p135) target = $region12
      $region11: #{_lambda_.8} parent=5 // pred_region
        %s139 = ssub.s32 %s10, 1
        // Predicated region
        $region13: #{_lambda_.8} parent=11 // pred_check
          %p140 = pneg %p31
        $region14: #{_lambda_.8} parent=11 // pred_check_branch
          %142 = sbr.rel (%p140) target = $region16
        $region15: #{_lambda_.8} parent=11 // pred_region
          _
        $region16: #{_lambda_.8} parent=11 // pred_fallthru
          _
        // Predicated region
        $region17: #{_lambda_.8} parent=11 // pred_check
          %p143 = pneg %p78
        $region18: #{_lambda_.8} parent=11 // pred_check_branch
          %145 = sbr.rel (%p143) target = $region20
        $region19: #{_lambda_.8} parent=11 // pred_region
          _
        $region20: #{_lambda_.8} parent=11 // pred_fallthru
          _
        // Predicated region
        $region21: #{_lambda_.8} parent=11 // pred_check
          %p146 = pneg %p99
        $region22: #{_lambda_.8} parent=11 // pred_check_branch
          %148 = sbr.rel (%p146) target = $region24
        $region23: #{_lambda_.8} parent=11 // pred_region
          _
        $region24: #{_lambda_.8} parent=11 // pred_fallthru
          _
      $region12: #{_lambda_.8} parent=5 // pred_fallthru
        _
      %p149 = scmp.lt.s32.totalorder %s10, 2
      // Predicated region
      $region25: #{_lambda_.8} parent=5 // pred_check
        %p150 = pneg %p149
      $region26: #{_lambda_.8} parent=5 // pred_check_branch
        %152 = sbr.rel (%p150) target = $region28
      $region27: #{_lambda_.8} parent=5 // pred_region
        // Predicated region
        $region29: #{_lambda_.8} parent=27 // pred_check
          %p153 = pneg %p51
        $region30: #{_lambda_.8} parent=27 // pred_check_branch
          %155 = sbr.rel (%p153) target = $region32
        $region31: #{_lambda_.8} parent=27 // pred_region
          %s156 = sand.u32 %s41, 1
          %s157 = sand.u32 %s41, 1
          %s158 = smul.addr %s157, 32
          %s159 = scalar_lea.vmem [#allocation2], %s158
          %s160 = smul.u32 2, %s10
          %s161 = smul.addr %s160, 4
          %s162 = scalar_lea.vmem %s1, %s161
          // Predicated region
          $region33: #{_lambda_.8} parent=31 // pred_check
            _
          $region34: #{_lambda_.8} parent=31 // pred_check_branch
            %164 = sbr.rel (0) target = $region36
          $region35: #{_lambda_.8} parent=31 // pred_region
            // Predicated region
            $region37: #{_lambda_.8} parent=35 // pred_check
              _
            $region38: #{_lambda_.8} parent=35 // pred_check_branch
              %166 = sbr.rel (0) target = $region40
            $region39: #{_lambda_.8} parent=35 // pred_region
              // Predicated region
              $region52: #{_lambda_.8} parent=39 // pred_check
                _
              $region53: #{_lambda_.8} parent=39 // pred_check_branch
                %188 = sbr.rel (0) target = $region55
              $region54: #{_lambda_.8} parent=39 // pred_region
                loop: start=0, step=1, limit=1
                $region56: #{_lambda_.8} parent=54 // loop_pre_header
                  _
                $region57: #{_lambda_.8} parent=54 // loop_header
                  %s190 = sphi 0, %s194
                  %p191 = scmp.ge.s32.totalorder %s190, 1
                  %s195 = sphi %s162, %s162
                  %s196 = sphi %s159, %s159
                $region58: #{_lambda_.8} parent=54 // loop_header_branch
                  %193 = sbr.rel (%p191) target = $region62
                $region59: #{_lambda_.8} parent=54 // loop_body
                  %v197 = vld [vmem:[%s195] sm:$0xff]
                  %198 = vst [vmem:[%s196] sm:$0xff] %v197
                  %v199 = vld [vmem:[%s195 + $0x10] sm:$0xff]
                  %200 = vst [vmem:[%s196 + $0x8] sm:$0xff] %v199
                  %v201 = vld [vmem:[%s195 + $0x20] sm:$0xff]
                  %202 = vst [vmem:[%s196 + $0x10] sm:$0xff] %v201
                  %v203 = vld [vmem:[%s195 + $0x30] sm:$0xff]
                  %204 = vst [vmem:[%s196 + $0x18] sm:$0xff] %v203
                $region60: #{_lambda_.8} parent=54 // loop_footer
                  %s194 = sadd.s32 1, %s190
                $region61: #{_lambda_.8} parent=54 // loop_footer_branch
                  %189 = sbr.rel target = $region57
                $region62: #{_lambda_.8} parent=54 // loop_exit
                  _
              $region55: #{_lambda_.8} parent=39 // pred_fallthru
                _
              // Predicated region
              $region63: #{_lambda_.8} parent=39 // pred_check
                _
              $region64: #{_lambda_.8} parent=39 // pred_check_branch
                %206 = sbr.rel target = $region66
              $region65: #{_lambda_.8} parent=39 // pred_region
                _
              $region66: #{_lambda_.8} parent=39 // pred_fallthru
                _
            $region40: #{_lambda_.8} parent=35 // pred_fallthru
              _
            // Predicated region
            $region41: #{_lambda_.8} parent=35 // pred_check
              _
            $region42: #{_lambda_.8} parent=35 // pred_check_branch
              %168 = sbr.rel target = $region44
            $region43: #{_lambda_.8} parent=35 // pred_region
              %s170 = ssub.s32 256, 1
              loop: start=0, step=1, limit=1
              $region45: #{_lambda_.8} parent=43 // loop_pre_header
                _
              $region46: #{_lambda_.8} parent=43 // loop_header
                %s172 = sphi 0, %s176
                %p173 = scmp.ge.s32.totalorder %s172, 1
                %s177 = sphi %s162, %s162
                %s178 = sphi %s159, %s159
              $region47: #{_lambda_.8} parent=43 // loop_header_branch
                %175 = sbr.rel (%p173) target = $region51
              $region48: #{_lambda_.8} parent=43 // loop_body
                %v179 = vld [vmem:[%s177] sm:%s170]
                %180 = vst [vmem:[%s178] sm:%s170] %v179
                %v181 = vld [vmem:[%s177 + $0x10] sm:%s170]
                %182 = vst [vmem:[%s178 + $0x8] sm:%s170] %v181
                %v183 = vld [vmem:[%s177 + $0x20] sm:%s170]
                %184 = vst [vmem:[%s178 + $0x10] sm:%s170] %v183
                %v185 = vld [vmem:[%s177 + $0x30] sm:%s170]
                %186 = vst [vmem:[%s178 + $0x18] sm:%s170] %v185
              $region49: #{_lambda_.8} parent=43 // loop_footer
                %s176 = sadd.s32 1, %s172
              $region50: #{_lambda_.8} parent=43 // loop_footer_branch
                %171 = sbr.rel target = $region46
              $region51: #{_lambda_.8} parent=43 // loop_exit
                _
            $region44: #{_lambda_.8} parent=35 // pred_fallthru
              _
          $region36: #{_lambda_.8} parent=31 // pred_fallthru
            _
          %207 = vnop
        $region32: #{_lambda_.8} parent=27 // pred_fallthru
          _
      $region28: #{_lambda_.8} parent=5 // pred_fallthru
        _
      %p208 = scmp.le.s32.totalorder 1, %s10
      %p209 = scmp.lt.s32.totalorder %s10, 3
      %p210 = pnand %p208, %p209
      %p211 = pneg %p210
      // Predicated region
      $region67: #{_lambda_.8} parent=5 // pred_check
        _
      $region68: #{_lambda_.8} parent=5 // pred_check_branch
        %213 = sbr.rel (%p210) target = $region70
      $region69: #{_lambda_.8} parent=5 // pred_region
        %s214 = ssub.s32 %s10, 1
        %s215 = sand.u32 %s44, 1
        %s216 = sand.u32 %s44, 1
        %s217 = smul.addr %s216, 32
        %s218 = scalar_lea.vmem [#allocation2], %s217
        // Predicated region
        $region71: #{_lambda_.8} parent=69 // pred_check
          %p219 = pneg %p57
        $region72: #{_lambda_.8} parent=69 // pred_check_branch
          %221 = sbr.rel (%p219) target = $region74
        $region73: #{_lambda_.8} parent=69 // pred_region
          _
        $region74: #{_lambda_.8} parent=69 // pred_fallthru
          _
        %p222 = pneg %p31
        %p223 = pneg %p28
        %s224 = sand.u32 %s44, 1
        %s225 = sand.u32 %s44, 1
        %s226 = smul.addr %s225, 32
        %s227 = scalar_lea.vmem [#allocation2], %s226
        %p228 = pneg %p57
        %p229 = pneg %p54
        %p230 = pneg %p78
        %p231 = pneg %p75
        %p232 = pneg %p99
        %p233 = pneg %p96
        %p234 = pneg %p125
        %p235 = pneg %p122
        %s236 = sand.u32 %s112, 1
        %s237 = sand.u32 %s112, 1
        %s238 = smul.addr %s237, 32
        %s239 = scalar_lea.vmem [#allocation3], %s238
        %s240 = smul.u32 2, %s15
        %s241 = smul.u32 2, %s15
        %v243 = vld [vmem:[%s0] sm:$0xf]
        %v244 = vld [vmem:[%s0 + $0x4] sm:$0xf]
        %v245 = vld [vmem:[%s218] sm:$0xff]
        %v246 = vld [vmem:[%s218 + $0x8] sm:$0xff]
        %v247 = vld [vmem:[%s218 + $0x10] sm:$0xff]
        %v248 = vld [vmem:[%s218 + $0x18] sm:$0x33]
        %v251 = vunpack.c.l.b16 %v243
        %v252 = vunpack.c.l.b16 %v244
        %v253 = vpack.c.b16 %v252, %v251
        %v258 = vunpack.c.l.b16 %v245
        %v259 = vunpack.c.h.b16 %v245
        %v260 = vunpack.c.l.b16 %v246
        %v261 = vunpack.c.h.b16 %v246
        %v262 = vunpack.c.l.b16 %v247
        %v263 = vunpack.c.h.b16 %v247
        %v264 = vunpack.c.l.b16 %v248
        %v265 = vunpack.c.h.b16 %v248
        %v266 = vpack.c.b16 %v260, %v258
        %v267 = vpack.c.b16 %v261, %v259
        %v268 = vpack.c.b16 %v264, %v262
        %v269 = vpack.c.b16 %v265, %v263
        %vm272 = vcmask 220160
        %v274 = vsel %vm272, %v253, 0
        %vm276 = vcmask 1044480
        %vm277 = vcmask 1045504
        %v278 = vsel %vm276, 4294967295, 65535
        %v279 = vsel %vm277, %v278, 0
        %v281 = vand.u32 %v268, %v279
        %v284 = vand.u32 %v269, %v279
        %286 = vmatprep.subr.bf16.mxu0 0
        %287 = vmatpush1.bf16.msra.mxu0 0
        %288 = vmatprep.subr.bf16.mxu0 0
        %289 = vmatpush1.bf16.msra.mxu0 0
        %290 = vmatprep.subr.bf16.mxu0 0
        %291 = vmatpush1.bf16.msra.mxu0 0
        %292 = vmatprep.subr.bf16.mxu0 0
        %293 = vmatpush1.bf16.msra.mxu0 0
        %294 = vmatprep.subr.bf16.mxu0 0
        %295 = vmatpush1.bf16.msra.mxu0 0
        %296 = vmatprep.subr.bf16.mxu0 0
        %297 = vmatpush1.bf16.msra.mxu0 0
        %298 = vmatprep.subr.bf16.mxu0 %v284
        %299 = vmatpush1.bf16.msra.mxu0 %v281
        %300 = vmatprep.subr.bf16.mxu0 %v267
        %301 = vmatpush1.bf16.msra.mxu0 %v266
        %302 = vmatprep.subr.bf16.mxu0 0
        %303 = vmatpush2.bf16.msra.mxu0 0
        %304 = vmatprep.subr.bf16.mxu0 0
        %305 = vmatpush2.bf16.msra.mxu0 0
        %306 = vmatprep.subr.bf16.mxu0 0
        %307 = vmatpush2.bf16.msra.mxu0 0
        %308 = vmatprep.subr.bf16.mxu0 0
        %309 = vmatpush2.bf16.msra.mxu0 0
        %310 = vmatprep.subr.bf16.mxu0 0
        %311 = vmatpush2.bf16.msra.mxu0 0
        %312 = vmatprep.subr.bf16.mxu0 0
        %313 = vmatpush2.bf16.msra.mxu0 0
        %314 = vmatprep.subr.bf16.mxu0 0
        %315 = vmatpush2.bf16.msra.mxu0 0
        %316 = vmatprep.subr.bf16.mxu0 0
        %317 = vmatpush2.bf16.msra.mxu0 0
        %318 = vmatprep.mubr.bf16.mxu0 0
        %319 = vmatmul.mubr.bf16.gmra.mxu0 %v274
        %v320 = vpop.f32.mrf.mxu0
        %v321 = vadd.f32 0.0, %v320
        %v322 = vpop.f32.mrf.mxu0
        %v323 = vadd.f32 0.0, %v322
        %v324 = vpop.f32.mrf.mxu0
        %v325 = vadd.f32 0.0, %v324
        %v326 = vpop.f32.mrf.mxu0
        %v327 = vadd.f32 0.0, %v326
        %328 = vdwg.mxu0
        %v329 = vld [vmem:[%s2] sm:$0xff]
        %v330 = vld [vmem:[%s2 + $0x8] sm:$0xff]
        %332 = vset.pattern.permute.xlu0 0
        %333 = vperm.xlu0 %332, %v329
        %v334 = vpop.permute.xlu0 %333
        %337 = vset.pattern.permute.xlu0 0
        %338 = vperm.xlu0 %337, %v330
        %v339 = vpop.permute.xlu0 %338
        %v341 = vmul.f32 %v321, %v334
        %v342 = vmul.f32 %v323, %v334
        %v343 = vmul.f32 %v325, %v339
        %v344 = vmul.f32 %v327, %v339
        %v345 = vld [vmem:[%s3] sm:$0xff]
        %v346 = vld [vmem:[%s3 + $0x8] sm:$0xff]
        %348 = vset.pattern.permute.xlu0 0
        %349 = vperm.xlu0 %348, %v345
        %v350 = vpop.permute.xlu0 %349
        %353 = vset.pattern.permute.xlu0 0
        %354 = vperm.xlu0 %353, %v346
        %v355 = vpop.permute.xlu0 %354
        %v357 = vadd.f32 %v341, %v350
        %v358 = vadd.f32 %v342, %v350
        %v359 = vadd.f32 %v343, %v355
        %v360 = vadd.f32 %v344, %v355
        %v361 = vmax.f32 %v357, 0.0
        %v362 = vmax.f32 %v358, 0.0
        %v363 = vmax.f32 %v359, 0.0
        %v364 = vmax.f32 %v360, 0.0
        %365 = vst [vmem:[%s239] sm:$0xff] %v361
        %366 = vst [vmem:[%s239 + $0x8] sm:$0xff] %v362
        %367 = vst [vmem:[%s239 + $0x10] sm:$0xff] %v363
        %368 = vst [vmem:[%s239 + $0x18] sm:$0xff] %v364
        %s369 = sand.u32 %s112, 1
        %s370 = sand.u32 %s112, 1
        %s371 = smul.addr %s370, 32
        %s372 = scalar_lea.vmem [#allocation3], %s371
        // Predicated region
        $region75: #{_lambda_.8} parent=69 // pred_check
          %p373 = pneg %p122
        $region76: #{_lambda_.8} parent=69 // pred_check_branch
          %375 = sbr.rel (%p373) target = $region78
        $region77: #{_lambda_.8} parent=69 // pred_region
          %s376 = smul.u32 2, %s15
          %s377 = smul.addr %s376, 8
          %s378 = scalar_lea.vmem %s4, %s377
          // Predicated region
          $region79: #{_lambda_.8} parent=77 // pred_check
            _
          $region80: #{_lambda_.8} parent=77 // pred_check_branch
            %380 = sbr.rel (0) target = $region82
          $region81: #{_lambda_.8} parent=77 // pred_region
            // Predicated region
            $region83: #{_lambda_.8} parent=81 // pred_check
              _
            $region84: #{_lambda_.8} parent=81 // pred_check_branch
              %382 = sbr.rel (0) target = $region86
            $region85: #{_lambda_.8} parent=81 // pred_region
              loop: start=0, step=1, limit=1
              $region87: #{_lambda_.8} parent=85 // loop_pre_header
                _
              $region88: #{_lambda_.8} parent=85 // loop_header
                %s384 = sphi 0, %s388
                %p385 = scmp.ge.s32.totalorder %s384, 1
                %s389 = sphi %s372, %s372
                %s390 = sphi %s378, %s378
              $region89: #{_lambda_.8} parent=85 // loop_header_branch
                %387 = sbr.rel (%p385) target = $region93
              $region90: #{_lambda_.8} parent=85 // loop_body
                %v391 = vld [vmem:[%s389] sm:$0xff]
                %392 = vst [vmem:[%s390] sm:$0xff] %v391
                %v393 = vld [vmem:[%s389 + $0x8] sm:$0xff]
                %394 = vst [vmem:[%s390 + $0x8] sm:$0xff] %v393
                %v395 = vld [vmem:[%s389 + $0x10] sm:$0xff]
                %396 = vst [vmem:[%s390 + $0x20] sm:$0xff] %v395
                %v397 = vld [vmem:[%s389 + $0x18] sm:$0xff]
                %398 = vst [vmem:[%s390 + $0x28] sm:$0xff] %v397
              $region91: #{_lambda_.8} parent=85 // loop_footer
                %s388 = sadd.s32 1, %s384
              $region92: #{_lambda_.8} parent=85 // loop_footer_branch
                %383 = sbr.rel target = $region88
              $region93: #{_lambda_.8} parent=85 // loop_exit
                _
            $region86: #{_lambda_.8} parent=81 // pred_fallthru
              _
            // Predicated region
            $region94: #{_lambda_.8} parent=81 // pred_check
              _
            $region95: #{_lambda_.8} parent=81 // pred_check_branch
              %400 = sbr.rel target = $region97
            $region96: #{_lambda_.8} parent=81 // pred_region
              _
            $region97: #{_lambda_.8} parent=81 // pred_fallthru
              _
          $region82: #{_lambda_.8} parent=77 // pred_fallthru
            _
          %401 = vnop
        $region78: #{_lambda_.8} parent=69 // pred_fallthru
          _
      $region70: #{_lambda_.8} parent=5 // pred_fallthru
        _
      %p402 = scmp.le.s32.totalorder 2, %s10
      // Predicated region
      $region98: #{_lambda_.8} parent=5 // pred_check
        %p403 = pneg %p402
      $region99: #{_lambda_.8} parent=5 // pred_check_branch
        %405 = sbr.rel (%p403) target = $region101
      $region100: #{_lambda_.8} parent=5 // pred_region
        %s406 = ssub.s32 %s10, 2
        // Predicated region
        $region102: #{_lambda_.8} parent=100 // pred_check
          %p407 = pneg %p128
        $region103: #{_lambda_.8} parent=100 // pred_check_branch
          %409 = sbr.rel (%p407) target = $region105
        $region104: #{_lambda_.8} parent=100 // pred_region
          %s410 = sand.u32 %s113, 1
          %s411 = sand.u32 %s113, 1
          %s412 = smul.addr %s411, 32
          %s413 = scalar_lea.vmem [#allocation3], %s412
        $region105: #{_lambda_.8} parent=100 // pred_fallthru
          _
      $region101: #{_lambda_.8} parent=5 // pred_fallthru
        _
    $region6: #{_lambda_.8} parent=1 // loop_footer
      %s14 = sadd.s32 1, %s10
    $region7: #{_lambda_.8} parent=1 // loop_footer_branch
      %9 = sbr.rel target = $region3
    $region8: #{_lambda_.8} parent=1 // loop_exit
      _

// kernel: _lambda_.10
$region0: #{_lambda_.10}
  #allocation0 [shape = 'u32[]', space=smem, size = 0x4, offset = 0x4, fixed_abs, tag = 'smem constant byte address 0x4 - core index']
  #allocation1 [shape = 'u32[144,128]{1,0:T(1,128)}', space=vmem, size = 0x12000, scoped, tag = 'internal scratch']
  %s0 = inlined_call_operand.vmem [shape: bf16[16,144], index: 0, kind: input, shape index: {}]
  %s1 = inlined_call_operand.vmem [shape: bf16[144,512], index: 1, kind: input, shape index: {}]
  %s2 = inlined_call_operand.vmem [shape: f32[16,1], index: 2, kind: input, shape index: {}]
  %s3 = inlined_call_operand.vmem [shape: f32[16,1], index: 3, kind: input, shape index: {}]
  %s4 = inlined_call_operand.vmem [shape: f32[16,512], index: 4, kind: input, shape index: {}]
  %s5 = inlined_call_operand.vmem [shape: f32[16,512], index: 5, kind: output, shape index: {}]
  %s6 = sld [smem:[#allocation0]]
  $region133: #{_lambda_.10} parent=0
    _
  %s8 = ssub.s32 1, %s6
  %s9 = scalar_select 0, %s8, %s6
  $region1: #{_lambda_.10} parent=0
    #allocation2 [shape = 'u8[147456]{0}', space=vmem, size = 0x24000, scoped, tag = 'input window, operand 1']
    #allocation3 [shape = 'u8[32768]{0}', space=vmem, size = 0x8000, scoped, tag = 'input window, operand 4']
    #allocation4 [shape = 'u8[32768]{0}', space=vmem, size = 0x8000, scoped, tag = 'output window, operand 0']
    loop: start=0, step=1, limit=4
    $region2: #{_lambda_.10} parent=1 // loop_pre_header
      _
    $region3: #{_lambda_.10} parent=1 // loop_header
      %s11 = sphi 0, %s15
      %p12 = scmp.ge.s32.totalorder %s11, 4
      %s19 = sphi 0, %s19
      %s21 = sphi 0, %s19
      %s22 = sphi 0, %s21
      %s36 = sphi 0, %s22
      %s42 = sphi 0, %s44
      %s45 = sphi 0, %s42
      %s46 = sphi 0, %s45
      %s62 = sphi 0, %s46
      %s66 = sphi 0, %s66
      %s68 = sphi 0, %s66
      %s69 = sphi 0, %s68
      %s83 = sphi 0, %s69
      %s87 = sphi 0, %s87
      %s89 = sphi 0, %s87
      %s90 = sphi 0, %s89
      %s104 = sphi 0, %s90
      %s110 = sphi 0, %s112
      %s113 = sphi 0, %s110
      %s114 = sphi 0, %s113
      %s130 = sphi 0, %s114
      %s136 = sphi 0, %s138
      %s139 = sphi 0, %s136
      %s140 = sphi 0, %s139
      %s156 = sphi 0, %s140
    $region4: #{_lambda_.10} parent=1 // loop_header_branch
      %14 = sbr.rel (%p12) target = $region8
    $region5: #{_lambda_.10} parent=1 // loop_body
      %s16 = ssub.s32 %s11, 1
      %s17 = ssub.s32 %s11, 2
      %s18 = sadd.s32 %s11, 1
      %s20 = sadd.s32 %s19, 1
      %p23 = scmp.eq.s32.totalorder %s11, 1
      %p24 = scmp.ne.s32.totalorder %s19, %s21
      %p25 = scmp.eq.s32.totalorder %s11, 0
      %p26 = por %p24, %p25
      %p27 = scmp.ne.s32.totalorder %s19, %s21
      %p28 = scmp.eq.s32.totalorder %s16, 1
      %p29 = por %p27, %p28
      %p30 = scmp.ne.s32.totalorder %s21, %s22
      %p31 = scmp.eq.s32.totalorder %s16, 0
      %p32 = por %p30, %p31
      %p33 = scmp.ne.s32.totalorder %s21, %s22
      %p34 = scmp.eq.s32.totalorder %s17, 1
      %p35 = por %p33, %p34
      %p37 = scmp.ne.s32.totalorder %s22, %s36
      %p38 = scmp.eq.s32.totalorder %s17, 0
      %p39 = por %p37, %p38
      %s40 = ssub.s32 %s11, %s18
      %p41 = scmp.eq.s32.totalorder %s40, 0
      %s43 = sadd.s32 %s42, 1
      %s44 = scalar_select %p41, %s42, %s43
      %p47 = pneg %p41
      %p48 = scmp.eq.s32.totalorder %s11, 1
      %p49 = por %p47, %p48
      %p50 = scmp.ne.s32.totalorder %s42, %s45
      %p51 = scmp.eq.s32.totalorder %s11, 0
      %p52 = por %p50, %p51
      %p53 = scmp.ne.s32.totalorder %s42, %s45
      %p54 = scmp.eq.s32.totalorder %s16, 1
      %p55 = por %p53, %p54
      %p56 = scmp.ne.s32.totalorder %s45, %s46
      %p57 = scmp.eq.s32.totalorder %s16, 0
      %p58 = por %p56, %p57
      %p59 = scmp.ne.s32.totalorder %s45, %s46
      %p60 = scmp.eq.s32.totalorder %s17, 1
      %p61 = por %p59, %p60
      %p63 = scmp.ne.s32.totalorder %s46, %s62
      %p64 = scmp.eq.s32.totalorder %s17, 0
      %p65 = por %p63, %p64
      %s67 = sadd.s32 %s66, 1
      %p70 = scmp.eq.s32.totalorder %s11, 1
      %p71 = scmp.ne.s32.totalorder %s66, %s68
      %p72 = scmp.eq.s32.totalorder %s11, 0
      %p73 = por %p71, %p72
      %p74 = scmp.ne.s32.totalorder %s66, %s68
      %p75 = scmp.eq.s32.totalorder %s16, 1
      %p76 = por %p74, %p75
      %p77 = scmp.ne.s32.totalorder %s68, %s69
      %p78 = scmp.eq.s32.totalorder %s16, 0
      %p79 = por %p77, %p78
      %p80 = scmp.ne.s32.totalorder %s68, %s69
      %p81 = scmp.eq.s32.totalorder %s17, 1
      %p82 = por %p80, %p81
      %p84 = scmp.ne.s32.totalorder %s69, %s83
      %p85 = scmp.eq.s32.totalorder %s17, 0
      %p86 = por %p84, %p85
      %s88 = sadd.s32 %s87, 1
      %p91 = scmp.eq.s32.totalorder %s11, 1
      %p92 = scmp.ne.s32.totalorder %s87, %s89
      %p93 = scmp.eq.s32.totalorder %s11, 0
      %p94 = por %p92, %p93
      %p95 = scmp.ne.s32.totalorder %s87, %s89
      %p96 = scmp.eq.s32.totalorder %s16, 1
      %p97 = por %p95, %p96
      %p98 = scmp.ne.s32.totalorder %s89, %s90
      %p99 = scmp.eq.s32.totalorder %s16, 0
      %p100 = por %p98, %p99
      %p101 = scmp.ne.s32.totalorder %s89, %s90
      %p102 = scmp.eq.s32.totalorder %s17, 1
      %p103 = por %p101, %p102
      %p105 = scmp.ne.s32.totalorder %s90, %s104
      %p106 = scmp.eq.s32.totalorder %s17, 0
      %p107 = por %p105, %p106
      %s108 = ssub.s32 %s11, %s18
      %p109 = scmp.eq.s32.totalorder %s108, 0
      %s111 = sadd.s32 %s110, 1
      %s112 = scalar_select %p109, %s110, %s111
      %p115 = pneg %p109
      %p116 = scmp.eq.s32.totalorder %s11, 1
      %p117 = por %p115, %p116
      %p118 = scmp.ne.s32.totalorder %s110, %s113
      %p119 = scmp.eq.s32.totalorder %s11, 0
      %p120 = por %p118, %p119
      %p121 = scmp.ne.s32.totalorder %s110, %s113
      %p122 = scmp.eq.s32.totalorder %s16, 1
      %p123 = por %p121, %p122
      %p124 = scmp.ne.s32.totalorder %s113, %s114
      %p125 = scmp.eq.s32.totalorder %s16, 0
      %p126 = por %p124, %p125
      %p127 = scmp.ne.s32.totalorder %s113, %s114
      %p128 = scmp.eq.s32.totalorder %s17, 1
      %p129 = por %p127, %p128
      %p131 = scmp.ne.s32.totalorder %s114, %s130
      %p132 = scmp.eq.s32.totalorder %s17, 0
      %p133 = por %p131, %p132
      %s134 = ssub.s32 %s11, %s18
      %p135 = scmp.eq.s32.totalorder %s134, 0
      %s137 = sadd.s32 %s136, 1
      %s138 = scalar_select %p135, %s136, %s137
      %p141 = pneg %p135
      %p142 = scmp.eq.s32.totalorder %s11, 1
      %p143 = por %p141, %p142
      %p144 = scmp.ne.s32.totalorder %s136, %s139
      %p145 = scmp.eq.s32.totalorder %s11, 0
      %p146 = por %p144, %p145
      %p147 = scmp.ne.s32.totalorder %s136, %s139
      %p148 = scmp.eq.s32.totalorder %s16, 1
      %p149 = por %p147, %p148
      %p150 = scmp.ne.s32.totalorder %s139, %s140
      %p151 = scmp.eq.s32.totalorder %s16, 0
      %p152 = por %p150, %p151
      %p153 = scmp.ne.s32.totalorder %s139, %s140
      %p154 = scmp.eq.s32.totalorder %s17, 1
      %p155 = por %p153, %p154
      %p157 = scmp.ne.s32.totalorder %s140, %s156
      %p158 = scmp.eq.s32.totalorder %s17, 0
      %p159 = por %p157, %p158
      %p160 = scmp.le.s32.totalorder 1, %s11
      %p161 = scmp.lt.s32.totalorder %s11, 3
      %p162 = pnand %p160, %p161
      %p163 = pneg %p162
      // Predicated region
      $region9: #{_lambda_.10} parent=5 // pred_check
        _
      $region10: #{_lambda_.10} parent=5 // pred_check_branch
        %165 = sbr.rel (%p162) target = $region12
      $region11: #{_lambda_.10} parent=5 // pred_region
        %s166 = ssub.s32 %s11, 1
        // Predicated region
        $region13: #{_lambda_.10} parent=11 // pred_check
          %p167 = pneg %p32
        $region14: #{_lambda_.10} parent=11 // pred_check_branch
          %169 = sbr.rel (%p167) target = $region16
        $region15: #{_lambda_.10} parent=11 // pred_region
          _
        $region16: #{_lambda_.10} parent=11 // pred_fallthru
          _
        // Predicated region
        $region17: #{_lambda_.10} parent=11 // pred_check
          %p170 = pneg %p79
        $region18: #{_lambda_.10} parent=11 // pred_check_branch
          %172 = sbr.rel (%p170) target = $region20
        $region19: #{_lambda_.10} parent=11 // pred_region
          _
        $region20: #{_lambda_.10} parent=11 // pred_fallthru
          _
        // Predicated region
        $region21: #{_lambda_.10} parent=11 // pred_check
          %p173 = pneg %p100
        $region22: #{_lambda_.10} parent=11 // pred_check_branch
          %175 = sbr.rel (%p173) target = $region24
        $region23: #{_lambda_.10} parent=11 // pred_region
          _
        $region24: #{_lambda_.10} parent=11 // pred_fallthru
          _
      $region12: #{_lambda_.10} parent=5 // pred_fallthru
        _
      %p176 = scmp.lt.s32.totalorder %s11, 2
      // Predicated region
      $region25: #{_lambda_.10} parent=5 // pred_check
        %p177 = pneg %p176
      $region26: #{_lambda_.10} parent=5 // pred_check_branch
        %179 = sbr.rel (%p177) target = $region28
      $region27: #{_lambda_.10} parent=5 // pred_region
        // Predicated region
        $region29: #{_lambda_.10} parent=27 // pred_check
          %p180 = pneg %p52
        $region30: #{_lambda_.10} parent=27 // pred_check_branch
          %182 = sbr.rel (%p180) target = $region32
        $region31: #{_lambda_.10} parent=27 // pred_region
          %s183 = sand.u32 %s42, 1
          %s184 = sand.u32 %s42, 1
          %s185 = smul.addr %s184, 144
          %s186 = scalar_lea.vmem [#allocation2], %s185
          %s187 = smul.u32 2, %s11
          %s188 = smul.addr %s187, 4
          %s189 = scalar_lea.vmem %s1, %s188
          // Predicated region
          $region33: #{_lambda_.10} parent=31 // pred_check
            _
          $region34: #{_lambda_.10} parent=31 // pred_check_branch
            %191 = sbr.rel (0) target = $region36
          $region35: #{_lambda_.10} parent=31 // pred_region
            // Predicated region
            $region37: #{_lambda_.10} parent=35 // pred_check
              _
            $region38: #{_lambda_.10} parent=35 // pred_check_branch
              %193 = sbr.rel (0) target = $region40
            $region39: #{_lambda_.10} parent=35 // pred_region
              // Predicated region
              $region52: #{_lambda_.10} parent=39 // pred_check
                _
              $region53: #{_lambda_.10} parent=39 // pred_check_branch
                %243 = sbr.rel (0) target = $region55
              $region54: #{_lambda_.10} parent=39 // pred_region
                loop: start=0, step=1, limit=1
                $region56: #{_lambda_.10} parent=54 // loop_pre_header
                  _
                $region57: #{_lambda_.10} parent=54 // loop_header
                  %s245 = sphi 0, %s249
                  %p246 = scmp.ge.s32.totalorder %s245, 1
                  %s250 = sphi %s189, %s189
                  %s251 = sphi %s186, %s186
                $region58: #{_lambda_.10} parent=54 // loop_header_branch
                  %248 = sbr.rel (%p246) target = $region62
                $region59: #{_lambda_.10} parent=54 // loop_body
                  %v252 = vld [vmem:[%s250] sm:$0xff]
                  %253 = vst [vmem:[%s251] sm:$0xff] %v252
                  %v254 = vld [vmem:[%s250 + $0x10] sm:$0xff]
                  %255 = vst [vmem:[%s251 + $0x8] sm:$0xff] %v254
                  %v256 = vld [vmem:[%s250 + $0x20] sm:$0xff]
                  %257 = vst [vmem:[%s251 + $0x10] sm:$0xff] %v256
                  %v258 = vld [vmem:[%s250 + $0x30] sm:$0xff]
                  %259 = vst [vmem:[%s251 + $0x18] sm:$0xff] %v258
                  %v260 = vld [vmem:[%s250 + $0x40] sm:$0xff]
                  %261 = vst [vmem:[%s251 + $0x20] sm:$0xff] %v260
                  %v262 = vld [vmem:[%s250 + $0x50] sm:$0xff]
                  %263 = vst [vmem:[%s251 + $0x28] sm:$0xff] %v262
                  %v264 = vld [vmem:[%s250 + $0x60] sm:$0xff]
                  %265 = vst [vmem:[%s251 + $0x30] sm:$0xff] %v264
                  %v266 = vld [vmem:[%s250 + $0x70] sm:$0xff]
                  %267 = vst [vmem:[%s251 + $0x38] sm:$0xff] %v266
                  %v268 = vld [vmem:[%s250 + $0x80] sm:$0xff]
                  %269 = vst [vmem:[%s251 + $0x40] sm:$0xff] %v268
                  %v270 = vld [vmem:[%s250 + $0x90] sm:$0xff]
                  %271 = vst [vmem:[%s251 + $0x48] sm:$0xff] %v270
                  %v272 = vld [vmem:[%s250 + $0xa0] sm:$0xff]
                  %273 = vst [vmem:[%s251 + $0x50] sm:$0xff] %v272
                  %v274 = vld [vmem:[%s250 + $0xb0] sm:$0xff]
                  %275 = vst [vmem:[%s251 + $0x58] sm:$0xff] %v274
                  %v276 = vld [vmem:[%s250 + $0xc0] sm:$0xff]
                  %277 = vst [vmem:[%s251 + $0x60] sm:$0xff] %v276
                  %v278 = vld [vmem:[%s250 + $0xd0] sm:$0xff]
                  %279 = vst [vmem:[%s251 + $0x68] sm:$0xff] %v278
                  %v280 = vld [vmem:[%s250 + $0xe0] sm:$0xff]
                  %281 = vst [vmem:[%s251 + $0x70] sm:$0xff] %v280
                  %v282 = vld [vmem:[%s250 + $0xf0] sm:$0xff]
                  %283 = vst [vmem:[%s251 + $0x78] sm:$0xff] %v282
                  %v284 = vld [vmem:[%s250 + $0x100] sm:$0xff]
                  %285 = vst [vmem:[%s251 + $0x80] sm:$0xff] %v284
                  %v286 = vld [vmem:[%s250 + $0x110] sm:$0xff]
                  %287 = vst [vmem:[%s251 + $0x88] sm:$0xff] %v286
                $region60: #{_lambda_.10} parent=54 // loop_footer
                  %s249 = sadd.s32 1, %s245
                $region61: #{_lambda_.10} parent=54 // loop_footer_branch
                  %244 = sbr.rel target = $region57
                $region62: #{_lambda_.10} parent=54 // loop_exit
                  _
              $region55: #{_lambda_.10} parent=39 // pred_fallthru
                _
              // Predicated region
              $region63: #{_lambda_.10} parent=39 // pred_check
                _
              $region64: #{_lambda_.10} parent=39 // pred_check_branch
                %289 = sbr.rel target = $region66
              $region65: #{_lambda_.10} parent=39 // pred_region
                _
              $region66: #{_lambda_.10} parent=39 // pred_fallthru
                _
            $region40: #{_lambda_.10} parent=35 // pred_fallthru
              _
            // Predicated region
            $region41: #{_lambda_.10} parent=35 // pred_check
              _
            $region42: #{_lambda_.10} parent=35 // pred_check_branch
              %195 = sbr.rel target = $region44
            $region43: #{_lambda_.10} parent=35 // pred_region
              %s197 = ssub.s32 256, 1
              loop: start=0, step=1, limit=1
              $region45: #{_lambda_.10} parent=43 // loop_pre_header
                _
              $region46: #{_lambda_.10} parent=43 // loop_header
                %s199 = sphi 0, %s203
                %p200 = scmp.ge.s32.totalorder %s199, 1
                %s204 = sphi %s189, %s189
                %s205 = sphi %s186, %s186
              $region47: #{_lambda_.10} parent=43 // loop_header_branch
                %202 = sbr.rel (%p200) target = $region51
              $region48: #{_lambda_.10} parent=43 // loop_body
                %v206 = vld [vmem:[%s204] sm:%s197]
                %207 = vst [vmem:[%s205] sm:%s197] %v206
                %v208 = vld [vmem:[%s204 + $0x10] sm:%s197]
                %209 = vst [vmem:[%s205 + $0x8] sm:%s197] %v208
                %v210 = vld [vmem:[%s204 + $0x20] sm:%s197]
                %211 = vst [vmem:[%s205 + $0x10] sm:%s197] %v210
                %v212 = vld [vmem:[%s204 + $0x30] sm:%s197]
                %213 = vst [vmem:[%s205 + $0x18] sm:%s197] %v212
                %v214 = vld [vmem:[%s204 + $0x40] sm:%s197]
                %215 = vst [vmem:[%s205 + $0x20] sm:%s197] %v214
                %v216 = vld [vmem:[%s204 + $0x50] sm:%s197]
                %217 = vst [vmem:[%s205 + $0x28] sm:%s197] %v216
                %v218 = vld [vmem:[%s204 + $0x60] sm:%s197]
                %219 = vst [vmem:[%s205 + $0x30] sm:%s197] %v218
                %v220 = vld [vmem:[%s204 + $0x70] sm:%s197]
                %221 = vst [vmem:[%s205 + $0x38] sm:%s197] %v220
                %v222 = vld [vmem:[%s204 + $0x80] sm:%s197]
                %223 = vst [vmem:[%s205 + $0x40] sm:%s197] %v222
                %v224 = vld [vmem:[%s204 + $0x90] sm:%s197]
                %225 = vst [vmem:[%s205 + $0x48] sm:%s197] %v224
                %v226 = vld [vmem:[%s204 + $0xa0] sm:%s197]
                %227 = vst [vmem:[%s205 + $0x50] sm:%s197] %v226
                %v228 = vld [vmem:[%s204 + $0xb0] sm:%s197]
                %229 = vst [vmem:[%s205 + $0x58] sm:%s197] %v228
                %v230 = vld [vmem:[%s204 + $0xc0] sm:%s197]
                %231 = vst [vmem:[%s205 + $0x60] sm:%s197] %v230
                %v232 = vld [vmem:[%s204 + $0xd0] sm:%s197]
                %233 = vst [vmem:[%s205 + $0x68] sm:%s197] %v232
                %v234 = vld [vmem:[%s204 + $0xe0] sm:%s197]
                %235 = vst [vmem:[%s205 + $0x70] sm:%s197] %v234
                %v236 = vld [vmem:[%s204 + $0xf0] sm:%s197]
                %237 = vst [vmem:[%s205 + $0x78] sm:%s197] %v236
                %v238 = vld [vmem:[%s204 + $0x100] sm:%s197]
                %239 = vst [vmem:[%s205 + $0x80] sm:%s197] %v238
                %v240 = vld [vmem:[%s204 + $0x110] sm:%s197]
                %241 = vst [vmem:[%s205 + $0x88] sm:%s197] %v240
              $region49: #{_lambda_.10} parent=43 // loop_footer
                %s203 = sadd.s32 1, %s199
              $region50: #{_lambda_.10} parent=43 // loop_footer_branch
                %198 = sbr.rel target = $region46
              $region51: #{_lambda_.10} parent=43 // loop_exit
                _
            $region44: #{_lambda_.10} parent=35 // pred_fallthru
              _
          $region36: #{_lambda_.10} parent=31 // pred_fallthru
            _
          %290 = vnop
        $region32: #{_lambda_.10} parent=27 // pred_fallthru
          _
        // Predicated region
        $region67: #{_lambda_.10} parent=27 // pred_check
          %p291 = pneg %p120
        $region68: #{_lambda_.10} parent=27 // pred_check_branch
          %293 = sbr.rel (%p291) target = $region70
        $region69: #{_lambda_.10} parent=27 // pred_region
          %s294 = sand.u32 %s110, 1
          %s295 = sand.u32 %s110, 1
          %s296 = smul.addr %s295, 32
          %s297 = scalar_lea.vmem [#allocation3], %s296
          %s298 = smul.u32 2, %s11
          %s299 = smul.addr %s298, 8
          %s300 = scalar_lea.vmem %s4, %s299
          // Predicated region
          $region71: #{_lambda_.10} parent=69 // pred_check
            _
          $region72: #{_lambda_.10} parent=69 // pred_check_branch
            %302 = sbr.rel (0) target = $region74
          $region73: #{_lambda_.10} parent=69 // pred_region
            // Predicated region
            $region75: #{_lambda_.10} parent=73 // pred_check
              _
            $region76: #{_lambda_.10} parent=73 // pred_check_branch
              %304 = sbr.rel (0) target = $region78
            $region77: #{_lambda_.10} parent=73 // pred_region
              loop: start=0, step=1, limit=1
              $region79: #{_lambda_.10} parent=77 // loop_pre_header
                _
              $region80: #{_lambda_.10} parent=77 // loop_header
                %s306 = sphi 0, %s310
                %p307 = scmp.ge.s32.totalorder %s306, 1
                %s311 = sphi %s300, %s300
                %s312 = sphi %s297, %s297
              $region81: #{_lambda_.10} parent=77 // loop_header_branch
                %309 = sbr.rel (%p307) target = $region85
              $region82: #{_lambda_.10} parent=77 // loop_body
                %v313 = vld [vmem:[%s311] sm:$0xff]
                %314 = vst [vmem:[%s312] sm:$0xff] %v313
                %v315 = vld [vmem:[%s311 + $0x8] sm:$0xff]
                %316 = vst [vmem:[%s312 + $0x8] sm:$0xff] %v315
                %v317 = vld [vmem:[%s311 + $0x20] sm:$0xff]
                %318 = vst [vmem:[%s312 + $0x10] sm:$0xff] %v317
                %v319 = vld [vmem:[%s311 + $0x28] sm:$0xff]
                %320 = vst [vmem:[%s312 + $0x18] sm:$0xff] %v319
              $region83: #{_lambda_.10} parent=77 // loop_footer
                %s310 = sadd.s32 1, %s306
              $region84: #{_lambda_.10} parent=77 // loop_footer_branch
                %305 = sbr.rel target = $region80
              $region85: #{_lambda_.10} parent=77 // loop_exit
                _
            $region78: #{_lambda_.10} parent=73 // pred_fallthru
              _
            // Predicated region
            $region86: #{_lambda_.10} parent=73 // pred_check
              _
            $region87: #{_lambda_.10} parent=73 // pred_check_branch
              %322 = sbr.rel target = $region89
            $region88: #{_lambda_.10} parent=73 // pred_region
              _
            $region89: #{_lambda_.10} parent=73 // pred_fallthru
              _
          $region74: #{_lambda_.10} parent=69 // pred_fallthru
            _
          %323 = vnop
        $region70: #{_lambda_.10} parent=27 // pred_fallthru
          _
      $region28: #{_lambda_.10} parent=5 // pred_fallthru
        _
      %p324 = scmp.le.s32.totalorder 1, %s11
      %p325 = scmp.lt.s32.totalorder %s11, 3
      %p326 = pnand %p324, %p325
      %p327 = pneg %p326
      // Predicated region
      $region90: #{_lambda_.10} parent=5 // pred_check
        _
      $region91: #{_lambda_.10} parent=5 // pred_check_branch
        %329 = sbr.rel (%p326) target = $region93
      $region92: #{_lambda_.10} parent=5 // pred_region
        %s330 = ssub.s32 %s11, 1
        %s331 = sand.u32 %s45, 1
        %s332 = sand.u32 %s45, 1
        %s333 = smul.addr %s332, 144
        %s334 = scalar_lea.vmem [#allocation2], %s333
        // Predicated region
        $region94: #{_lambda_.10} parent=92 // pred_check
          %p335 = pneg %p58
        $region95: #{_lambda_.10} parent=92 // pred_check_branch
          %337 = sbr.rel (%p335) target = $region97
        $region96: #{_lambda_.10} parent=92 // pred_region
          _
        $region97: #{_lambda_.10} parent=92 // pred_fallthru
          _
        %s338 = sand.u32 %s113, 1
        %s339 = sand.u32 %s113, 1
        %s340 = smul.addr %s339, 32
        %s341 = scalar_lea.vmem [#allocation3], %s340
        // Predicated region
        $region98: #{_lambda_.10} parent=92 // pred_check
          %p342 = pneg %p126
        $region99: #{_lambda_.10} parent=92 // pred_check_branch
          %344 = sbr.rel (%p342) target = $region101
        $region100: #{_lambda_.10} parent=92 // pred_region
          _
        $region101: #{_lambda_.10} parent=92 // pred_fallthru
          _
        %p345 = pneg %p32
        %p346 = pneg %p29
        %s347 = sand.u32 %s45, 1
        %s348 = sand.u32 %s45, 1
        %s349 = smul.addr %s348, 144
        %s350 = scalar_lea.vmem [#allocation2], %s349
        %p351 = pneg %p58
        %p352 = pneg %p55
        %p353 = pneg %p79
        %p354 = pneg %p76
        %p355 = pneg %p100
        %p356 = pneg %p97
        %s357 = sand.u32 %s113, 1
        %s358 = sand.u32 %s113, 1
        %s359 = smul.addr %s358, 32
        %s360 = scalar_lea.vmem [#allocation3], %s359
        %p361 = pneg %p126
        %p362 = pneg %p123
        %p363 = pneg %p152
        %p364 = pneg %p149
        %s365 = sand.u32 %s139, 1
        %s366 = sand.u32 %s139, 1
        %s367 = smul.addr %s366, 32
        %s368 = scalar_lea.vmem [#allocation4], %s367
        %s369 = smul.u32 2, %s16
        %s370 = smul.u32 2, %s16
        %s371 = smul.u32 2, %s16
        %v373 = vld [vmem:[%s0] sm:$0xff]
        %v374 = vld [vmem:[%s0 + $0x8] sm:$0xff]
        %v375 = vld [vmem:[%s334] sm:$0xff]
        %v376 = vld [vmem:[%s334 + $0x8] sm:$0xff]
        %v377 = vld [vmem:[%s334 + $0x10] sm:$0xff]
        %v378 = vld [vmem:[%s334 + $0x18] sm:$0xff]
        %v379 = vld [vmem:[%s334 + $0x20] sm:$0xff]
        %v380 = vld [vmem:[%s334 + $0x28] sm:$0xff]
        %v381 = vld [vmem:[%s334 + $0x30] sm:$0xff]
        %v382 = vld [vmem:[%s334 + $0x38] sm:$0xff]
        %v383 = vld [vmem:[%s334 + $0x40] sm:$0xff]
        %v384 = vld [vmem:[%s334 + $0x48] sm:$0xff]
        %v385 = vld [vmem:[%s334 + $0x50] sm:$0xff]
        %v386 = vld [vmem:[%s334 + $0x58] sm:$0xff]
        %v387 = vld [vmem:[%s334 + $0x60] sm:$0xff]
        %v388 = vld [vmem:[%s334 + $0x68] sm:$0xff]
        %v389 = vld [vmem:[%s334 + $0x70] sm:$0xff]
        %v390 = vld [vmem:[%s334 + $0x78] sm:$0xff]
        %v391 = vld [vmem:[%s334 + $0x80] sm:$0xff]
        %v392 = vld [vmem:[%s334 + $0x88] sm:$0xff]
        %v395 = vunpack.c.l.b16 %v373
        %v396 = vunpack.c.h.b16 %v373
        %v397 = vunpack.c.l.b16 %v374
        %v398 = vunpack.c.h.b16 %v374
        %v399 = vpack.c.b16 %v397, %v395
        %v400 = vpack.c.b16 %v398, %v396
        %v420 = vunpack.c.l.b16 %v375
        %v421 = vunpack.c.h.b16 %v375
        %v422 = vunpack.c.l.b16 %v376
        %v423 = vunpack.c.h.b16 %v376
        %v424 = vunpack.c.l.b16 %v377
        %v425 = vunpack.c.h.b16 %v377
        %v426 = vunpack.c.l.b16 %v378
        %v427 = vunpack.c.h.b16 %v378
        %v428 = vunpack.c.l.b16 %v379
        %v429 = vunpack.c.h.b16 %v379
        %v430 = vunpack.c.l.b16 %v380
        %v431 = vunpack.c.h.b16 %v380
        %v432 = vunpack.c.l.b16 %v381
        %v433 = vunpack.c.h.b16 %v381
        %v434 = vunpack.c.l.b16 %v382
        %v435 = vunpack.c.h.b16 %v382
        %v436 = vunpack.c.l.b16 %v383
        %v437 = vunpack.c.h.b16 %v383
        %v438 = vunpack.c.l.b16 %v384
        %v439 = vunpack.c.h.b16 %v384
        %v440 = vunpack.c.l.b16 %v385
        %v441 = vunpack.c.h.b16 %v385
        %v442 = vunpack.c.l.b16 %v386
        %v443 = vunpack.c.h.b16 %v386
        %v444 = vunpack.c.l.b16 %v387
        %v445 = vunpack.c.h.b16 %v387
        %v446 = vunpack.c.l.b16 %v388
        %v447 = vunpack.c.h.b16 %v388
        %v448 = vunpack.c.l.b16 %v389
        %v449 = vunpack.c.h.b16 %v389
        %v450 = vunpack.c.l.b16 %v390
        %v451 = vunpack.c.h.b16 %v390
        %v452 = vunpack.c.l.b16 %v391
        %v453 = vunpack.c.h.b16 %v391
        %v454 = vunpack.c.l.b16 %v392
        %v455 = vunpack.c.h.b16 %v392
        %v456 = vpack.c.b16 %v422, %v420
        %v457 = vpack.c.b16 %v423, %v421
        %v458 = vpack.c.b16 %v426, %v424
        %v459 = vpack.c.b16 %v427, %v425
        %v460 = vpack.c.b16 %v430, %v428
        %v461 = vpack.c.b16 %v431, %v429
        %v462 = vpack.c.b16 %v434, %v432
        %v463 = vpack.c.b16 %v435, %v433
        %v464 = vpack.c.b16 %v438, %v436
        %v465 = vpack.c.b16 %v439, %v437
        %v466 = vpack.c.b16 %v442, %v440
        %v467 = vpack.c.b16 %v443, %v441
        %v468 = vpack.c.b16 %v446, %v444
        %v469 = vpack.c.b16 %v447, %v445
        %v470 = vpack.c.b16 %v450, %v448
        %v471 = vpack.c.b16 %v451, %v449
        %v472 = vpack.c.b16 %v454, %v452
        %v473 = vpack.c.b16 %v455, %v453
        %vm492 = vcmask 130048
        %v494 = vsel %vm492, %v400, 0
        %496 = vmatprep.subr.bf16.mxu0 %v471
        %497 = vmatpush1.bf16.msra.mxu0 %v470
        %498 = vmatprep.subr.bf16.mxu0 %v469
        %499 = vmatpush1.bf16.msra.mxu0 %v468
        %500 = vmatprep.subr.bf16.mxu0 %v467
        %501 = vmatpush1.bf16.msra.mxu0 %v466
        %502 = vmatprep.subr.bf16.mxu0 %v465
        %503 = vmatpush1.bf16.msra.mxu0 %v464
        %504 = vmatprep.subr.bf16.mxu0 %v463
        %505 = vmatpush1.bf16.msra.mxu0 %v462
        %506 = vmatprep.subr.bf16.mxu0 %v461
        %507 = vmatpush1.bf16.msra.mxu0 %v460
        %508 = vmatprep.subr.bf16.mxu0 %v459
        %509 = vmatpush1.bf16.msra.mxu0 %v458
        %510 = vmatprep.subr.bf16.mxu0 %v457
        %511 = vmatpush1.bf16.msra.mxu0 %v456
        %512 = vmatprep.subr.bf16.mxu0 0
        %513 = vmatpush2.bf16.msra.mxu0 0
        %514 = vmatprep.subr.bf16.mxu0 0
        %515 = vmatpush2.bf16.msra.mxu0 0
        %516 = vmatprep.subr.bf16.mxu0 0
        %517 = vmatpush2.bf16.msra.mxu0 0
        %518 = vmatprep.subr.bf16.mxu0 0
        %519 = vmatpush2.bf16.msra.mxu0 0
        %520 = vmatprep.subr.bf16.mxu0 0
        %521 = vmatpush2.bf16.msra.mxu0 0
        %522 = vmatprep.subr.bf16.mxu0 0
        %523 = vmatpush2.bf16.msra.mxu0 0
        %524 = vmatprep.subr.bf16.mxu0 0
        %525 = vmatpush2.bf16.msra.mxu0 0
        %526 = vmatprep.subr.bf16.mxu0 %v473
        %527 = vmatpush2.bf16.msra.mxu0 %v472
        %528 = vmatprep.mubr.bf16.mxu0 %v494
        %529 = vmatmul.mubr.bf16.gmra.mxu0 %v399
        %v530 = vpop.f32.mrf.mxu0
        %v531 = vadd.f32 0.0, %v530
        %v532 = vpop.f32.mrf.mxu0
        %v533 = vadd.f32 0.0, %v532
        %v534 = vpop.f32.mrf.mxu0
        %v535 = vadd.f32 0.0, %v534
        %v536 = vpop.f32.mrf.mxu0
        %v537 = vadd.f32 0.0, %v536
        %538 = vdwg.mxu0
        %v539 = vld [vmem:[%s2] sm:$0xff]
        %v540 = vld [vmem:[%s2 + $0x8] sm:$0xff]
        %542 = vset.pattern.permute.xlu0 0
        %543 = vperm.xlu0 %542, %v539
        %v544 = vpop.permute.xlu0 %543
        %547 = vset.pattern.permute.xlu0 0
        %548 = vperm.xlu0 %547, %v540
        %v549 = vpop.permute.xlu0 %548
        %v551 = vmul.f32 %v531, %v544
        %v552 = vmul.f32 %v533, %v544
        %v553 = vmul.f32 %v535, %v549
        %v554 = vmul.f32 %v537, %v549
        %v555 = vld [vmem:[%s3] sm:$0xff]
        %v556 = vld [vmem:[%s3 + $0x8] sm:$0xff]
        %558 = vset.pattern.permute.xlu0 0
        %559 = vperm.xlu0 %558, %v555
        %v560 = vpop.permute.xlu0 %559
        %563 = vset.pattern.permute.xlu0 0
        %564 = vperm.xlu0 %563, %v556
        %v565 = vpop.permute.xlu0 %564
        %v567 = vadd.f32 %v551, %v560
        %v568 = vadd.f32 %v552, %v560
        %v569 = vadd.f32 %v553, %v565
        %v570 = vadd.f32 %v554, %v565
        %v571 = vld [vmem:[%s341] sm:$0xff]
        %v572 = vld [vmem:[%s341 + $0x8] sm:$0xff]
        %v573 = vld [vmem:[%s341 + $0x10] sm:$0xff]
        %v574 = vld [vmem:[%s341 + $0x18] sm:$0xff]
        %v575 = vadd.f32 %v567, %v571
        %v576 = vadd.f32 %v568, %v572
        %v577 = vadd.f32 %v569, %v573
        %v578 = vadd.f32 %v570, %v574
        %v579 = vmax.f32 %v575, 0.0
        %v580 = vmax.f32 %v576, 0.0
        %v581 = vmax.f32 %v577, 0.0
        %v582 = vmax.f32 %v578, 0.0
        %583 = vst [vmem:[%s368] sm:$0xff] %v579
        %584 = vst [vmem:[%s368 + $0x8] sm:$0xff] %v580
        %585 = vst [vmem:[%s368 + $0x10] sm:$0xff] %v581
        %586 = vst [vmem:[%s368 + $0x18] sm:$0xff] %v582
        %s587 = sand.u32 %s139, 1
        %s588 = sand.u32 %s139, 1
        %s589 = smul.addr %s588, 32
        %s590 = scalar_lea.vmem [#allocation4], %s589
        // Predicated region
        $region102: #{_lambda_.10} parent=92 // pred_check
          %p591 = pneg %p149
        $region103: #{_lambda_.10} parent=92 // pred_check_branch
          %593 = sbr.rel (%p591) target = $region105
        $region104: #{_lambda_.10} parent=92 // pred_region
          %s594 = smul.u32 2, %s16
          %s595 = smul.addr %s594, 8
          %s596 = scalar_lea.vmem %s5, %s595
          // Predicated region
          $region106: #{_lambda_.10} parent=104 // pred_check
            _
          $region107: #{_lambda_.10} parent=104 // pred_check_branch
            %598 = sbr.rel (0) target = $region109
          $region108: #{_lambda_.10} parent=104 // pred_region
            // Predicated region
            $region110: #{_lambda_.10} parent=108 // pred_check
              _
            $region111: #{_lambda_.10} parent=108 // pred_check_branch
              %600 = sbr.rel (0) target = $region113
            $region112: #{_lambda_.10} parent=108 // pred_region
              loop: start=0, step=1, limit=1
              $region114: #{_lambda_.10} parent=112 // loop_pre_header
                _
              $region115: #{_lambda_.10} parent=112 // loop_header
                %s602 = sphi 0, %s606
                %p603 = scmp.ge.s32.totalorder %s602, 1
                %s607 = sphi %s590, %s590
                %s608 = sphi %s596, %s596
              $region116: #{_lambda_.10} parent=112 // loop_header_branch
                %605 = sbr.rel (%p603) target = $region120
              $region117: #{_lambda_.10} parent=112 // loop_body
                %v609 = vld [vmem:[%s607] sm:$0xff]
                %610 = vst [vmem:[%s608] sm:$0xff] %v609
                %v611 = vld [vmem:[%s607 + $0x8] sm:$0xff]
                %612 = vst [vmem:[%s608 + $0x8] sm:$0xff] %v611
                %v613 = vld [vmem:[%s607 + $0x10] sm:$0xff]
                %614 = vst [vmem:[%s608 + $0x20] sm:$0xff] %v613
                %v615 = vld [vmem:[%s607 + $0x18] sm:$0xff]
                %616 = vst [vmem:[%s608 + $0x28] sm:$0xff] %v615
              $region118: #{_lambda_.10} parent=112 // loop_footer
                %s606 = sadd.s32 1, %s602
              $region119: #{_lambda_.10} parent=112 // loop_footer_branch
                %601 = sbr.rel target = $region115
              $region120: #{_lambda_.10} parent=112 // loop_exit
                _
            $region113: #{_lambda_.10} parent=108 // pred_fallthru
              _
            // Predicated region
            $region121: #{_lambda_.10} parent=108 // pred_check
              _
            $region122: #{_lambda_.10} parent=108 // pred_check_branch
              %618 = sbr.rel target = $region124
            $region123: #{_lambda_.10} parent=108 // pred_region
              _
            $region124: #{_lambda_.10} parent=108 // pred_fallthru
              _
          $region109: #{_lambda_.10} parent=104 // pred_fallthru
            _
          %619 = vnop
        $region105: #{_lambda_.10} parent=92 // pred_fallthru
          _
      $region93: #{_lambda_.10} parent=5 // pred_fallthru
        _
      %p620 = scmp.le.s32.totalorder 2, %s11
      // Predicated region
      $region125: #{_lambda_.10} parent=5 // pred_check
        %p621 = pneg %p620
      $region126: #{_lambda_.10} parent=5 // pred_check_branch
        %623 = sbr.rel (%p621) target = $region128
      $region127: #{_lambda_.10} parent=5 // pred_region
        %s624 = ssub.s32 %s11, 2
        // Predicated region
        $region129: #{_lambda_.10} parent=127 // pred_check
          %p625 = pneg %p155
        $region130: #{_lambda_.10} parent=127 // pred_check_branch
          %627 = sbr.rel (%p625) target = $region132
        $region131: #{_lambda_.10} parent=127 // pred_region
          %s628 = sand.u32 %s140, 1
          %s629 = sand.u32 %s140, 1
          %s630 = smul.addr %s629, 32
          %s631 = scalar_lea.vmem [#allocation4], %s630
        $region132: #{_lambda_.10} parent=127 // pred_fallthru
          _
      $region128: #{_lambda_.10} parent=5 // pred_fallthru
        _
    $region6: #{_lambda_.10} parent=1 // loop_footer
      %s15 = sadd.s32 1, %s11
    $region7: #{_lambda_.10} parent=1 // loop_footer_branch
      %10 = sbr.rel target = $region3
    $region8: #{_lambda_.10} parent=1 // loop_exit
      _

// kernel: _lambda_.9
$region0: #{_lambda_.9}
  #allocation0 [shape = 'u32[]', space=smem, size = 0x4, offset = 0x4, fixed_abs, tag = 'smem constant byte address 0x4 - core index']
  #allocation1 [shape = 'u32[144,128]{1,0:T(1,128)}', space=vmem, size = 0x12000, scoped, tag = 'internal scratch']
  %s0 = inlined_call_operand.vmem [shape: bf16[16,144], index: 0, kind: input, shape index: {}]
  %s1 = inlined_call_operand.vmem [shape: bf16[144,512], index: 1, kind: input, shape index: {}]
  %s2 = inlined_call_operand.vmem [shape: f32[16,1], index: 2, kind: input, shape index: {}]
  %s3 = inlined_call_operand.vmem [shape: f32[16,1], index: 3, kind: input, shape index: {}]
  %s4 = inlined_call_operand.vmem [shape: f32[16,512], index: 4, kind: output, shape index: {}]
  %s5 = sld [smem:[#allocation0]]
  $region106: #{_lambda_.9} parent=0
    _
  %s7 = ssub.s32 1, %s5
  %s8 = scalar_select 0, %s7, %s5
  $region1: #{_lambda_.9} parent=0
    #allocation2 [shape = 'u8[147456]{0}', space=vmem, size = 0x24000, scoped, tag = 'input window, operand 1']
    #allocation3 [shape = 'u8[32768]{0}', space=vmem, size = 0x8000, scoped, tag = 'output window, operand 0']
    loop: start=0, step=1, limit=4
    $region2: #{_lambda_.9} parent=1 // loop_pre_header
      _
    $region3: #{_lambda_.9} parent=1 // loop_header
      %s10 = sphi 0, %s14
      %p11 = scmp.ge.s32.totalorder %s10, 4
      %s18 = sphi 0, %s18
      %s20 = sphi 0, %s18
      %s21 = sphi 0, %s20
      %s35 = sphi 0, %s21
      %s41 = sphi 0, %s43
      %s44 = sphi 0, %s41
      %s45 = sphi 0, %s44
      %s61 = sphi 0, %s45
      %s65 = sphi 0, %s65
      %s67 = sphi 0, %s65
      %s68 = sphi 0, %s67
      %s82 = sphi 0, %s68
      %s86 = sphi 0, %s86
      %s88 = sphi 0, %s86
      %s89 = sphi 0, %s88
      %s103 = sphi 0, %s89
      %s109 = sphi 0, %s111
      %s112 = sphi 0, %s109
      %s113 = sphi 0, %s112
      %s129 = sphi 0, %s113
    $region4: #{_lambda_.9} parent=1 // loop_header_branch
      %13 = sbr.rel (%p11) target = $region8
    $region5: #{_lambda_.9} parent=1 // loop_body
      %s15 = ssub.s32 %s10, 1
      %s16 = ssub.s32 %s10, 2
      %s17 = sadd.s32 %s10, 1
      %s19 = sadd.s32 %s18, 1
      %p22 = scmp.eq.s32.totalorder %s10, 1
      %p23 = scmp.ne.s32.totalorder %s18, %s20
      %p24 = scmp.eq.s32.totalorder %s10, 0
      %p25 = por %p23, %p24
      %p26 = scmp.ne.s32.totalorder %s18, %s20
      %p27 = scmp.eq.s32.totalorder %s15, 1
      %p28 = por %p26, %p27
      %p29 = scmp.ne.s32.totalorder %s20, %s21
      %p30 = scmp.eq.s32.totalorder %s15, 0
      %p31 = por %p29, %p30
      %p32 = scmp.ne.s32.totalorder %s20, %s21
      %p33 = scmp.eq.s32.totalorder %s16, 1
      %p34 = por %p32, %p33
      %p36 = scmp.ne.s32.totalorder %s21, %s35
      %p37 = scmp.eq.s32.totalorder %s16, 0
      %p38 = por %p36, %p37
      %s39 = ssub.s32 %s10, %s17
      %p40 = scmp.eq.s32.totalorder %s39, 0
      %s42 = sadd.s32 %s41, 1
      %s43 = scalar_select %p40, %s41, %s42
      %p46 = pneg %p40
      %p47 = scmp.eq.s32.totalorder %s10, 1
      %p48 = por %p46, %p47
      %p49 = scmp.ne.s32.totalorder %s41, %s44
      %p50 = scmp.eq.s32.totalorder %s10, 0
      %p51 = por %p49, %p50
      %p52 = scmp.ne.s32.totalorder %s41, %s44
      %p53 = scmp.eq.s32.totalorder %s15, 1
      %p54 = por %p52, %p53
      %p55 = scmp.ne.s32.totalorder %s44, %s45
      %p56 = scmp.eq.s32.totalorder %s15, 0
      %p57 = por %p55, %p56
      %p58 = scmp.ne.s32.totalorder %s44, %s45
      %p59 = scmp.eq.s32.totalorder %s16, 1
      %p60 = por %p58, %p59
      %p62 = scmp.ne.s32.totalorder %s45, %s61
      %p63 = scmp.eq.s32.totalorder %s16, 0
      %p64 = por %p62, %p63
      %s66 = sadd.s32 %s65, 1
      %p69 = scmp.eq.s32.totalorder %s10, 1
      %p70 = scmp.ne.s32.totalorder %s65, %s67
      %p71 = scmp.eq.s32.totalorder %s10, 0
      %p72 = por %p70, %p71
      %p73 = scmp.ne.s32.totalorder %s65, %s67
      %p74 = scmp.eq.s32.totalorder %s15, 1
      %p75 = por %p73, %p74
      %p76 = scmp.ne.s32.totalorder %s67, %s68
      %p77 = scmp.eq.s32.totalorder %s15, 0
      %p78 = por %p76, %p77
      %p79 = scmp.ne.s32.totalorder %s67, %s68
      %p80 = scmp.eq.s32.totalorder %s16, 1
      %p81 = por %p79, %p80
      %p83 = scmp.ne.s32.totalorder %s68, %s82
      %p84 = scmp.eq.s32.totalorder %s16, 0
      %p85 = por %p83, %p84
      %s87 = sadd.s32 %s86, 1
      %p90 = scmp.eq.s32.totalorder %s10, 1
      %p91 = scmp.ne.s32.totalorder %s86, %s88
      %p92 = scmp.eq.s32.totalorder %s10, 0
      %p93 = por %p91, %p92
      %p94 = scmp.ne.s32.totalorder %s86, %s88
      %p95 = scmp.eq.s32.totalorder %s15, 1
      %p96 = por %p94, %p95
      %p97 = scmp.ne.s32.totalorder %s88, %s89
      %p98 = scmp.eq.s32.totalorder %s15, 0
      %p99 = por %p97, %p98
      %p100 = scmp.ne.s32.totalorder %s88, %s89
      %p101 = scmp.eq.s32.totalorder %s16, 1
      %p102 = por %p100, %p101
      %p104 = scmp.ne.s32.totalorder %s89, %s103
      %p105 = scmp.eq.s32.totalorder %s16, 0
      %p106 = por %p104, %p105
      %s107 = ssub.s32 %s10, %s17
      %p108 = scmp.eq.s32.totalorder %s107, 0
      %s110 = sadd.s32 %s109, 1
      %s111 = scalar_select %p108, %s109, %s110
      %p114 = pneg %p108
      %p115 = scmp.eq.s32.totalorder %s10, 1
      %p116 = por %p114, %p115
      %p117 = scmp.ne.s32.totalorder %s109, %s112
      %p118 = scmp.eq.s32.totalorder %s10, 0
      %p119 = por %p117, %p118
      %p120 = scmp.ne.s32.totalorder %s109, %s112
      %p121 = scmp.eq.s32.totalorder %s15, 1
      %p122 = por %p120, %p121
      %p123 = scmp.ne.s32.totalorder %s112, %s113
      %p124 = scmp.eq.s32.totalorder %s15, 0
      %p125 = por %p123, %p124
      %p126 = scmp.ne.s32.totalorder %s112, %s113
      %p127 = scmp.eq.s32.totalorder %s16, 1
      %p128 = por %p126, %p127
      %p130 = scmp.ne.s32.totalorder %s113, %s129
      %p131 = scmp.eq.s32.totalorder %s16, 0
      %p132 = por %p130, %p131
      %p133 = scmp.le.s32.totalorder 1, %s10
      %p134 = scmp.lt.s32.totalorder %s10, 3
      %p135 = pnand %p133, %p134
      %p136 = pneg %p135
      // Predicated region
      $region9: #{_lambda_.9} parent=5 // pred_check
        _
      $region10: #{_lambda_.9} parent=5 // pred_check_branch
        %138 = sbr.rel (%p135) target = $region12
      $region11: #{_lambda_.9} parent=5 // pred_region
        %s139 = ssub.s32 %s10, 1
        // Predicated region
        $region13: #{_lambda_.9} parent=11 // pred_check
          %p140 = pneg %p31
        $region14: #{_lambda_.9} parent=11 // pred_check_branch
          %142 = sbr.rel (%p140) target = $region16
        $region15: #{_lambda_.9} parent=11 // pred_region
          _
        $region16: #{_lambda_.9} parent=11 // pred_fallthru
          _
        // Predicated region
        $region17: #{_lambda_.9} parent=11 // pred_check
          %p143 = pneg %p78
        $region18: #{_lambda_.9} parent=11 // pred_check_branch
          %145 = sbr.rel (%p143) target = $region20
        $region19: #{_lambda_.9} parent=11 // pred_region
          _
        $region20: #{_lambda_.9} parent=11 // pred_fallthru
          _
        // Predicated region
        $region21: #{_lambda_.9} parent=11 // pred_check
          %p146 = pneg %p99
        $region22: #{_lambda_.9} parent=11 // pred_check_branch
          %148 = sbr.rel (%p146) target = $region24
        $region23: #{_lambda_.9} parent=11 // pred_region
          _
        $region24: #{_lambda_.9} parent=11 // pred_fallthru
          _
      $region12: #{_lambda_.9} parent=5 // pred_fallthru
        _
      %p149 = scmp.lt.s32.totalorder %s10, 2
      // Predicated region
      $region25: #{_lambda_.9} parent=5 // pred_check
        %p150 = pneg %p149
      $region26: #{_lambda_.9} parent=5 // pred_check_branch
        %152 = sbr.rel (%p150) target = $region28
      $region27: #{_lambda_.9} parent=5 // pred_region
        // Predicated region
        $region29: #{_lambda_.9} parent=27 // pred_check
          %p153 = pneg %p51
        $region30: #{_lambda_.9} parent=27 // pred_check_branch
          %155 = sbr.rel (%p153) target = $region32
        $region31: #{_lambda_.9} parent=27 // pred_region
          %s156 = sand.u32 %s41, 1
          %s157 = sand.u32 %s41, 1
          %s158 = smul.addr %s157, 144
          %s159 = scalar_lea.vmem [#allocation2], %s158
          %s160 = smul.u32 2, %s10
          %s161 = smul.addr %s160, 4
          %s162 = scalar_lea.vmem %s1, %s161
          // Predicated region
          $region33: #{_lambda_.9} parent=31 // pred_check
            _
          $region34: #{_lambda_.9} parent=31 // pred_check_branch
            %164 = sbr.rel (0) target = $region36
          $region35: #{_lambda_.9} parent=31 // pred_region
            // Predicated region
            $region37: #{_lambda_.9} parent=35 // pred_check
              _
            $region38: #{_lambda_.9} parent=35 // pred_check_branch
              %166 = sbr.rel (0) target = $region40
            $region39: #{_lambda_.9} parent=35 // pred_region
              // Predicated region
              $region52: #{_lambda_.9} parent=39 // pred_check
                _
              $region53: #{_lambda_.9} parent=39 // pred_check_branch
                %216 = sbr.rel (0) target = $region55
              $region54: #{_lambda_.9} parent=39 // pred_region
                loop: start=0, step=1, limit=1
                $region56: #{_lambda_.9} parent=54 // loop_pre_header
                  _
                $region57: #{_lambda_.9} parent=54 // loop_header
                  %s218 = sphi 0, %s222
                  %p219 = scmp.ge.s32.totalorder %s218, 1
                  %s223 = sphi %s162, %s162
                  %s224 = sphi %s159, %s159
                $region58: #{_lambda_.9} parent=54 // loop_header_branch
                  %221 = sbr.rel (%p219) target = $region62
                $region59: #{_lambda_.9} parent=54 // loop_body
                  %v225 = vld [vmem:[%s223] sm:$0xff]
                  %226 = vst [vmem:[%s224] sm:$0xff] %v225
                  %v227 = vld [vmem:[%s223 + $0x10] sm:$0xff]
                  %228 = vst [vmem:[%s224 + $0x8] sm:$0xff] %v227
                  %v229 = vld [vmem:[%s223 + $0x20] sm:$0xff]
                  %230 = vst [vmem:[%s224 + $0x10] sm:$0xff] %v229
                  %v231 = vld [vmem:[%s223 + $0x30] sm:$0xff]
                  %232 = vst [vmem:[%s224 + $0x18] sm:$0xff] %v231
                  %v233 = vld [vmem:[%s223 + $0x40] sm:$0xff]
                  %234 = vst [vmem:[%s224 + $0x20] sm:$0xff] %v233
                  %v235 = vld [vmem:[%s223 + $0x50] sm:$0xff]
                  %236 = vst [vmem:[%s224 + $0x28] sm:$0xff] %v235
                  %v237 = vld [vmem:[%s223 + $0x60] sm:$0xff]
                  %238 = vst [vmem:[%s224 + $0x30] sm:$0xff] %v237
                  %v239 = vld [vmem:[%s223 + $0x70] sm:$0xff]
                  %240 = vst [vmem:[%s224 + $0x38] sm:$0xff] %v239
                  %v241 = vld [vmem:[%s223 + $0x80] sm:$0xff]
                  %242 = vst [vmem:[%s224 + $0x40] sm:$0xff] %v241
                  %v243 = vld [vmem:[%s223 + $0x90] sm:$0xff]
                  %244 = vst [vmem:[%s224 + $0x48] sm:$0xff] %v243
                  %v245 = vld [vmem:[%s223 + $0xa0] sm:$0xff]
                  %246 = vst [vmem:[%s224 + $0x50] sm:$0xff] %v245
                  %v247 = vld [vmem:[%s223 + $0xb0] sm:$0xff]
                  %248 = vst [vmem:[%s224 + $0x58] sm:$0xff] %v247
                  %v249 = vld [vmem:[%s223 + $0xc0] sm:$0xff]
                  %250 = vst [vmem:[%s224 + $0x60] sm:$0xff] %v249
                  %v251 = vld [vmem:[%s223 + $0xd0] sm:$0xff]
                  %252 = vst [vmem:[%s224 + $0x68] sm:$0xff] %v251
                  %v253 = vld [vmem:[%s223 + $0xe0] sm:$0xff]
                  %254 = vst [vmem:[%s224 + $0x70] sm:$0xff] %v253
                  %v255 = vld [vmem:[%s223 + $0xf0] sm:$0xff]
                  %256 = vst [vmem:[%s224 + $0x78] sm:$0xff] %v255
                  %v257 = vld [vmem:[%s223 + $0x100] sm:$0xff]
                  %258 = vst [vmem:[%s224 + $0x80] sm:$0xff] %v257
                  %v259 = vld [vmem:[%s223 + $0x110] sm:$0xff]
                  %260 = vst [vmem:[%s224 + $0x88] sm:$0xff] %v259
                $region60: #{_lambda_.9} parent=54 // loop_footer
                  %s222 = sadd.s32 1, %s218
                $region61: #{_lambda_.9} parent=54 // loop_footer_branch
                  %217 = sbr.rel target = $region57
                $region62: #{_lambda_.9} parent=54 // loop_exit
                  _
              $region55: #{_lambda_.9} parent=39 // pred_fallthru
                _
              // Predicated region
              $region63: #{_lambda_.9} parent=39 // pred_check
                _
              $region64: #{_lambda_.9} parent=39 // pred_check_branch
                %262 = sbr.rel target = $region66
              $region65: #{_lambda_.9} parent=39 // pred_region
                _
              $region66: #{_lambda_.9} parent=39 // pred_fallthru
                _
            $region40: #{_lambda_.9} parent=35 // pred_fallthru
              _
            // Predicated region
            $region41: #{_lambda_.9} parent=35 // pred_check
              _
            $region42: #{_lambda_.9} parent=35 // pred_check_branch
              %168 = sbr.rel target = $region44
            $region43: #{_lambda_.9} parent=35 // pred_region
              %s170 = ssub.s32 256, 1
              loop: start=0, step=1, limit=1
              $region45: #{_lambda_.9} parent=43 // loop_pre_header
                _
              $region46: #{_lambda_.9} parent=43 // loop_header
                %s172 = sphi 0, %s176
                %p173 = scmp.ge.s32.totalorder %s172, 1
                %s177 = sphi %s162, %s162
                %s178 = sphi %s159, %s159
              $region47: #{_lambda_.9} parent=43 // loop_header_branch
                %175 = sbr.rel (%p173) target = $region51
              $region48: #{_lambda_.9} parent=43 // loop_body
                %v179 = vld [vmem:[%s177] sm:%s170]
                %180 = vst [vmem:[%s178] sm:%s170] %v179
                %v181 = vld [vmem:[%s177 + $0x10] sm:%s170]
                %182 = vst [vmem:[%s178 + $0x8] sm:%s170] %v181
                %v183 = vld [vmem:[%s177 + $0x20] sm:%s170]
                %184 = vst [vmem:[%s178 + $0x10] sm:%s170] %v183
                %v185 = vld [vmem:[%s177 + $0x30] sm:%s170]
                %186 = vst [vmem:[%s178 + $0x18] sm:%s170] %v185
                %v187 = vld [vmem:[%s177 + $0x40] sm:%s170]
                %188 = vst [vmem:[%s178 + $0x20] sm:%s170] %v187
                %v189 = vld [vmem:[%s177 + $0x50] sm:%s170]
                %190 = vst [vmem:[%s178 + $0x28] sm:%s170] %v189
                %v191 = vld [vmem:[%s177 + $0x60] sm:%s170]
                %192 = vst [vmem:[%s178 + $0x30] sm:%s170] %v191
                %v193 = vld [vmem:[%s177 + $0x70] sm:%s170]
                %194 = vst [vmem:[%s178 + $0x38] sm:%s170] %v193
                %v195 = vld [vmem:[%s177 + $0x80] sm:%s170]
                %196 = vst [vmem:[%s178 + $0x40] sm:%s170] %v195
                %v197 = vld [vmem:[%s177 + $0x90] sm:%s170]
                %198 = vst [vmem:[%s178 + $0x48] sm:%s170] %v197
                %v199 = vld [vmem:[%s177 + $0xa0] sm:%s170]
                %200 = vst [vmem:[%s178 + $0x50] sm:%s170] %v199
                %v201 = vld [vmem:[%s177 + $0xb0] sm:%s170]
                %202 = vst [vmem:[%s178 + $0x58] sm:%s170] %v201
                %v203 = vld [vmem:[%s177 + $0xc0] sm:%s170]
                %204 = vst [vmem:[%s178 + $0x60] sm:%s170] %v203
                %v205 = vld [vmem:[%s177 + $0xd0] sm:%s170]
                %206 = vst [vmem:[%s178 + $0x68] sm:%s170] %v205
                %v207 = vld [vmem:[%s177 + $0xe0] sm:%s170]
                %208 = vst [vmem:[%s178 + $0x70] sm:%s170] %v207
                %v209 = vld [vmem:[%s177 + $0xf0] sm:%s170]
                %210 = vst [vmem:[%s178 + $0x78] sm:%s170] %v209
                %v211 = vld [vmem:[%s177 + $0x100] sm:%s170]
                %212 = vst [vmem:[%s178 + $0x80] sm:%s170] %v211
                %v213 = vld [vmem:[%s177 + $0x110] sm:%s170]
                %214 = vst [vmem:[%s178 + $0x88] sm:%s170] %v213
              $region49: #{_lambda_.9} parent=43 // loop_footer
                %s176 = sadd.s32 1, %s172
              $region50: #{_lambda_.9} parent=43 // loop_footer_branch
                %171 = sbr.rel target = $region46
              $region51: #{_lambda_.9} parent=43 // loop_exit
                _
            $region44: #{_lambda_.9} parent=35 // pred_fallthru
              _
          $region36: #{_lambda_.9} parent=31 // pred_fallthru
            _
          %263 = vnop
        $region32: #{_lambda_.9} parent=27 // pred_fallthru
          _
      $region28: #{_lambda_.9} parent=5 // pred_fallthru
        _
      %p264 = scmp.le.s32.totalorder 1, %s10
      %p265 = scmp.lt.s32.totalorder %s10, 3
      %p266 = pnand %p264, %p265
      %p267 = pneg %p266
      // Predicated region
      $region67: #{_lambda_.9} parent=5 // pred_check
        _
      $region68: #{_lambda_.9} parent=5 // pred_check_branch
        %269 = sbr.rel (%p266) target = $region70
      $region69: #{_lambda_.9} parent=5 // pred_region
        %s270 = ssub.s32 %s10, 1
        %s271 = sand.u32 %s44, 1
        %s272 = sand.u32 %s44, 1
        %s273 = smul.addr %s272, 144
        %s274 = scalar_lea.vmem [#allocation2], %s273
        // Predicated region
        $region71: #{_lambda_.9} parent=69 // pred_check
          %p275 = pneg %p57
        $region72: #{_lambda_.9} parent=69 // pred_check_branch
          %277 = sbr.rel (%p275) target = $region74
        $region73: #{_lambda_.9} parent=69 // pred_region
          _
        $region74: #{_lambda_.9} parent=69 // pred_fallthru
          _
        %p278 = pneg %p31
        %p279 = pneg %p28
        %s280 = sand.u32 %s44, 1
        %s281 = sand.u32 %s44, 1
        %s282 = smul.addr %s281, 144
        %s283 = scalar_lea.vmem [#allocation2], %s282
        %p284 = pneg %p57
        %p285 = pneg %p54
        %p286 = pneg %p78
        %p287 = pneg %p75
        %p288 = pneg %p99
        %p289 = pneg %p96
        %p290 = pneg %p125
        %p291 = pneg %p122
        %s292 = sand.u32 %s112, 1
        %s293 = sand.u32 %s112, 1
        %s294 = smul.addr %s293, 32
        %s295 = scalar_lea.vmem [#allocation3], %s294
        %s296 = smul.u32 2, %s15
        %s297 = smul.u32 2, %s15
        %v299 = vld [vmem:[%s0] sm:$0xff]
        %v300 = vld [vmem:[%s0 + $0x8] sm:$0xff]
        %v301 = vld [vmem:[%s274] sm:$0xff]
        %v302 = vld [vmem:[%s274 + $0x8] sm:$0xff]
        %v303 = vld [vmem:[%s274 + $0x10] sm:$0xff]
        %v304 = vld [vmem:[%s274 + $0x18] sm:$0xff]
        %v305 = vld [vmem:[%s274 + $0x20] sm:$0xff]
        %v306 = vld [vmem:[%s274 + $0x28] sm:$0xff]
        %v307 = vld [vmem:[%s274 + $0x30] sm:$0xff]
        %v308 = vld [vmem:[%s274 + $0x38] sm:$0xff]
        %v309 = vld [vmem:[%s274 + $0x40] sm:$0xff]
        %v310 = vld [vmem:[%s274 + $0x48] sm:$0xff]
        %v311 = vld [vmem:[%s274 + $0x50] sm:$0xff]
        %v312 = vld [vmem:[%s274 + $0x58] sm:$0xff]
        %v313 = vld [vmem:[%s274 + $0x60] sm:$0xff]
        %v314 = vld [vmem:[%s274 + $0x68] sm:$0xff]
        %v315 = vld [vmem:[%s274 + $0x70] sm:$0xff]
        %v316 = vld [vmem:[%s274 + $0x78] sm:$0xff]
        %v317 = vld [vmem:[%s274 + $0x80] sm:$0xff]
        %v318 = vld [vmem:[%s274 + $0x88] sm:$0xff]
        %v321 = vunpack.c.l.b16 %v299
        %v322 = vunpack.c.h.b16 %v299
        %v323 = vunpack.c.l.b16 %v300
        %v324 = vunpack.c.h.b16 %v300
        %v325 = vpack.c.b16 %v323, %v321
        %v326 = vpack.c.b16 %v324, %v322
        %v346 = vunpack.c.l.b16 %v301
        %v347 = vunpack.c.h.b16 %v301
        %v348 = vunpack.c.l.b16 %v302
        %v349 = vunpack.c.h.b16 %v302
        %v350 = vunpack.c.l.b16 %v303
        %v351 = vunpack.c.h.b16 %v303
        %v352 = vunpack.c.l.b16 %v304
        %v353 = vunpack.c.h.b16 %v304
        %v354 = vunpack.c.l.b16 %v305
        %v355 = vunpack.c.h.b16 %v305
        %v356 = vunpack.c.l.b16 %v306
        %v357 = vunpack.c.h.b16 %v306
        %v358 = vunpack.c.l.b16 %v307
        %v359 = vunpack.c.h.b16 %v307
        %v360 = vunpack.c.l.b16 %v308
        %v361 = vunpack.c.h.b16 %v308
        %v362 = vunpack.c.l.b16 %v309
        %v363 = vunpack.c.h.b16 %v309
        %v364 = vunpack.c.l.b16 %v310
        %v365 = vunpack.c.h.b16 %v310
        %v366 = vunpack.c.l.b16 %v311
        %v367 = vunpack.c.h.b16 %v311
        %v368 = vunpack.c.l.b16 %v312
        %v369 = vunpack.c.h.b16 %v312
        %v370 = vunpack.c.l.b16 %v313
        %v371 = vunpack.c.h.b16 %v313
        %v372 = vunpack.c.l.b16 %v314
        %v373 = vunpack.c.h.b16 %v314
        %v374 = vunpack.c.l.b16 %v315
        %v375 = vunpack.c.h.b16 %v315
        %v376 = vunpack.c.l.b16 %v316
        %v377 = vunpack.c.h.b16 %v316
        %v378 = vunpack.c.l.b16 %v317
        %v379 = vunpack.c.h.b16 %v317
        %v380 = vunpack.c.l.b16 %v318
        %v381 = vunpack.c.h.b16 %v318
        %v382 = vpack.c.b16 %v348, %v346
        %v383 = vpack.c.b16 %v349, %v347
        %v384 = vpack.c.b16 %v352, %v350
        %v385 = vpack.c.b16 %v353, %v351
        %v386 = vpack.c.b16 %v356, %v354
        %v387 = vpack.c.b16 %v357, %v355
        %v388 = vpack.c.b16 %v360, %v358
        %v389 = vpack.c.b16 %v361, %v359
        %v390 = vpack.c.b16 %v364, %v362
        %v391 = vpack.c.b16 %v365, %v363
        %v392 = vpack.c.b16 %v368, %v366
        %v393 = vpack.c.b16 %v369, %v367
        %v394 = vpack.c.b16 %v372, %v370
        %v395 = vpack.c.b16 %v373, %v371
        %v396 = vpack.c.b16 %v376, %v374
        %v397 = vpack.c.b16 %v377, %v375
        %v398 = vpack.c.b16 %v380, %v378
        %v399 = vpack.c.b16 %v381, %v379
        %vm418 = vcmask 130048
        %v420 = vsel %vm418, %v326, 0
        %422 = vmatprep.subr.bf16.mxu0 %v397
        %423 = vmatpush1.bf16.msra.mxu0 %v396
        %424 = vmatprep.subr.bf16.mxu0 %v395
        %425 = vmatpush1.bf16.msra.mxu0 %v394
        %426 = vmatprep.subr.bf16.mxu0 %v393
        %427 = vmatpush1.bf16.msra.mxu0 %v392
        %428 = vmatprep.subr.bf16.mxu0 %v391
        %429 = vmatpush1.bf16.msra.mxu0 %v390
        %430 = vmatprep.subr.bf16.mxu0 %v389
        %431 = vmatpush1.bf16.msra.mxu0 %v388
        %432 = vmatprep.subr.bf16.mxu0 %v387
        %433 = vmatpush1.bf16.msra.mxu0 %v386
        %434 = vmatprep.subr.bf16.mxu0 %v385
        %435 = vmatpush1.bf16.msra.mxu0 %v384
        %436 = vmatprep.subr.bf16.mxu0 %v383
        %437 = vmatpush1.bf16.msra.mxu0 %v382
        %438 = vmatprep.subr.bf16.mxu0 0
        %439 = vmatpush2.bf16.msra.mxu0 0
        %440 = vmatprep.subr.bf16.mxu0 0
        %441 = vmatpush2.bf16.msra.mxu0 0
        %442 = vmatprep.subr.bf16.mxu0 0
        %443 = vmatpush2.bf16.msra.mxu0 0
        %444 = vmatprep.subr.bf16.mxu0 0
        %445 = vmatpush2.bf16.msra.mxu0 0
        %446 = vmatprep.subr.bf16.mxu0 0
        %447 = vmatpush2.bf16.msra.mxu0 0
        %448 = vmatprep.subr.bf16.mxu0 0
        %449 = vmatpush2.bf16.msra.mxu0 0
        %450 = vmatprep.subr.bf16.mxu0 0
        %451 = vmatpush2.bf16.msra.mxu0 0
        %452 = vmatprep.subr.bf16.mxu0 %v399
        %453 = vmatpush2.bf16.msra.mxu0 %v398
        %454 = vmatprep.mubr.bf16.mxu0 %v420
        %455 = vmatmul.mubr.bf16.gmra.mxu0 %v325
        %v456 = vpop.f32.mrf.mxu0
        %v457 = vadd.f32 0.0, %v456
        %v458 = vpop.f32.mrf.mxu0
        %v459 = vadd.f32 0.0, %v458
        %v460 = vpop.f32.mrf.mxu0
        %v461 = vadd.f32 0.0, %v460
        %v462 = vpop.f32.mrf.mxu0
        %v463 = vadd.f32 0.0, %v462
        %464 = vdwg.mxu0
        %v465 = vld [vmem:[%s2] sm:$0xff]
        %v466 = vld [vmem:[%s2 + $0x8] sm:$0xff]
        %468 = vset.pattern.permute.xlu0 0
        %469 = vperm.xlu0 %468, %v465
        %v470 = vpop.permute.xlu0 %469
        %473 = vset.pattern.permute.xlu0 0
        %474 = vperm.xlu0 %473, %v466
        %v475 = vpop.permute.xlu0 %474
        %v477 = vmul.f32 %v457, %v470
        %v478 = vmul.f32 %v459, %v470
        %v479 = vmul.f32 %v461, %v475
        %v480 = vmul.f32 %v463, %v475
        %v481 = vld [vmem:[%s3] sm:$0xff]
        %v482 = vld [vmem:[%s3 + $0x8] sm:$0xff]
        %484 = vset.pattern.permute.xlu0 0
        %485 = vperm.xlu0 %484, %v481
        %v486 = vpop.permute.xlu0 %485
        %489 = vset.pattern.permute.xlu0 0
        %490 = vperm.xlu0 %489, %v482
        %v491 = vpop.permute.xlu0 %490
        %v493 = vadd.f32 %v477, %v486
        %v494 = vadd.f32 %v478, %v486
        %v495 = vadd.f32 %v479, %v491
        %v496 = vadd.f32 %v480, %v491
        %v497 = vmax.f32 %v493, 0.0
        %v498 = vmax.f32 %v494, 0.0
        %v499 = vmax.f32 %v495, 0.0
        %v500 = vmax.f32 %v496, 0.0
        %501 = vst [vmem:[%s295] sm:$0xff] %v497
        %502 = vst [vmem:[%s295 + $0x8] sm:$0xff] %v498
        %503 = vst [vmem:[%s295 + $0x10] sm:$0xff] %v499
        %504 = vst [vmem:[%s295 + $0x18] sm:$0xff] %v500
        %s505 = sand.u32 %s112, 1
        %s506 = sand.u32 %s112, 1
        %s507 = smul.addr %s506, 32
        %s508 = scalar_lea.vmem [#allocation3], %s507
        // Predicated region
        $region75: #{_lambda_.9} parent=69 // pred_check
          %p509 = pneg %p122
        $region76: #{_lambda_.9} parent=69 // pred_check_branch
          %511 = sbr.rel (%p509) target = $region78
        $region77: #{_lambda_.9} parent=69 // pred_region
          %s512 = smul.u32 2, %s15
          %s513 = smul.addr %s512, 8
          %s514 = scalar_lea.vmem %s4, %s513
          // Predicated region
          $region79: #{_lambda_.9} parent=77 // pred_check
            _
          $region80: #{_lambda_.9} parent=77 // pred_check_branch
            %516 = sbr.rel (0) target = $region82
          $region81: #{_lambda_.9} parent=77 // pred_region
            // Predicated region
            $region83: #{_lambda_.9} parent=81 // pred_check
              _
            $region84: #{_lambda_.9} parent=81 // pred_check_branch
              %518 = sbr.rel (0) target = $region86
            $region85: #{_lambda_.9} parent=81 // pred_region
              loop: start=0, step=1, limit=1
              $region87: #{_lambda_.9} parent=85 // loop_pre_header
                _
              $region88: #{_lambda_.9} parent=85 // loop_header
                %s520 = sphi 0, %s524
                %p521 = scmp.ge.s32.totalorder %s520, 1
                %s525 = sphi %s508, %s508
                %s526 = sphi %s514, %s514
              $region89: #{_lambda_.9} parent=85 // loop_header_branch
                %523 = sbr.rel (%p521) target = $region93
              $region90: #{_lambda_.9} parent=85 // loop_body
                %v527 = vld [vmem:[%s525] sm:$0xff]
                %528 = vst [vmem:[%s526] sm:$0xff] %v527
                %v529 = vld [vmem:[%s525 + $0x8] sm:$0xff]
                %530 = vst [vmem:[%s526 + $0x8] sm:$0xff] %v529
                %v531 = vld [vmem:[%s525 + $0x10] sm:$0xff]
                %532 = vst [vmem:[%s526 + $0x20] sm:$0xff] %v531
                %v533 = vld [vmem:[%s525 + $0x18] sm:$0xff]
                %534 = vst [vmem:[%s526 + $0x28] sm:$0xff] %v533
              $region91: #{_lambda_.9} parent=85 // loop_footer
                %s524 = sadd.s32 1, %s520
              $region92: #{_lambda_.9} parent=85 // loop_footer_branch
                %519 = sbr.rel target = $region88
              $region93: #{_lambda_.9} parent=85 // loop_exit
                _
            $region86: #{_lambda_.9} parent=81 // pred_fallthru
              _
            // Predicated region
            $region94: #{_lambda_.9} parent=81 // pred_check
              _
            $region95: #{_lambda_.9} parent=81 // pred_check_branch
              %536 = sbr.rel target = $region97
            $region96: #{_lambda_.9} parent=81 // pred_region
              _
            $region97: #{_lambda_.9} parent=81 // pred_fallthru
              _
          $region82: #{_lambda_.9} parent=77 // pred_fallthru
            _
          %537 = vnop
        $region78: #{_lambda_.9} parent=69 // pred_fallthru
          _
      $region70: #{_lambda_.9} parent=5 // pred_fallthru
        _
      %p538 = scmp.le.s32.totalorder 2, %s10
      // Predicated region
      $region98: #{_lambda_.9} parent=5 // pred_check
        %p539 = pneg %p538
      $region99: #{_lambda_.9} parent=5 // pred_check_branch
        %541 = sbr.rel (%p539) target = $region101
      $region100: #{_lambda_.9} parent=5 // pred_region
        %s542 = ssub.s32 %s10, 2
        // Predicated region
        $region102: #{_lambda_.9} parent=100 // pred_check
          %p543 = pneg %p128
        $region103: #{_lambda_.9} parent=100 // pred_check_branch
          %545 = sbr.rel (%p543) target = $region105
        $region104: #{_lambda_.9} parent=100 // pred_region
          %s546 = sand.u32 %s113, 1
          %s547 = sand.u32 %s113, 1
          %s548 = smul.addr %s547, 32
          %s549 = scalar_lea.vmem [#allocation3], %s548
        $region105: #{_lambda_.9} parent=100 // pred_fallthru
          _
      $region101: #{_lambda_.9} parent=5 // pred_fallthru
        _
    $region6: #{_lambda_.9} parent=1 // loop_footer
      %s14 = sadd.s32 1, %s10
    $region7: #{_lambda_.9} parent=1 // loop_footer_branch
      %9 = sbr.rel target = $region3
    $region8: #{_lambda_.9} parent=1 // loop_exit
      _

// kernel: _lambda_.11
$region0: #{_lambda_.11}
  #allocation0 [shape = 'u32[]', space=smem, size = 0x4, offset = 0x4, fixed_abs, tag = 'smem constant byte address 0x4 - core index']
  #allocation1 [shape = 'u32[144,128]{1,0:T(1,128)}', space=vmem, size = 0x12000, scoped, tag = 'internal scratch']
  %s0 = inlined_call_operand.vmem [shape: bf16[32,144], index: 0, kind: input, shape index: {}]
  %s1 = inlined_call_operand.vmem [shape: bf16[144,128], index: 1, kind: input, shape index: {}]
  %s2 = inlined_call_operand.vmem [shape: f32[32,1], index: 2, kind: input, shape index: {}, may-alias: {2,5}]
  %s3 = inlined_call_operand.vmem [shape: f32[32,1], index: 3, kind: input, shape index: {}, may-alias: {3,6}]
  %s4 = inlined_call_operand.vmem [shape: bf16[32,16], index: 4, kind: input, shape index: {}]
  %s5 = inlined_call_operand.vmem [shape: f32[32,1], index: 5, kind: input, shape index: {}, may-alias: {2,5}]
  %s6 = inlined_call_operand.vmem [shape: f32[32,1], index: 6, kind: input, shape index: {}, may-alias: {3,6}]
  %s7 = inlined_call_operand.vmem [shape: f32[32,128], index: 7, kind: output, shape index: {0}]
  %s8 = inlined_call_operand.vmem [shape: f32[32,128], index: 8, kind: output, shape index: {1}]
  %9 = xla_tuple %s7, %s8
  %s10 = sld [smem:[#allocation0]]
  $region46: #{_lambda_.11} parent=0
    _
  %s12 = ssub.s32 1, %s10
  %s13 = scalar_select 0, %s12, %s10
  // Predicated region
  $region2: #{_lambda_.11} parent=0 // pred_check
    _
  $region3: #{_lambda_.11} parent=0 // pred_check_branch
    %15 = sbr.rel (0) target = $region5
  $region4: #{_lambda_.11} parent=0 // pred_region
    _
  $region5: #{_lambda_.11} parent=0 // pred_fallthru
    _
  // Predicated region
  $region6: #{_lambda_.11} parent=0 // pred_check
    _
  $region7: #{_lambda_.11} parent=0 // pred_check_branch
    %17 = sbr.rel (0) target = $region9
  $region8: #{_lambda_.11} parent=0 // pred_region
    _
  $region9: #{_lambda_.11} parent=0 // pred_fallthru
    _
  // Predicated region
  $region10: #{_lambda_.11} parent=0 // pred_check
    _
  $region11: #{_lambda_.11} parent=0 // pred_check_branch
    %19 = sbr.rel (0) target = $region13
  $region12: #{_lambda_.11} parent=0 // pred_region
    _
  $region13: #{_lambda_.11} parent=0 // pred_fallthru
    _
  // Predicated region
  $region14: #{_lambda_.11} parent=0 // pred_check
    _
  $region15: #{_lambda_.11} parent=0 // pred_check_branch
    %21 = sbr.rel (0) target = $region17
  $region16: #{_lambda_.11} parent=0 // pred_region
    _
  $region17: #{_lambda_.11} parent=0 // pred_fallthru
    _
  // Predicated region
  $region18: #{_lambda_.11} parent=0 // pred_check
    _
  $region19: #{_lambda_.11} parent=0 // pred_check_branch
    %23 = sbr.rel (0) target = $region21
  $region20: #{_lambda_.11} parent=0 // pred_region
    _
  $region21: #{_lambda_.11} parent=0 // pred_fallthru
    _
  // Predicated region
  $region22: #{_lambda_.11} parent=0 // pred_check
    _
  $region23: #{_lambda_.11} parent=0 // pred_check_branch
    %25 = sbr.rel (0) target = $region25
  $region24: #{_lambda_.11} parent=0 // pred_region
    _
  $region25: #{_lambda_.11} parent=0 // pred_fallthru
    _
  // Predicated region
  $region26: #{_lambda_.11} parent=0 // pred_check
    _
  $region27: #{_lambda_.11} parent=0 // pred_check_branch
    %27 = sbr.rel (0) target = $region29
  $region28: #{_lambda_.11} parent=0 // pred_region
    _
  $region29: #{_lambda_.11} parent=0 // pred_fallthru
    _
  %v29 = vld [vmem:[%s1] sm:$0xf]
  %v30 = vld [vmem:[%s1 + $0x4] sm:$0xf]
  %v31 = vld [vmem:[%s1 + $0x8] sm:$0xf]
  %v32 = vld [vmem:[%s1 + $0xc] sm:$0xf]
  %v33 = vld [vmem:[%s1 + $0x10] sm:$0xf]
  %v34 = vld [vmem:[%s1 + $0x14] sm:$0xf]
  %v35 = vld [vmem:[%s1 + $0x18] sm:$0xf]
  %v36 = vld [vmem:[%s1 + $0x1c] sm:$0xf]
  %v37 = vld [vmem:[%s1 + $0x20] sm:$0xf]
  %v38 = vld [vmem:[%s1 + $0x24] sm:$0xf]
  %v39 = vld [vmem:[%s1 + $0x28] sm:$0xf]
  %v40 = vld [vmem:[%s1 + $0x2c] sm:$0xf]
  %v41 = vld [vmem:[%s1 + $0x30] sm:$0xf]
  %v42 = vld [vmem:[%s1 + $0x34] sm:$0xf]
  %v43 = vld [vmem:[%s1 + $0x38] sm:$0xf]
  %v44 = vld [vmem:[%s1 + $0x3c] sm:$0xf]
  %v45 = vld [vmem:[%s1 + $0x40] sm:$0xf]
  %v46 = vld [vmem:[%s1 + $0x44] sm:$0xf]
  %v47 = vld [vmem:[%s0] sm:$0xff]
  %v48 = vld [vmem:[%s0 + $0x8] sm:$0xff]
  %v49 = vld [vmem:[%s0 + $0x10] sm:$0xff]
  %v50 = vld [vmem:[%s0 + $0x18] sm:$0xff]
  %v55 = vunpack.c.l.b16 %v47
  %v56 = vunpack.c.h.b16 %v47
  %v57 = vunpack.c.l.b16 %v48
  %v58 = vunpack.c.h.b16 %v48
  %v59 = vunpack.c.l.b16 %v49
  %v60 = vunpack.c.h.b16 %v49
  %v61 = vunpack.c.l.b16 %v50
  %v62 = vunpack.c.h.b16 %v50
  %v63 = vpack.c.b16 %v57, %v55
  %v64 = vpack.c.b16 %v58, %v56
  %v65 = vpack.c.b16 %v61, %v59
  %v66 = vpack.c.b16 %v62, %v60
  %v87 = vunpack.c.l.b16 %v29
  %v88 = vunpack.c.l.b16 %v30
  %v89 = vunpack.c.l.b16 %v31
  %v90 = vunpack.c.l.b16 %v32
  %v91 = vunpack.c.l.b16 %v33
  %v92 = vunpack.c.l.b16 %v34
  %v93 = vunpack.c.l.b16 %v35
  %v94 = vunpack.c.l.b16 %v36
  %v95 = vunpack.c.l.b16 %v37
  %v96 = vunpack.c.l.b16 %v38
  %v97 = vunpack.c.l.b16 %v39
  %v98 = vunpack.c.l.b16 %v40
  %v99 = vunpack.c.l.b16 %v41
  %v100 = vunpack.c.l.b16 %v42
  %v101 = vunpack.c.l.b16 %v43
  %v102 = vunpack.c.l.b16 %v44
  %v103 = vunpack.c.l.b16 %v45
  %v104 = vunpack.c.l.b16 %v46
  %v105 = vpack.c.b16 %v88, %v87
  %v106 = vpack.c.b16 %v90, %v89
  %v107 = vpack.c.b16 %v92, %v91
  %v108 = vpack.c.b16 %v94, %v93
  %v109 = vpack.c.b16 %v96, %v95
  %v110 = vpack.c.b16 %v98, %v97
  %v111 = vpack.c.b16 %v100, %v99
  %v112 = vpack.c.b16 %v102, %v101
  %v113 = vpack.c.b16 %v104, %v103
  %vm123 = vcmask 130048
  %v125 = vsel %vm123, %v64, 0
  %v128 = vsel %vm123, %v66, 0
  %130 = vmatprep.subr.bf16.mxu0 0
  %131 = vmatpush1.bf16.msra.mxu0 %v112
  %132 = vmatprep.subr.bf16.mxu0 0
  %133 = vmatpush1.bf16.msra.mxu0 %v111
  %134 = vmatprep.subr.bf16.mxu0 0
  %135 = vmatpush1.bf16.msra.mxu0 %v110
  %136 = vmatprep.subr.bf16.mxu0 0
  %137 = vmatpush1.bf16.msra.mxu0 %v109
  %138 = vmatprep.subr.bf16.mxu0 0
  %139 = vmatpush1.bf16.msra.mxu0 %v108
  %140 = vmatprep.subr.bf16.mxu0 0
  %141 = vmatpush1.bf16.msra.mxu0 %v107
  %142 = vmatprep.subr.bf16.mxu0 0
  %143 = vmatpush1.bf16.msra.mxu0 %v106
  %144 = vmatprep.subr.bf16.mxu0 0
  %145 = vmatpush1.bf16.msra.mxu0 %v105
  %146 = vmatprep.subr.bf16.mxu0 0
  %147 = vmatpush2.bf16.msra.mxu0 0
  %148 = vmatprep.subr.bf16.mxu0 0
  %149 = vmatpush2.bf16.msra.mxu0 0
  %150 = vmatprep.subr.bf16.mxu0 0
  %151 = vmatpush2.bf16.msra.mxu0 0
  %152 = vmatprep.subr.bf16.mxu0 0
  %153 = vmatpush2.bf16.msra.mxu0 0
  %154 = vmatprep.subr.bf16.mxu0 0
  %155 = vmatpush2.bf16.msra.mxu0 0
  %156 = vmatprep.subr.bf16.mxu0 0
  %157 = vmatpush2.bf16.msra.mxu0 0
  %158 = vmatprep.subr.bf16.mxu0 0
  %159 = vmatpush2.bf16.msra.mxu0 0
  %160 = vmatprep.subr.bf16.mxu0 0
  %161 = vmatpush2.bf16.msra.mxu0 %v113
  %162 = vmatprep.mubr.bf16.mxu0 %v125
  %163 = vmatmul.mubr.bf16.gmra.mxu0 %v63
  %v164 = vpop.f32.mrf.mxu0
  %v165 = vadd.f32 0.0, %v164
  %v166 = vpop.f32.mrf.mxu0
  %v167 = vpop.f32.mrf.mxu0
  %v168 = vadd.f32 0.0, %v167
  %v169 = vpop.f32.mrf.mxu0
  %170 = vmatprep.mubr.bf16.mxu0 %v128
  %171 = vmatmul.mubr.bf16.gmra.mxu0 %v65
  %v172 = vpop.f32.mrf.mxu0
  %v173 = vadd.f32 0.0, %v172
  %v174 = vpop.f32.mrf.mxu0
  %v175 = vpop.f32.mrf.mxu0
  %v176 = vadd.f32 0.0, %v175
  %v177 = vpop.f32.mrf.mxu0
  %178 = vdwg.mxu0
  %v179 = vld [vmem:[%s2] sm:$0xff]
  %v180 = vld [vmem:[%s2 + $0x8] sm:$0xff]
  %v181 = vld [vmem:[%s2 + $0x10] sm:$0xff]
  %v182 = vld [vmem:[%s2 + $0x18] sm:$0xff]
  %184 = vset.pattern.permute.xlu0 0
  %185 = vperm.xlu0 %184, %v179
  %v186 = vpop.permute.xlu0 %185
  %189 = vset.pattern.permute.xlu0 0
  %190 = vperm.xlu0 %189, %v180
  %v191 = vpop.permute.xlu0 %190
  %194 = vset.pattern.permute.xlu0 0
  %195 = vperm.xlu0 %194, %v181
  %v196 = vpop.permute.xlu0 %195
  %199 = vset.pattern.permute.xlu0 0
  %200 = vperm.xlu0 %199, %v182
  %v201 = vpop.permute.xlu0 %200
  %v203 = vmul.f32 %v165, %v186
  %v204 = vmul.f32 %v168, %v191
  %v205 = vmul.f32 %v173, %v196
  %v206 = vmul.f32 %v176, %v201
  %v207 = vld [vmem:[%s3] sm:$0xff]
  %v208 = vld [vmem:[%s3 + $0x8] sm:$0xff]
  %v209 = vld [vmem:[%s3 + $0x10] sm:$0xff]
  %v210 = vld [vmem:[%s3 + $0x18] sm:$0xff]
  %212 = vset.pattern.permute.xlu0 0
  %213 = vperm.xlu0 %212, %v207
  %v214 = vpop.permute.xlu0 %213
  %217 = vset.pattern.permute.xlu0 0
  %218 = vperm.xlu0 %217, %v208
  %v219 = vpop.permute.xlu0 %218
  %222 = vset.pattern.permute.xlu0 0
  %223 = vperm.xlu0 %222, %v209
  %v224 = vpop.permute.xlu0 %223
  %227 = vset.pattern.permute.xlu0 0
  %228 = vperm.xlu0 %227, %v210
  %v229 = vpop.permute.xlu0 %228
  %v231 = vadd.f32 %v203, %v214
  %v232 = vadd.f32 %v204, %v219
  %v233 = vadd.f32 %v205, %v224
  %v234 = vadd.f32 %v206, %v229
  %v235 = vmax.f32 %v231, 0.0
  %v236 = vmax.f32 %v232, 0.0
  %v237 = vmax.f32 %v233, 0.0
  %v238 = vmax.f32 %v234, 0.0
  %239 = vst [vmem:[%s7] sm:$0xff] %v235
  %240 = vst [vmem:[%s7 + $0x8] sm:$0xff] %v236
  %241 = vst [vmem:[%s7 + $0x10] sm:$0xff] %v237
  %242 = vst [vmem:[%s7 + $0x18] sm:$0xff] %v238
  %v243 = vld [vmem:[%s4] sm:$0xf]
  %v244 = vld [vmem:[%s4 + $0x4] sm:$0xf]
  %v245 = vld [vmem:[%s4 + $0x8] sm:$0xf]
  %v246 = vld [vmem:[%s4 + $0xc] sm:$0xf]
  %v251 = vunpack.c.l.b16 %v243
  %v252 = vunpack.c.l.b16 %v244
  %v253 = vunpack.c.l.b16 %v245
  %v254 = vunpack.c.l.b16 %v246
  %v255 = vpack.c.b16 %v252, %v251
  %v256 = vpack.c.b16 %v254, %v253
  %v258 = vsel %vm123, %v255, 0
  %v261 = vsel %vm123, %v256, 0
  %263 = vmatprep.subr.bf16.mxu0 0
  %264 = vmatpush1.bf16.msra.mxu0 0
  %265 = vmatprep.subr.bf16.mxu0 0
  %266 = vmatpush1.bf16.msra.mxu0 0
  %267 = vmatprep.subr.bf16.mxu0 0
  %268 = vmatpush1.bf16.msra.mxu0 0
  %269 = vmatprep.subr.bf16.mxu0 0
  %270 = vmatpush1.bf16.msra.mxu0 0
  %271 = vmatprep.subr.bf16.mxu0 0
  %272 = vmatpush1.bf16.msra.mxu0 0
  %273 = vmatprep.subr.bf16.mxu0 0
  %274 = vmatpush1.bf16.msra.mxu0 0
  %275 = vmatprep.subr.bf16.mxu0 0
  %276 = vmatpush1.bf16.msra.mxu0 0
  %277 = vmatprep.subr.bf16.mxu0 0
  %278 = vmatpush1.bf16.msra.mxu0 %v109
  %279 = vmatprep.subr.bf16.mxu0 0
  %280 = vmatpush2.bf16.msra.mxu0 0
  %281 = vmatprep.subr.bf16.mxu0 0
  %282 = vmatpush2.bf16.msra.mxu0 0
  %283 = vmatprep.subr.bf16.mxu0 0
  %284 = vmatpush2.bf16.msra.mxu0 0
  %285 = vmatprep.subr.bf16.mxu0 0
  %286 = vmatpush2.bf16.msra.mxu0 0
  %287 = vmatprep.subr.bf16.mxu0 0
  %288 = vmatpush2.bf16.msra.mxu0 0
  %289 = vmatprep.subr.bf16.mxu0 0
  %290 = vmatpush2.bf16.msra.mxu0 0
  %291 = vmatprep.subr.bf16.mxu0 0
  %292 = vmatpush2.bf16.msra.mxu0 0
  %293 = vmatprep.subr.bf16.mxu0 0
  %294 = vmatpush2.bf16.msra.mxu0 0
  %295 = vmatprep.mubr.bf16.mxu0 0
  %296 = vmatmul.mubr.bf16.gmra.mxu0 %v258
  %v297 = vpop.f32.mrf.mxu0
  %v298 = vadd.f32 0.0, %v297
  %v299 = vpop.f32.mrf.mxu0
  %v300 = vpop.f32.mrf.mxu0
  %v301 = vadd.f32 0.0, %v300
  %v302 = vpop.f32.mrf.mxu0
  %303 = vmatprep.mubr.bf16.mxu0 0
  %304 = vmatmul.mubr.bf16.gmra.mxu0 %v261
  %v305 = vpop.f32.mrf.mxu0
  %v306 = vadd.f32 0.0, %v305
  %v307 = vpop.f32.mrf.mxu0
  %v308 = vpop.f32.mrf.mxu0
  %v309 = vadd.f32 0.0, %v308
  %v310 = vpop.f32.mrf.mxu0
  %311 = vdwg.mxu0
  %v312 = vld [vmem:[%s5] sm:$0xff]
  %v313 = vld [vmem:[%s5 + $0x8] sm:$0xff]
  %v314 = vld [vmem:[%s5 + $0x10] sm:$0xff]
  %v315 = vld [vmem:[%s5 + $0x18] sm:$0xff]
  %317 = vset.pattern.permute.xlu0 0
  %318 = vperm.xlu0 %317, %v312
  %v319 = vpop.permute.xlu0 %318
  %322 = vset.pattern.permute.xlu0 0
  %323 = vperm.xlu0 %322, %v313
  %v324 = vpop.permute.xlu0 %323
  %327 = vset.pattern.permute.xlu0 0
  %328 = vperm.xlu0 %327, %v314
  %v329 = vpop.permute.xlu0 %328
  %332 = vset.pattern.permute.xlu0 0
  %333 = vperm.xlu0 %332, %v315
  %v334 = vpop.permute.xlu0 %333
  %v336 = vmul.f32 %v298, %v319
  %v337 = vmul.f32 %v301, %v324
  %v338 = vmul.f32 %v306, %v329
  %v339 = vmul.f32 %v309, %v334
  %v340 = vld [vmem:[%s6] sm:$0xff]
  %v341 = vld [vmem:[%s6 + $0x8] sm:$0xff]
  %v342 = vld [vmem:[%s6 + $0x10] sm:$0xff]
  %v343 = vld [vmem:[%s6 + $0x18] sm:$0xff]
  %345 = vset.pattern.permute.xlu0 0
  %346 = vperm.xlu0 %345, %v340
  %v347 = vpop.permute.xlu0 %346
  %350 = vset.pattern.permute.xlu0 0
  %351 = vperm.xlu0 %350, %v341
  %v352 = vpop.permute.xlu0 %351
  %355 = vset.pattern.permute.xlu0 0
  %356 = vperm.xlu0 %355, %v342
  %v357 = vpop.permute.xlu0 %356
  %360 = vset.pattern.permute.xlu0 0
  %361 = vperm.xlu0 %360, %v343
  %v362 = vpop.permute.xlu0 %361
  %v364 = vadd.f32 %v336, %v347
  %v365 = vadd.f32 %v337, %v352
  %v366 = vadd.f32 %v338, %v357
  %v367 = vadd.f32 %v339, %v362
  %368 = vst [vmem:[%s8] sm:$0xff] %v364
  %369 = vst [vmem:[%s8 + $0x8] sm:$0xff] %v365
  %370 = vst [vmem:[%s8 + $0x10] sm:$0xff] %v366
  %371 = vst [vmem:[%s8 + $0x18] sm:$0xff] %v367
  // Predicated region
  $region30: #{_lambda_.11} parent=0 // pred_check
    _
  $region31: #{_lambda_.11} parent=0 // pred_check_branch
    %373 = sbr.rel (0) target = $region33
  $region32: #{_lambda_.11} parent=0 // pred_region
    _
  $region33: #{_lambda_.11} parent=0 // pred_fallthru
    _
  // Predicated region
  $region34: #{_lambda_.11} parent=0 // pred_check
    _
  $region35: #{_lambda_.11} parent=0 // pred_check_branch
    %375 = sbr.rel (0) target = $region37
  $region36: #{_lambda_.11} parent=0 // pred_region
    _
  $region37: #{_lambda_.11} parent=0 // pred_fallthru
    _
  // Predicated region
  $region38: #{_lambda_.11} parent=0 // pred_check
    _
  $region39: #{_lambda_.11} parent=0 // pred_check_branch
    %377 = sbr.rel (0) target = $region41
  $region40: #{_lambda_.11} parent=0 // pred_region
    _
  $region41: #{_lambda_.11} parent=0 // pred_fallthru
    _
  // Predicated region
  $region42: #{_lambda_.11} parent=0 // pred_check
    _
  $region43: #{_lambda_.11} parent=0 // pred_check_branch
    %379 = sbr.rel (0) target = $region45
  $region44: #{_lambda_.11} parent=0 // pred_region
    _
  $region45: #{_lambda_.11} parent=0 // pred_fallthru
    _

// kernel: _lambda_.12
$region0: #{_lambda_.12}
  #allocation0 [shape = 'u32[]', space=smem, size = 0x4, offset = 0x4, fixed_abs, tag = 'smem constant byte address 0x4 - core index']
  #allocation1 [shape = 'u32[144,128]{1,0:T(1,128)}', space=vmem, size = 0x12000, scoped, tag = 'internal scratch']
  %s0 = inlined_call_operand.vmem [shape: bf16[32,288], index: 0, kind: input, shape index: {}]
  %s1 = inlined_call_operand.vmem [shape: bf16[288,128], index: 1, kind: input, shape index: {}]
  %s2 = inlined_call_operand.vmem [shape: f32[32,1], index: 2, kind: input, shape index: {}]
  %s3 = inlined_call_operand.vmem [shape: f32[32,1], index: 3, kind: input, shape index: {}]
  %s4 = inlined_call_operand.vmem [shape: f32[32,128], index: 4, kind: input, shape index: {}]
  %s5 = inlined_call_operand.vmem [shape: f32[32,128], index: 5, kind: output, shape index: {}]
  %s6 = sld [smem:[#allocation0]]
  $region30: #{_lambda_.12} parent=0
    _
  %s8 = ssub.s32 1, %s6
  %s9 = scalar_select 0, %s8, %s6
  // Predicated region
  $region2: #{_lambda_.12} parent=0 // pred_check
    _
  $region3: #{_lambda_.12} parent=0 // pred_check_branch
    %11 = sbr.rel (0) target = $region5
  $region4: #{_lambda_.12} parent=0 // pred_region
    _
  $region5: #{_lambda_.12} parent=0 // pred_fallthru
    _
  // Predicated region
  $region6: #{_lambda_.12} parent=0 // pred_check
    _
  $region7: #{_lambda_.12} parent=0 // pred_check_branch
    %13 = sbr.rel (0) target = $region9
  $region8: #{_lambda_.12} parent=0 // pred_region
    _
  $region9: #{_lambda_.12} parent=0 // pred_fallthru
    _
  // Predicated region
  $region10: #{_lambda_.12} parent=0 // pred_check
    _
  $region11: #{_lambda_.12} parent=0 // pred_check_branch
    %15 = sbr.rel (0) target = $region13
  $region12: #{_lambda_.12} parent=0 // pred_region
    _
  $region13: #{_lambda_.12} parent=0 // pred_fallthru
    _
  // Predicated region
  $region14: #{_lambda_.12} parent=0 // pred_check
    _
  $region15: #{_lambda_.12} parent=0 // pred_check_branch
    %17 = sbr.rel (0) target = $region17
  $region16: #{_lambda_.12} parent=0 // pred_region
    _
  $region17: #{_lambda_.12} parent=0 // pred_fallthru
    _
  // Predicated region
  $region18: #{_lambda_.12} parent=0 // pred_check
    _
  $region19: #{_lambda_.12} parent=0 // pred_check_branch
    %19 = sbr.rel (0) target = $region21
  $region20: #{_lambda_.12} parent=0 // pred_region
    _
  $region21: #{_lambda_.12} parent=0 // pred_fallthru
    _
  %v21 = vld [vmem:[%s0] sm:$0xff]
  %v22 = vld [vmem:[%s0 + $0x8] sm:$0xf]
  %v23 = vld [vmem:[%s0 + $0xc] sm:$0xff]
  %v24 = vld [vmem:[%s0 + $0x14] sm:$0xf]
  %v25 = vld [vmem:[%s0 + $0x18] sm:$0xff]
  %v26 = vld [vmem:[%s0 + $0x20] sm:$0xf]
  %v27 = vld [vmem:[%s0 + $0x24] sm:$0xff]
  %v28 = vld [vmem:[%s0 + $0x2c] sm:$0xf]
  %v29 = vld [vmem:[%s1] sm:$0xf]
  %v30 = vld [vmem:[%s1 + $0x4] sm:$0xf]
  %v31 = vld [vmem:[%s1 + $0x8] sm:$0xf]
  %v32 = vld [vmem:[%s1 + $0xc] sm:$0xf]
  %v33 = vld [vmem:[%s1 + $0x10] sm:$0xf]
  %v34 = vld [vmem:[%s1 + $0x14] sm:$0xf]
  %v35 = vld [vmem:[%s1 + $0x18] sm:$0xf]
  %v36 = vld [vmem:[%s1 + $0x1c] sm:$0xf]
  %v37 = vld [vmem:[%s1 + $0x20] sm:$0xf]
  %v38 = vld [vmem:[%s1 + $0x24] sm:$0xf]
  %v39 = vld [vmem:[%s1 + $0x28] sm:$0xf]
  %v40 = vld [vmem:[%s1 + $0x2c] sm:$0xf]
  %v41 = vld [vmem:[%s1 + $0x30] sm:$0xf]
  %v42 = vld [vmem:[%s1 + $0x34] sm:$0xf]
  %v43 = vld [vmem:[%s1 + $0x38] sm:$0xf]
  %v44 = vld [vmem:[%s1 + $0x3c] sm:$0xf]
  %v45 = vld [vmem:[%s1 + $0x40] sm:$0xf]
  %v46 = vld [vmem:[%s1 + $0x44] sm:$0xf]
  %v47 = vld [vmem:[%s1 + $0x48] sm:$0xf]
  %v48 = vld [vmem:[%s1 + $0x4c] sm:$0xf]
  %v49 = vld [vmem:[%s1 + $0x50] sm:$0xf]
  %v50 = vld [vmem:[%s1 + $0x54] sm:$0xf]
  %v51 = vld [vmem:[%s1 + $0x58] sm:$0xf]
  %v52 = vld [vmem:[%s1 + $0x5c] sm:$0xf]
  %v53 = vld [vmem:[%s1 + $0x60] sm:$0xf]
  %v54 = vld [vmem:[%s1 + $0x64] sm:$0xf]
  %v55 = vld [vmem:[%s1 + $0x68] sm:$0xf]
  %v56 = vld [vmem:[%s1 + $0x6c] sm:$0xf]
  %v57 = vld [vmem:[%s1 + $0x70] sm:$0xf]
  %v58 = vld [vmem:[%s1 + $0x74] sm:$0xf]
  %v59 = vld [vmem:[%s1 + $0x78] sm:$0xf]
  %v60 = vld [vmem:[%s1 + $0x7c] sm:$0xf]
  %v61 = vld [vmem:[%s1 + $0x80] sm:$0xf]
  %v62 = vld [vmem:[%s1 + $0x84] sm:$0xf]
  %v63 = vld [vmem:[%s1 + $0x88] sm:$0xf]
  %v64 = vld [vmem:[%s1 + $0x8c] sm:$0xf]
  %v73 = vunpack.c.l.b16 %v21
  %v74 = vunpack.c.h.b16 %v21
  %v75 = vunpack.c.l.b16 %v22
  %v76 = vunpack.c.l.b16 %v23
  %v77 = vunpack.c.h.b16 %v23
  %v78 = vunpack.c.l.b16 %v24
  %v79 = vunpack.c.l.b16 %v25
  %v80 = vunpack.c.h.b16 %v25
  %v81 = vunpack.c.l.b16 %v26
  %v82 = vunpack.c.l.b16 %v27
  %v83 = vunpack.c.h.b16 %v27
  %v84 = vunpack.c.l.b16 %v28
  %v85 = vpack.c.b16 %v76, %v73
  %v86 = vpack.c.b16 %v77, %v74
  %v87 = vpack.c.b16 %v78, %v75
  %v88 = vpack.c.b16 %v82, %v79
  %v89 = vpack.c.b16 %v83, %v80
  %v90 = vpack.c.b16 %v84, %v81
  %v131 = vunpack.c.l.b16 %v29
  %v132 = vunpack.c.l.b16 %v30
  %v133 = vunpack.c.l.b16 %v31
  %v134 = vunpack.c.l.b16 %v32
  %v135 = vunpack.c.l.b16 %v33
  %v136 = vunpack.c.l.b16 %v34
  %v137 = vunpack.c.l.b16 %v35
  %v138 = vunpack.c.l.b16 %v36
  %v139 = vunpack.c.l.b16 %v37
  %v140 = vunpack.c.l.b16 %v38
  %v141 = vunpack.c.l.b16 %v39
  %v142 = vunpack.c.l.b16 %v40
  %v143 = vunpack.c.l.b16 %v41
  %v144 = vunpack.c.l.b16 %v42
  %v145 = vunpack.c.l.b16 %v43
  %v146 = vunpack.c.l.b16 %v44
  %v147 = vunpack.c.l.b16 %v45
  %v148 = vunpack.c.l.b16 %v46
  %v149 = vunpack.c.l.b16 %v47
  %v150 = vunpack.c.l.b16 %v48
  %v151 = vunpack.c.l.b16 %v49
  %v152 = vunpack.c.l.b16 %v50
  %v153 = vunpack.c.l.b16 %v51
  %v154 = vunpack.c.l.b16 %v52
  %v155 = vunpack.c.l.b16 %v53
  %v156 = vunpack.c.l.b16 %v54
  %v157 = vunpack.c.l.b16 %v55
  %v158 = vunpack.c.l.b16 %v56
  %v159 = vunpack.c.l.b16 %v57
  %v160 = vunpack.c.l.b16 %v58
  %v161 = vunpack.c.l.b16 %v59
  %v162 = vunpack.c.l.b16 %v60
  %v163 = vunpack.c.l.b16 %v61
  %v164 = vunpack.c.l.b16 %v62
  %v165 = vunpack.c.l.b16 %v63
  %v166 = vunpack.c.l.b16 %v64
  %v167 = vpack.c.b16 %v132, %v131
  %v168 = vpack.c.b16 %v134, %v133
  %v169 = vpack.c.b16 %v136, %v135
  %v170 = vpack.c.b16 %v138, %v137
  %v171 = vpack.c.b16 %v140, %v139
  %v172 = vpack.c.b16 %v142, %v141
  %v173 = vpack.c.b16 %v144, %v143
  %v174 = vpack.c.b16 %v146, %v145
  %v175 = vpack.c.b16 %v148, %v147
  %v176 = vpack.c.b16 %v150, %v149
  %v177 = vpack.c.b16 %v152, %v151
  %v178 = vpack.c.b16 %v154, %v153
  %v179 = vpack.c.b16 %v156, %v155
  %v180 = vpack.c.b16 %v158, %v157
  %v181 = vpack.c.b16 %v160, %v159
  %v182 = vpack.c.b16 %v162, %v161
  %v183 = vpack.c.b16 %v164, %v163
  %v184 = vpack.c.b16 %v166, %v165
  %vm203 = vcmask 261120
  %v205 = vsel %vm203, %v87, 0
  %v208 = vsel %vm203, %v90, 0
  %210 = vmatprep.subr.bf16.mxu0 0
  %211 = vmatpush1.bf16.msra.mxu0 %v174
  %212 = vmatprep.subr.bf16.mxu0 0
  %213 = vmatpush1.bf16.msra.mxu0 %v173
  %214 = vmatprep.subr.bf16.mxu0 0
  %215 = vmatpush1.bf16.msra.mxu0 %v172
  %216 = vmatprep.subr.bf16.mxu0 0
  %217 = vmatpush1.bf16.msra.mxu0 %v171
  %218 = vmatprep.subr.bf16.mxu0 0
  %219 = vmatpush1.bf16.msra.mxu0 %v170
  %220 = vmatprep.subr.bf16.mxu0 0
  %221 = vmatpush1.bf16.msra.mxu0 %v169
  %222 = vmatprep.subr.bf16.mxu0 0
  %223 = vmatpush1.bf16.msra.mxu0 %v168
  %224 = vmatprep.subr.bf16.mxu0 0
  %225 = vmatpush1.bf16.msra.mxu0 %v167
  %226 = vmatprep.subr.bf16.mxu0 0
  %227 = vmatpush2.bf16.msra.mxu0 %v182
  %228 = vmatprep.subr.bf16.mxu0 0
  %229 = vmatpush2.bf16.msra.mxu0 %v181
  %230 = vmatprep.subr.bf16.mxu0 0
  %231 = vmatpush2.bf16.msra.mxu0 %v180
  %232 = vmatprep.subr.bf16.mxu0 0
  %233 = vmatpush2.bf16.msra.mxu0 %v179
  %234 = vmatprep.subr.bf16.mxu0 0
  %235 = vmatpush2.bf16.msra.mxu0 %v178
  %236 = vmatprep.subr.bf16.mxu0 0
  %237 = vmatpush2.bf16.msra.mxu0 %v177
  %238 = vmatprep.subr.bf16.mxu0 0
  %239 = vmatpush2.bf16.msra.mxu0 %v176
  %240 = vmatprep.subr.bf16.mxu0 0
  %241 = vmatpush2.bf16.msra.mxu0 %v175
  %242 = vmatprep.mubr.bf16.mxu0 %v86
  %243 = vmatmul.mubr.bf16.gmra.mxu0 %v85
  %v244 = vpop.f32.mrf.mxu0
  %v245 = vadd.f32 0.0, %v244
  %v246 = vpop.f32.mrf.mxu0
  %v247 = vpop.f32.mrf.mxu0
  %v248 = vadd.f32 0.0, %v247
  %v249 = vpop.f32.mrf.mxu0
  %250 = vmatprep.mubr.bf16.mxu0 %v89
  %251 = vmatmul.mubr.bf16.gmra.mxu0 %v88
  %v252 = vpop.f32.mrf.mxu0
  %v253 = vadd.f32 0.0, %v252
  %v254 = vpop.f32.mrf.mxu0
  %v255 = vpop.f32.mrf.mxu0
  %v256 = vadd.f32 0.0, %v255
  %v257 = vpop.f32.mrf.mxu0
  %258 = vdwg.mxu0
  %259 = vmatprep.subr.bf16.mxu0 0
  %260 = vmatpush1.bf16.msra.mxu0 0
  %261 = vmatprep.subr.bf16.mxu0 0
  %262 = vmatpush1.bf16.msra.mxu0 0
  %263 = vmatprep.subr.bf16.mxu0 0
  %264 = vmatpush1.bf16.msra.mxu0 0
  %265 = vmatprep.subr.bf16.mxu0 0
  %266 = vmatpush1.bf16.msra.mxu0 0
  %267 = vmatprep.subr.bf16.mxu0 0
  %268 = vmatpush1.bf16.msra.mxu0 0
  %269 = vmatprep.subr.bf16.mxu0 0
  %270 = vmatpush1.bf16.msra.mxu0 0
  %271 = vmatprep.subr.bf16.mxu0 0
  %272 = vmatpush1.bf16.msra.mxu0 %v184
  %273 = vmatprep.subr.bf16.mxu0 0
  %274 = vmatpush1.bf16.msra.mxu0 %v183
  %275 = vmatprep.subr.bf16.mxu0 0
  %276 = vmatpush2.bf16.msra.mxu0 0
  %277 = vmatprep.subr.bf16.mxu0 0
  %278 = vmatpush2.bf16.msra.mxu0 0
  %279 = vmatprep.subr.bf16.mxu0 0
  %280 = vmatpush2.bf16.msra.mxu0 0
  %281 = vmatprep.subr.bf16.mxu0 0
  %282 = vmatpush2.bf16.msra.mxu0 0
  %283 = vmatprep.subr.bf16.mxu0 0
  %284 = vmatpush2.bf16.msra.mxu0 0
  %285 = vmatprep.subr.bf16.mxu0 0
  %286 = vmatpush2.bf16.msra.mxu0 0
  %287 = vmatprep.subr.bf16.mxu0 0
  %288 = vmatpush2.bf16.msra.mxu0 0
  %289 = vmatprep.subr.bf16.mxu0 0
  %290 = vmatpush2.bf16.msra.mxu0 0
  %291 = vmatprep.mubr.bf16.mxu0 0
  %292 = vmatmul.mubr.bf16.gmra.mxu0 %v205
  %v293 = vpop.f32.mrf.mxu0
  %v294 = vadd.f32 %v245, %v293
  %v295 = vpop.f32.mrf.mxu0
  %v296 = vpop.f32.mrf.mxu0
  %v297 = vadd.f32 %v248, %v296
  %v298 = vpop.f32.mrf.mxu0
  %299 = vmatprep.mubr.bf16.mxu0 0
  %300 = vmatmul.mubr.bf16.gmra.mxu0 %v208
  %v301 = vpop.f32.mrf.mxu0
  %v302 = vadd.f32 %v253, %v301
  %v303 = vpop.f32.mrf.mxu0
  %v304 = vpop.f32.mrf.mxu0
  %v305 = vadd.f32 %v256, %v304
  %v306 = vpop.f32.mrf.mxu0
  %307 = vdwg.mxu0
  %v308 = vld [vmem:[%s2] sm:$0xff]
  %v309 = vld [vmem:[%s2 + $0x8] sm:$0xff]
  %v310 = vld [vmem:[%s2 + $0x10] sm:$0xff]
  %v311 = vld [vmem:[%s2 + $0x18] sm:$0xff]
  %313 = vset.pattern.permute.xlu0 0
  %314 = vperm.xlu0 %313, %v308
  %v315 = vpop.permute.xlu0 %314
  %318 = vset.pattern.permute.xlu0 0
  %319 = vperm.xlu0 %318, %v309
  %v320 = vpop.permute.xlu0 %319
  %323 = vset.pattern.permute.xlu0 0
  %324 = vperm.xlu0 %323, %v310
  %v325 = vpop.permute.xlu0 %324
  %328 = vset.pattern.permute.xlu0 0
  %329 = vperm.xlu0 %328, %v311
  %v330 = vpop.permute.xlu0 %329
  %v332 = vmul.f32 %v294, %v315
  %v333 = vmul.f32 %v297, %v320
  %v334 = vmul.f32 %v302, %v325
  %v335 = vmul.f32 %v305, %v330
  %v336 = vld [vmem:[%s3] sm:$0xff]
  %v337 = vld [vmem:[%s3 + $0x8] sm:$0xff]
  %v338 = vld [vmem:[%s3 + $0x10] sm:$0xff]
  %v339 = vld [vmem:[%s3 + $0x18] sm:$0xff]
  %341 = vset.pattern.permute.xlu0 0
  %342 = vperm.xlu0 %341, %v336
  %v343 = vpop.permute.xlu0 %342
  %346 = vset.pattern.permute.xlu0 0
  %347 = vperm.xlu0 %346, %v337
  %v348 = vpop.permute.xlu0 %347
  %351 = vset.pattern.permute.xlu0 0
  %352 = vperm.xlu0 %351, %v338
  %v353 = vpop.permute.xlu0 %352
  %356 = vset.pattern.permute.xlu0 0
  %357 = vperm.xlu0 %356, %v339
  %v358 = vpop.permute.xlu0 %357
  %v360 = vadd.f32 %v332, %v343
  %v361 = vadd.f32 %v333, %v348
  %v362 = vadd.f32 %v334, %v353
  %v363 = vadd.f32 %v335, %v358
  %v364 = vld [vmem:[%s4] sm:$0xff]
  %v365 = vld [vmem:[%s4 + $0x8] sm:$0xff]
  %v366 = vld [vmem:[%s4 + $0x10] sm:$0xff]
  %v367 = vld [vmem:[%s4 + $0x18] sm:$0xff]
  %v368 = vadd.f32 %v360, %v364
  %v369 = vadd.f32 %v361, %v365
  %v370 = vadd.f32 %v362, %v366
  %v371 = vadd.f32 %v363, %v367
  %v372 = vmax.f32 %v368, 0.0
  %v373 = vmax.f32 %v369, 0.0
  %v374 = vmax.f32 %v370, 0.0
  %v375 = vmax.f32 %v371, 0.0
  %376 = vst [vmem:[%s5] sm:$0xff] %v372
  %377 = vst [vmem:[%s5 + $0x8] sm:$0xff] %v373
  %378 = vst [vmem:[%s5 + $0x10] sm:$0xff] %v374
  %379 = vst [vmem:[%s5 + $0x18] sm:$0xff] %v375
  // Predicated region
  $region22: #{_lambda_.12} parent=0 // pred_check
    _
  $region23: #{_lambda_.12} parent=0 // pred_check_branch
    %381 = sbr.rel (0) target = $region25
  $region24: #{_lambda_.12} parent=0 // pred_region
    _
  $region25: #{_lambda_.12} parent=0 // pred_fallthru
    _
  // Predicated region
  $region26: #{_lambda_.12} parent=0 // pred_check
    _
  $region27: #{_lambda_.12} parent=0 // pred_check_branch
    %383 = sbr.rel (0) target = $region29
  $region28: #{_lambda_.12} parent=0 // pred_region
    _
  $region29: #{_lambda_.12} parent=0 // pred_fallthru
    _

// kernel: _lambda_.13
$region0: #{_lambda_.13}
  #allocation0 [shape = 'u32[]', space=smem, size = 0x4, offset = 0x4, fixed_abs, tag = 'smem constant byte address 0x4 - core index']
  #allocation1 [shape = 'u32[144,128]{1,0:T(1,128)}', space=vmem, size = 0x12000, scoped, tag = 'internal scratch']
  %s0 = inlined_call_operand.vmem [shape: bf16[64,288], index: 0, kind: input, shape index: {}]
  %s1 = inlined_call_operand.vmem [shape: bf16[288,32], index: 1, kind: input, shape index: {}]
  %s2 = inlined_call_operand.vmem [shape: f32[64,1], index: 2, kind: input, shape index: {}, may-alias: {2,5}]
  %s3 = inlined_call_operand.vmem [shape: f32[64,1], index: 3, kind: input, shape index: {}, may-alias: {3,6}]
  %s4 = inlined_call_operand.vmem [shape: bf16[64,32], index: 4, kind: input, shape index: {}]
  %s5 = inlined_call_operand.vmem [shape: f32[64,1], index: 5, kind: input, shape index: {}, may-alias: {2,5}]
  %s6 = inlined_call_operand.vmem [shape: f32[64,1], index: 6, kind: input, shape index: {}, may-alias: {3,6}]
  %s7 = inlined_call_operand.vmem [shape: f32[64,32], index: 7, kind: output, shape index: {0}]
  %s8 = inlined_call_operand.vmem [shape: f32[64,32], index: 8, kind: output, shape index: {1}]
  %9 = xla_tuple %s7, %s8
  %s10 = sld [smem:[#allocation0]]
  $region46: #{_lambda_.13} parent=0
    _
  %s12 = ssub.s32 1, %s10
  %s13 = scalar_select 0, %s12, %s10
  // Predicated region
  $region2: #{_lambda_.13} parent=0 // pred_check
    _
  $region3: #{_lambda_.13} parent=0 // pred_check_branch
    %15 = sbr.rel (0) target = $region5
  $region4: #{_lambda_.13} parent=0 // pred_region
    _
  $region5: #{_lambda_.13} parent=0 // pred_fallthru
    _
  // Predicated region
  $region6: #{_lambda_.13} parent=0 // pred_check
    _
  $region7: #{_lambda_.13} parent=0 // pred_check_branch
    %17 = sbr.rel (0) target = $region9
  $region8: #{_lambda_.13} parent=0 // pred_region
    _
  $region9: #{_lambda_.13} parent=0 // pred_fallthru
    _
  // Predicated region
  $region10: #{_lambda_.13} parent=0 // pred_check
    _
  $region11: #{_lambda_.13} parent=0 // pred_check_branch
    %19 = sbr.rel (0) target = $region13
  $region12: #{_lambda_.13} parent=0 // pred_region
    _
  $region13: #{_lambda_.13} parent=0 // pred_fallthru
    _
  // Predicated region
  $region14: #{_lambda_.13} parent=0 // pred_check
    _
  $region15: #{_lambda_.13} parent=0 // pred_check_branch
    %21 = sbr.rel (0) target = $region17
  $region16: #{_lambda_.13} parent=0 // pred_region
    _
  $region17: #{_lambda_.13} parent=0 // pred_fallthru
    _
  // Predicated region
  $region18: #{_lambda_.13} parent=0 // pred_check
    _
  $region19: #{_lambda_.13} parent=0 // pred_check_branch
    %23 = sbr.rel (0) target = $region21
  $region20: #{_lambda_.13} parent=0 // pred_region
    _
  $region21: #{_lambda_.13} parent=0 // pred_fallthru
    _
  // Predicated region
  $region22: #{_lambda_.13} parent=0 // pred_check
    _
  $region23: #{_lambda_.13} parent=0 // pred_check_branch
    %25 = sbr.rel (0) target = $region25
  $region24: #{_lambda_.13} parent=0 // pred_region
    _
  $region25: #{_lambda_.13} parent=0 // pred_fallthru
    _
  // Predicated region
  $region26: #{_lambda_.13} parent=0 // pred_check
    _
  $region27: #{_lambda_.13} parent=0 // pred_check_branch
    %27 = sbr.rel (0) target = $region29
  $region28: #{_lambda_.13} parent=0 // pred_region
    _
  $region29: #{_lambda_.13} parent=0 // pred_fallthru
    _
  %v29 = vld [vmem:[%s1] sm:$0xf]
  %v30 = vld [vmem:[%s1 + $0x4] sm:$0xf]
  %v31 = vld [vmem:[%s1 + $0x8] sm:$0xf]
  %v32 = vld [vmem:[%s1 + $0xc] sm:$0xf]
  %v33 = vld [vmem:[%s1 + $0x10] sm:$0xf]
  %v34 = vld [vmem:[%s1 + $0x14] sm:$0xf]
  %v35 = vld [vmem:[%s1 + $0x18] sm:$0xf]
  %v36 = vld [vmem:[%s1 + $0x1c] sm:$0xf]
  %v37 = vld [vmem:[%s1 + $0x20] sm:$0xf]
  %v38 = vld [vmem:[%s1 + $0x24] sm:$0xf]
  %v39 = vld [vmem:[%s1 + $0x28] sm:$0xf]
  %v40 = vld [vmem:[%s1 + $0x2c] sm:$0xf]
  %v41 = vld [vmem:[%s1 + $0x30] sm:$0xf]
  %v42 = vld [vmem:[%s1 + $0x34] sm:$0xf]
  %v43 = vld [vmem:[%s1 + $0x38] sm:$0xf]
  %v44 = vld [vmem:[%s1 + $0x3c] sm:$0xf]
  %v45 = vld [vmem:[%s1 + $0x40] sm:$0xf]
  %v46 = vld [vmem:[%s1 + $0x44] sm:$0xf]
  %v47 = vld [vmem:[%s1 + $0x48] sm:$0xf]
  %v48 = vld [vmem:[%s1 + $0x4c] sm:$0xf]
  %v49 = vld [vmem:[%s1 + $0x50] sm:$0xf]
  %v50 = vld [vmem:[%s1 + $0x54] sm:$0xf]
  %v51 = vld [vmem:[%s1 + $0x58] sm:$0xf]
  %v52 = vld [vmem:[%s1 + $0x5c] sm:$0xf]
  %v53 = vld [vmem:[%s1 + $0x60] sm:$0xf]
  %v54 = vld [vmem:[%s1 + $0x64] sm:$0xf]
  %v55 = vld [vmem:[%s1 + $0x68] sm:$0xf]
  %v56 = vld [vmem:[%s1 + $0x6c] sm:$0xf]
  %v57 = vld [vmem:[%s1 + $0x70] sm:$0xf]
  %v58 = vld [vmem:[%s1 + $0x74] sm:$0xf]
  %v59 = vld [vmem:[%s1 + $0x78] sm:$0xf]
  %v60 = vld [vmem:[%s1 + $0x7c] sm:$0xf]
  %v61 = vld [vmem:[%s1 + $0x80] sm:$0xf]
  %v62 = vld [vmem:[%s1 + $0x84] sm:$0xf]
  %v63 = vld [vmem:[%s1 + $0x88] sm:$0xf]
  %v64 = vld [vmem:[%s1 + $0x8c] sm:$0xf]
  %v65 = vld [vmem:[%s0] sm:$0xff]
  %v66 = vld [vmem:[%s0 + $0x8] sm:$0xf]
  %v67 = vld [vmem:[%s0 + $0xc] sm:$0xff]
  %v68 = vld [vmem:[%s0 + $0x14] sm:$0xf]
  %v69 = vld [vmem:[%s0 + $0x18] sm:$0xff]
  %v70 = vld [vmem:[%s0 + $0x20] sm:$0xf]
  %v71 = vld [vmem:[%s0 + $0x24] sm:$0xff]
  %v72 = vld [vmem:[%s0 + $0x2c] sm:$0xf]
  %v73 = vld [vmem:[%s0 + $0x30] sm:$0xff]
  %v74 = vld [vmem:[%s0 + $0x38] sm:$0xf]
  %v75 = vld [vmem:[%s0 + $0x3c] sm:$0xff]
  %v76 = vld [vmem:[%s0 + $0x44] sm:$0xf]
  %v77 = vld [vmem:[%s0 + $0x48] sm:$0xff]
  %v78 = vld [vmem:[%s0 + $0x50] sm:$0xf]
  %v79 = vld [vmem:[%s0 + $0x54] sm:$0xff]
  %v80 = vld [vmem:[%s0 + $0x5c] sm:$0xf]
  %v97 = vunpack.c.l.b16 %v65
  %v98 = vunpack.c.h.b16 %v65
  %v99 = vunpack.c.l.b16 %v66
  %v100 = vunpack.c.l.b16 %v67
  %v101 = vunpack.c.h.b16 %v67
  %v102 = vunpack.c.l.b16 %v68
  %v103 = vunpack.c.l.b16 %v69
  %v104 = vunpack.c.h.b16 %v69
  %v105 = vunpack.c.l.b16 %v70
  %v106 = vunpack.c.l.b16 %v71
  %v107 = vunpack.c.h.b16 %v71
  %v108 = vunpack.c.l.b16 %v72
  %v109 = vunpack.c.l.b16 %v73
  %v110 = vunpack.c.h.b16 %v73
  %v111 = vunpack.c.l.b16 %v74
  %v112 = vunpack.c.l.b16 %v75
  %v113 = vunpack.c.h.b16 %v75
  %v114 = vunpack.c.l.b16 %v76
  %v115 = vunpack.c.l.b16 %v77
  %v116 = vunpack.c.h.b16 %v77
  %v117 = vunpack.c.l.b16 %v78
  %v118 = vunpack.c.l.b16 %v79
  %v119 = vunpack.c.h.b16 %v79
  %v120 = vunpack.c.l.b16 %v80
  %v121 = vpack.c.b16 %v100, %v97
  %v122 = vpack.c.b16 %v101, %v98
  %v123 = vpack.c.b16 %v102, %v99
  %v124 = vpack.c.b16 %v106, %v103
  %v125 = vpack.c.b16 %v107, %v104
  %v126 = vpack.c.b16 %v108, %v105
  %v127 = vpack.c.b16 %v112, %v109
  %v128 = vpack.c.b16 %v113, %v110
  %v129 = vpack.c.b16 %v114, %v111
  %v130 = vpack.c.b16 %v118, %v115
  %v131 = vpack.c.b16 %v119, %v116
  %v132 = vpack.c.b16 %v120, %v117
  %v177 = vunpack.c.l.b16 %v29
  %v178 = vunpack.c.l.b16 %v30
  %v179 = vunpack.c.l.b16 %v31
  %v180 = vunpack.c.l.b16 %v32
  %v181 = vunpack.c.l.b16 %v33
  %v182 = vunpack.c.l.b16 %v34
  %v183 = vunpack.c.l.b16 %v35
  %v184 = vunpack.c.l.b16 %v36
  %v185 = vunpack.c.l.b16 %v37
  %v186 = vunpack.c.l.b16 %v38
  %v187 = vunpack.c.l.b16 %v39
  %v188 = vunpack.c.l.b16 %v40
  %v189 = vunpack.c.l.b16 %v41
  %v190 = vunpack.c.l.b16 %v42
  %v191 = vunpack.c.l.b16 %v43
  %v192 = vunpack.c.l.b16 %v44
  %v193 = vunpack.c.l.b16 %v45
  %v194 = vunpack.c.l.b16 %v46
  %v195 = vunpack.c.l.b16 %v47
  %v196 = vunpack.c.l.b16 %v48
  %v197 = vunpack.c.l.b16 %v49
  %v198 = vunpack.c.l.b16 %v50
  %v199 = vunpack.c.l.b16 %v51
  %v200 = vunpack.c.l.b16 %v52
  %v201 = vunpack.c.l.b16 %v53
  %v202 = vunpack.c.l.b16 %v54
  %v203 = vunpack.c.l.b16 %v55
  %v204 = vunpack.c.l.b16 %v56
  %v205 = vunpack.c.l.b16 %v57
  %v206 = vunpack.c.l.b16 %v58
  %v207 = vunpack.c.l.b16 %v59
  %v208 = vunpack.c.l.b16 %v60
  %v209 = vunpack.c.l.b16 %v61
  %v210 = vunpack.c.l.b16 %v62
  %v211 = vunpack.c.l.b16 %v63
  %v212 = vunpack.c.l.b16 %v64
  %v213 = vpack.c.b16 %v178, %v177
  %v214 = vpack.c.b16 %v180, %v179
  %v215 = vpack.c.b16 %v182, %v181
  %v216 = vpack.c.b16 %v184, %v183
  %v217 = vpack.c.b16 %v186, %v185
  %v218 = vpack.c.b16 %v188, %v187
  %v219 = vpack.c.b16 %v190, %v189
  %v220 = vpack.c.b16 %v192, %v191
  %v221 = vpack.c.b16 %v194, %v193
  %v222 = vpack.c.b16 %v196, %v195
  %v223 = vpack.c.b16 %v198, %v197
  %v224 = vpack.c.b16 %v200, %v199
  %v225 = vpack.c.b16 %v202, %v201
  %v226 = vpack.c.b16 %v204, %v203
  %v227 = vpack.c.b16 %v206, %v205
  %v228 = vpack.c.b16 %v208, %v207
  %v229 = vpack.c.b16 %v210, %v209
  %v230 = vpack.c.b16 %v212, %v211
  %vm249 = vcmask 261120
  %v251 = vsel %vm249, %v123, 0
  %v254 = vsel %vm249, %v126, 0
  %v257 = vsel %vm249, %v129, 0
  %v260 = vsel %vm249, %v132, 0
  %262 = vmatprep.subr.bf16.mxu0 0
  %263 = vmatpush1.bf16.msra.mxu0 %v220
  %264 = vmatprep.subr.bf16.mxu0 0
  %265 = vmatpush1.bf16.msra.mxu0 %v219
  %266 = vmatprep.subr.bf16.mxu0 0
  %267 = vmatpush1.bf16.msra.mxu0 %v218
  %268 = vmatprep.subr.bf16.mxu0 0
  %269 = vmatpush1.bf16.msra.mxu0 %v217
  %270 = vmatprep.subr.bf16.mxu0 0
  %271 = vmatpush1.bf16.msra.mxu0 %v216
  %272 = vmatprep.subr.bf16.mxu0 0
  %273 = vmatpush1.bf16.msra.mxu0 %v215
  %274 = vmatprep.subr.bf16.mxu0 0
  %275 = vmatpush1.bf16.msra.mxu0 %v214
  %276 = vmatprep.subr.bf16.mxu0 0
  %277 = vmatpush1.bf16.msra.mxu0 %v213
  %278 = vmatprep.subr.bf16.mxu0 0
  %279 = vmatpush2.bf16.msra.mxu0 %v228
  %280 = vmatprep.subr.bf16.mxu0 0
  %281 = vmatpush2.bf16.msra.mxu0 %v227
  %282 = vmatprep.subr.bf16.mxu0 0
  %283 = vmatpush2.bf16.msra.mxu0 %v226
  %284 = vmatprep.subr.bf16.mxu0 0
  %285 = vmatpush2.bf16.msra.mxu0 %v225
  %286 = vmatprep.subr.bf16.mxu0 0
  %287 = vmatpush2.bf16.msra.mxu0 %v224
  %288 = vmatprep.subr.bf16.mxu0 0
  %289 = vmatpush2.bf16.msra.mxu0 %v223
  %290 = vmatprep.subr.bf16.mxu0 0
  %291 = vmatpush2.bf16.msra.mxu0 %v222
  %292 = vmatprep.subr.bf16.mxu0 0
  %293 = vmatpush2.bf16.msra.mxu0 %v221
  %294 = vmatprep.mubr.bf16.mxu0 %v122
  %295 = vmatmul.mubr.bf16.gmra.mxu0 %v121
  %v296 = vpop.f32.mrf.mxu0
  %v297 = vadd.f32 0.0, %v296
  %v298 = vpop.f32.mrf.mxu0
  %v299 = vpop.f32.mrf.mxu0
  %v300 = vadd.f32 0.0, %v299
  %v301 = vpop.f32.mrf.mxu0
  %302 = vmatprep.mubr.bf16.mxu0 %v125
  %303 = vmatmul.mubr.bf16.gmra.mxu0 %v124
  %v304 = vpop.f32.mrf.mxu0
  %v305 = vadd.f32 0.0, %v304
  %v306 = vpop.f32.mrf.mxu0
  %v307 = vpop.f32.mrf.mxu0
  %v308 = vadd.f32 0.0, %v307
  %v309 = vpop.f32.mrf.mxu0
  %310 = vmatprep.mubr.bf16.mxu0 %v128
  %311 = vmatmul.mubr.bf16.gmra.mxu0 %v127
  %v312 = vpop.f32.mrf.mxu0
  %v313 = vadd.f32 0.0, %v312
  %v314 = vpop.f32.mrf.mxu0
  %v315 = vpop.f32.mrf.mxu0
  %v316 = vadd.f32 0.0, %v315
  %v317 = vpop.f32.mrf.mxu0
  %318 = vmatprep.mubr.bf16.mxu0 %v131
  %319 = vmatmul.mubr.bf16.gmra.mxu0 %v130
  %v320 = vpop.f32.mrf.mxu0
  %v321 = vadd.f32 0.0, %v320
  %v322 = vpop.f32.mrf.mxu0
  %v323 = vpop.f32.mrf.mxu0
  %v324 = vadd.f32 0.0, %v323
  %v325 = vpop.f32.mrf.mxu0
  %326 = vdwg.mxu0
  %327 = vmatprep.subr.bf16.mxu0 0
  %328 = vmatpush1.bf16.msra.mxu0 0
  %329 = vmatprep.subr.bf16.mxu0 0
  %330 = vmatpush1.bf16.msra.mxu0 0
  %331 = vmatprep.subr.bf16.mxu0 0
  %332 = vmatpush1.bf16.msra.mxu0 0
  %333 = vmatprep.subr.bf16.mxu0 0
  %334 = vmatpush1.bf16.msra.mxu0 0
  %335 = vmatprep.subr.bf16.mxu0 0
  %336 = vmatpush1.bf16.msra.mxu0 0
  %337 = vmatprep.subr.bf16.mxu0 0
  %338 = vmatpush1.bf16.msra.mxu0 0
  %339 = vmatprep.subr.bf16.mxu0 0
  %340 = vmatpush1.bf16.msra.mxu0 %v230
  %341 = vmatprep.subr.bf16.mxu0 0
  %342 = vmatpush1.bf16.msra.mxu0 %v229
  %343 = vmatprep.subr.bf16.mxu0 0
  %344 = vmatpush2.bf16.msra.mxu0 0
  %345 = vmatprep.subr.bf16.mxu0 0
  %346 = vmatpush2.bf16.msra.mxu0 0
  %347 = vmatprep.subr.bf16.mxu0 0
  %348 = vmatpush2.bf16.msra.mxu0 0
  %349 = vmatprep.subr.bf16.mxu0 0
  %350 = vmatpush2.bf16.msra.mxu0 0
  %351 = vmatprep.subr.bf16.mxu0 0
  %352 = vmatpush2.bf16.msra.mxu0 0
  %353 = vmatprep.subr.bf16.mxu0 0
  %354 = vmatpush2.bf16.msra.mxu0 0
  %355 = vmatprep.subr.bf16.mxu0 0
  %356 = vmatpush2.bf16.msra.mxu0 0
  %357 = vmatprep.subr.bf16.mxu0 0
  %358 = vmatpush2.bf16.msra.mxu0 0
  %359 = vmatprep.mubr.bf16.mxu0 0
  %360 = vmatmul.mubr.bf16.gmra.mxu0 %v251
  %v361 = vpop.f32.mrf.mxu0
  %v362 = vadd.f32 %v297, %v361
  %v363 = vpop.f32.mrf.mxu0
  %v364 = vpop.f32.mrf.mxu0
  %v365 = vadd.f32 %v300, %v364
  %v366 = vpop.f32.mrf.mxu0
  %367 = vmatprep.mubr.bf16.mxu0 0
  %368 = vmatmul.mubr.bf16.gmra.mxu0 %v254
  %v369 = vpop.f32.mrf.mxu0
  %v370 = vadd.f32 %v305, %v369
  %v371 = vpop.f32.mrf.mxu0
  %v372 = vpop.f32.mrf.mxu0
  %v373 = vadd.f32 %v308, %v372
  %v374 = vpop.f32.mrf.mxu0
  %375 = vmatprep.mubr.bf16.mxu0 0
  %376 = vmatmul.mubr.bf16.gmra.mxu0 %v257
  %v377 = vpop.f32.mrf.mxu0
  %v378 = vadd.f32 %v313, %v377
  %v379 = vpop.f32.mrf.mxu0
  %v380 = vpop.f32.mrf.mxu0
  %v381 = vadd.f32 %v316, %v380
  %v382 = vpop.f32.mrf.mxu0
  %383 = vmatprep.mubr.bf16.mxu0 0
  %384 = vmatmul.mubr.bf16.gmra.mxu0 %v260
  %v385 = vpop.f32.mrf.mxu0
  %v386 = vadd.f32 %v321, %v385
  %v387 = vpop.f32.mrf.mxu0
  %v388 = vpop.f32.mrf.mxu0
  %v389 = vadd.f32 %v324, %v388
  %v390 = vpop.f32.mrf.mxu0
  %391 = vdwg.mxu0
  %v392 = vld [vmem:[%s2] sm:$0xff]
  %v393 = vld [vmem:[%s2 + $0x8] sm:$0xff]
  %v394 = vld [vmem:[%s2 + $0x10] sm:$0xff]
  %v395 = vld [vmem:[%s2 + $0x18] sm:$0xff]
  %v396 = vld [vmem:[%s2 + $0x20] sm:$0xff]
  %v397 = vld [vmem:[%s2 + $0x28] sm:$0xff]
  %v398 = vld [vmem:[%s2 + $0x30] sm:$0xff]
  %v399 = vld [vmem:[%s2 + $0x38] sm:$0xff]
  %401 = vset.pattern.permute.xlu0 0
  %402 = vperm.xlu0 %401, %v392
  %v403 = vpop.permute.xlu0 %402
  %406 = vset.pattern.permute.xlu0 0
  %407 = vperm.xlu0 %406, %v393
  %v408 = vpop.permute.xlu0 %407
  %411 = vset.pattern.permute.xlu0 0
  %412 = vperm.xlu0 %411, %v394
  %v413 = vpop.permute.xlu0 %412
  %416 = vset.pattern.permute.xlu0 0
  %417 = vperm.xlu0 %416, %v395
  %v418 = vpop.permute.xlu0 %417
  %421 = vset.pattern.permute.xlu0 0
  %422 = vperm.xlu0 %421, %v396
  %v423 = vpop.permute.xlu0 %422
  %426 = vset.pattern.permute.xlu0 0
  %427 = vperm.xlu0 %426, %v397
  %v428 = vpop.permute.xlu0 %427
  %431 = vset.pattern.permute.xlu0 0
  %432 = vperm.xlu0 %431, %v398
  %v433 = vpop.permute.xlu0 %432
  %436 = vset.pattern.permute.xlu0 0
  %437 = vperm.xlu0 %436, %v399
  %v438 = vpop.permute.xlu0 %437
  %v440 = vmul.f32 %v362, %v403
  %v441 = vmul.f32 %v365, %v408
  %v442 = vmul.f32 %v370, %v413
  %v443 = vmul.f32 %v373, %v418
  %v444 = vmul.f32 %v378, %v423
  %v445 = vmul.f32 %v381, %v428
  %v446 = vmul.f32 %v386, %v433
  %v447 = vmul.f32 %v389, %v438
  %v448 = vld [vmem:[%s3] sm:$0xff]
  %v449 = vld [vmem:[%s3 + $0x8] sm:$0xff]
  %v450 = vld [vmem:[%s3 + $0x10] sm:$0xff]
  %v451 = vld [vmem:[%s3 + $0x18] sm:$0xff]
  %v452 = vld [vmem:[%s3 + $0x20] sm:$0xff]
  %v453 = vld [vmem:[%s3 + $0x28] sm:$0xff]
  %v454 = vld [vmem:[%s3 + $0x30] sm:$0xff]
  %v455 = vld [vmem:[%s3 + $0x38] sm:$0xff]
  %457 = vset.pattern.permute.xlu0 0
  %458 = vperm.xlu0 %457, %v448
  %v459 = vpop.permute.xlu0 %458
  %462 = vset.pattern.permute.xlu0 0
  %463 = vperm.xlu0 %462, %v449
  %v464 = vpop.permute.xlu0 %463
  %467 = vset.pattern.permute.xlu0 0
  %468 = vperm.xlu0 %467, %v450
  %v469 = vpop.permute.xlu0 %468
  %472 = vset.pattern.permute.xlu0 0
  %473 = vperm.xlu0 %472, %v451
  %v474 = vpop.permute.xlu0 %473
  %477 = vset.pattern.permute.xlu0 0
  %478 = vperm.xlu0 %477, %v452
  %v479 = vpop.permute.xlu0 %478
  %482 = vset.pattern.permute.xlu0 0
  %483 = vperm.xlu0 %482, %v453
  %v484 = vpop.permute.xlu0 %483
  %487 = vset.pattern.permute.xlu0 0
  %488 = vperm.xlu0 %487, %v454
  %v489 = vpop.permute.xlu0 %488
  %492 = vset.pattern.permute.xlu0 0
  %493 = vperm.xlu0 %492, %v455
  %v494 = vpop.permute.xlu0 %493
  %v496 = vadd.f32 %v440, %v459
  %v497 = vadd.f32 %v441, %v464
  %v498 = vadd.f32 %v442, %v469
  %v499 = vadd.f32 %v443, %v474
  %v500 = vadd.f32 %v444, %v479
  %v501 = vadd.f32 %v445, %v484
  %v502 = vadd.f32 %v446, %v489
  %v503 = vadd.f32 %v447, %v494
  %v504 = vmax.f32 %v496, 0.0
  %v505 = vmax.f32 %v497, 0.0
  %v506 = vmax.f32 %v498, 0.0
  %v507 = vmax.f32 %v499, 0.0
  %v508 = vmax.f32 %v500, 0.0
  %v509 = vmax.f32 %v501, 0.0
  %v510 = vmax.f32 %v502, 0.0
  %v511 = vmax.f32 %v503, 0.0
  %512 = vst.msk [vmem:[%s7] sm:$0xff] %vm249, %v504
  %513 = vst.msk [vmem:[%s7 + $0x8] sm:$0xff] %vm249, %v505
  %514 = vst.msk [vmem:[%s7 + $0x10] sm:$0xff] %vm249, %v506
  %515 = vst.msk [vmem:[%s7 + $0x18] sm:$0xff] %vm249, %v507
  %516 = vst.msk [vmem:[%s7 + $0x20] sm:$0xff] %vm249, %v508
  %517 = vst.msk [vmem:[%s7 + $0x28] sm:$0xff] %vm249, %v509
  %518 = vst.msk [vmem:[%s7 + $0x30] sm:$0xff] %vm249, %v510
  %519 = vst.msk [vmem:[%s7 + $0x38] sm:$0xff] %vm249, %v511
  %v520 = vld [vmem:[%s4] sm:$0xf]
  %v521 = vld [vmem:[%s4 + $0x4] sm:$0xf]
  %v522 = vld [vmem:[%s4 + $0x8] sm:$0xf]
  %v523 = vld [vmem:[%s4 + $0xc] sm:$0xf]
  %v524 = vld [vmem:[%s4 + $0x10] sm:$0xf]
  %v525 = vld [vmem:[%s4 + $0x14] sm:$0xf]
  %v526 = vld [vmem:[%s4 + $0x18] sm:$0xf]
  %v527 = vld [vmem:[%s4 + $0x1c] sm:$0xf]
  %v536 = vunpack.c.l.b16 %v520
  %v537 = vunpack.c.l.b16 %v521
  %v538 = vunpack.c.l.b16 %v522
  %v539 = vunpack.c.l.b16 %v523
  %v540 = vunpack.c.l.b16 %v524
  %v541 = vunpack.c.l.b16 %v525
  %v542 = vunpack.c.l.b16 %v526
  %v543 = vunpack.c.l.b16 %v527
  %v544 = vpack.c.b16 %v537, %v536
  %v545 = vpack.c.b16 %v539, %v538
  %v546 = vpack.c.b16 %v541, %v540
  %v547 = vpack.c.b16 %v543, %v542
  %v549 = vsel %vm249, %v544, 0
  %v552 = vsel %vm249, %v545, 0
  %v555 = vsel %vm249, %v546, 0
  %v558 = vsel %vm249, %v547, 0
  %560 = vmatprep.subr.bf16.mxu0 0
  %561 = vmatpush1.bf16.msra.mxu0 0
  %562 = vmatprep.subr.bf16.mxu0 0
  %563 = vmatpush1.bf16.msra.mxu0 0
  %564 = vmatprep.subr.bf16.mxu0 0
  %565 = vmatpush1.bf16.msra.mxu0 0
  %566 = vmatprep.subr.bf16.mxu0 0
  %567 = vmatpush1.bf16.msra.mxu0 0
  %568 = vmatprep.subr.bf16.mxu0 0
  %569 = vmatpush1.bf16.msra.mxu0 0
  %570 = vmatprep.subr.bf16.mxu0 0
  %571 = vmatpush1.bf16.msra.mxu0 0
  %572 = vmatprep.subr.bf16.mxu0 0
  %573 = vmatpush1.bf16.msra.mxu0 %v222
  %574 = vmatprep.subr.bf16.mxu0 0
  %575 = vmatpush1.bf16.msra.mxu0 %v221
  %576 = vmatprep.subr.bf16.mxu0 0
  %577 = vmatpush2.bf16.msra.mxu0 0
  %578 = vmatprep.subr.bf16.mxu0 0
  %579 = vmatpush2.bf16.msra.mxu0 0
  %580 = vmatprep.subr.bf16.mxu0 0
  %581 = vmatpush2.bf16.msra.mxu0 0
  %582 = vmatprep.subr.bf16.mxu0 0
  %583 = vmatpush2.bf16.msra.mxu0 0
  %584 = vmatprep.subr.bf16.mxu0 0
  %585 = vmatpush2.bf16.msra.mxu0 0
  %586 = vmatprep.subr.bf16.mxu0 0
  %587 = vmatpush2.bf16.msra.mxu0 0
  %588 = vmatprep.subr.bf16.mxu0 0
  %589 = vmatpush2.bf16.msra.mxu0 0
  %590 = vmatprep.subr.bf16.mxu0 0
  %591 = vmatpush2.bf16.msra.mxu0 0
  %592 = vmatprep.mubr.bf16.mxu0 0
  %593 = vmatmul.mubr.bf16.gmra.mxu0 %v549
  %v594 = vpop.f32.mrf.mxu0
  %v595 = vadd.f32 0.0, %v594
  %v596 = vpop.f32.mrf.mxu0
  %v597 = vpop.f32.mrf.mxu0
  %v598 = vadd.f32 0.0, %v597
  %v599 = vpop.f32.mrf.mxu0
  %600 = vmatprep.mubr.bf16.mxu0 0
  %601 = vmatmul.mubr.bf16.gmra.mxu0 %v552
  %v602 = vpop.f32.mrf.mxu0
  %v603 = vadd.f32 0.0, %v602
  %v604 = vpop.f32.mrf.mxu0
  %v605 = vpop.f32.mrf.mxu0
  %v606 = vadd.f32 0.0, %v605
  %v607 = vpop.f32.mrf.mxu0
  %608 = vmatprep.mubr.bf16.mxu0 0
  %609 = vmatmul.mubr.bf16.gmra.mxu0 %v555
  %v610 = vpop.f32.mrf.mxu0
  %v611 = vadd.f32 0.0, %v610
  %v612 = vpop.f32.mrf.mxu0
  %v613 = vpop.f32.mrf.mxu0
  %v614 = vadd.f32 0.0, %v613
  %v615 = vpop.f32.mrf.mxu0
  %616 = vmatprep.mubr.bf16.mxu0 0
  %617 = vmatmul.mubr.bf16.gmra.mxu0 %v558
  %v618 = vpop.f32.mrf.mxu0
  %v619 = vadd.f32 0.0, %v618
  %v620 = vpop.f32.mrf.mxu0
  %v621 = vpop.f32.mrf.mxu0
  %v622 = vadd.f32 0.0, %v621
  %v623 = vpop.f32.mrf.mxu0
  %624 = vdwg.mxu0
  %v625 = vld [vmem:[%s5] sm:$0xff]
  %v626 = vld [vmem:[%s5 + $0x8] sm:$0xff]
  %v627 = vld [vmem:[%s5 + $0x10] sm:$0xff]
  %v628 = vld [vmem:[%s5 + $0x18] sm:$0xff]
  %v629 = vld [vmem:[%s5 + $0x20] sm:$0xff]
  %v630 = vld [vmem:[%s5 + $0x28] sm:$0xff]
  %v631 = vld [vmem:[%s5 + $0x30] sm:$0xff]
  %v632 = vld [vmem:[%s5 + $0x38] sm:$0xff]
  %634 = vset.pattern.permute.xlu0 0
  %635 = vperm.xlu0 %634, %v625
  %v636 = vpop.permute.xlu0 %635
  %639 = vset.pattern.permute.xlu0 0
  %640 = vperm.xlu0 %639, %v626
  %v641 = vpop.permute.xlu0 %640
  %644 = vset.pattern.permute.xlu0 0
  %645 = vperm.xlu0 %644, %v627
  %v646 = vpop.permute.xlu0 %645
  %649 = vset.pattern.permute.xlu0 0
  %650 = vperm.xlu0 %649, %v628
  %v651 = vpop.permute.xlu0 %650
  %654 = vset.pattern.permute.xlu0 0
  %655 = vperm.xlu0 %654, %v629
  %v656 = vpop.permute.xlu0 %655
  %659 = vset.pattern.permute.xlu0 0
  %660 = vperm.xlu0 %659, %v630
  %v661 = vpop.permute.xlu0 %660
  %664 = vset.pattern.permute.xlu0 0
  %665 = vperm.xlu0 %664, %v631
  %v666 = vpop.permute.xlu0 %665
  %669 = vset.pattern.permute.xlu0 0
  %670 = vperm.xlu0 %669, %v632
  %v671 = vpop.permute.xlu0 %670
  %v673 = vmul.f32 %v595, %v636
  %v674 = vmul.f32 %v598, %v641
  %v675 = vmul.f32 %v603, %v646
  %v676 = vmul.f32 %v606, %v651
  %v677 = vmul.f32 %v611, %v656
  %v678 = vmul.f32 %v614, %v661
  %v679 = vmul.f32 %v619, %v666
  %v680 = vmul.f32 %v622, %v671
  %v681 = vld [vmem:[%s6] sm:$0xff]
  %v682 = vld [vmem:[%s6 + $0x8] sm:$0xff]
  %v683 = vld [vmem:[%s6 + $0x10] sm:$0xff]
  %v684 = vld [vmem:[%s6 + $0x18] sm:$0xff]
  %v685 = vld [vmem:[%s6 + $0x20] sm:$0xff]
  %v686 = vld [vmem:[%s6 + $0x28] sm:$0xff]
  %v687 = vld [vmem:[%s6 + $0x30] sm:$0xff]
  %v688 = vld [vmem:[%s6 + $0x38] sm:$0xff]
  %690 = vset.pattern.permute.xlu0 0
  %691 = vperm.xlu0 %690, %v681
  %v692 = vpop.permute.xlu0 %691
  %695 = vset.pattern.permute.xlu0 0
  %696 = vperm.xlu0 %695, %v682
  %v697 = vpop.permute.xlu0 %696
  %700 = vset.pattern.permute.xlu0 0
  %701 = vperm.xlu0 %700, %v683
  %v702 = vpop.permute.xlu0 %701
  %705 = vset.pattern.permute.xlu0 0
  %706 = vperm.xlu0 %705, %v684
  %v707 = vpop.permute.xlu0 %706
  %710 = vset.pattern.permute.xlu0 0
  %711 = vperm.xlu0 %710, %v685
  %v712 = vpop.permute.xlu0 %711
  %715 = vset.pattern.permute.xlu0 0
  %716 = vperm.xlu0 %715, %v686
  %v717 = vpop.permute.xlu0 %716
  %720 = vset.pattern.permute.xlu0 0
  %721 = vperm.xlu0 %720, %v687
  %v722 = vpop.permute.xlu0 %721
  %725 = vset.pattern.permute.xlu0 0
  %726 = vperm.xlu0 %725, %v688
  %v727 = vpop.permute.xlu0 %726
  %v729 = vadd.f32 %v673, %v692
  %v730 = vadd.f32 %v674, %v697
  %v731 = vadd.f32 %v675, %v702
  %v732 = vadd.f32 %v676, %v707
  %v733 = vadd.f32 %v677, %v712
  %v734 = vadd.f32 %v678, %v717
  %v735 = vadd.f32 %v679, %v722
  %v736 = vadd.f32 %v680, %v727
  %737 = vst.msk [vmem:[%s8] sm:$0xff] %vm249, %v729
  %738 = vst.msk [vmem:[%s8 + $0x8] sm:$0xff] %vm249, %v730
  %739 = vst.msk [vmem:[%s8 + $0x10] sm:$0xff] %vm249, %v731
  %740 = vst.msk [vmem:[%s8 + $0x18] sm:$0xff] %vm249, %v732
  %741 = vst.msk [vmem:[%s8 + $0x20] sm:$0xff] %vm249, %v733
  %742 = vst.msk [vmem:[%s8 + $0x28] sm:$0xff] %vm249, %v734
  %743 = vst.msk [vmem:[%s8 + $0x30] sm:$0xff] %vm249, %v735
  %744 = vst.msk [vmem:[%s8 + $0x38] sm:$0xff] %vm249, %v736
  // Predicated region
  $region30: #{_lambda_.13} parent=0 // pred_check
    _
  $region31: #{_lambda_.13} parent=0 // pred_check_branch
    %746 = sbr.rel (0) target = $region33
  $region32: #{_lambda_.13} parent=0 // pred_region
    _
  $region33: #{_lambda_.13} parent=0 // pred_fallthru
    _
  // Predicated region
  $region34: #{_lambda_.13} parent=0 // pred_check
    _
  $region35: #{_lambda_.13} parent=0 // pred_check_branch
    %748 = sbr.rel (0) target = $region37
  $region36: #{_lambda_.13} parent=0 // pred_region
    _
  $region37: #{_lambda_.13} parent=0 // pred_fallthru
    _
  // Predicated region
  $region38: #{_lambda_.13} parent=0 // pred_check
    _
  $region39: #{_lambda_.13} parent=0 // pred_check_branch
    %750 = sbr.rel (0) target = $region41
  $region40: #{_lambda_.13} parent=0 // pred_region
    _
  $region41: #{_lambda_.13} parent=0 // pred_fallthru
    _
  // Predicated region
  $region42: #{_lambda_.13} parent=0 // pred_check
    _
  $region43: #{_lambda_.13} parent=0 // pred_check_branch
    %752 = sbr.rel (0) target = $region45
  $region44: #{_lambda_.13} parent=0 // pred_region
    _
  $region45: #{_lambda_.13} parent=0 // pred_fallthru
    _

// kernel: _lambda_.15
$region0: #{_lambda_.15}
  #allocation0 [shape = 'u32[]', space=smem, size = 0x4, offset = 0x4, fixed_abs, tag = 'smem constant byte address 0x4 - core index']
  #allocation1 [shape = 'u32[144,128]{1,0:T(1,128)}', space=vmem, size = 0x12000, scoped, tag = 'internal scratch']
  %s0 = inlined_call_operand.vmem [shape: f32[64,32], index: 0, kind: input, shape index: {}]
  %s1 = inlined_call_operand.vmem [shape: f32[32,2], index: 1, kind: input, shape index: {}]
  %s2 = inlined_call_operand.vmem [shape: f32[10,64], index: 2, kind: input, shape index: {}]
  %s3 = inlined_call_operand.vmem [shape: f32[10,1], index: 3, kind: input, shape index: {}]
  %s4 = inlined_call_operand.vmem [shape: f32[10,2], index: 4, kind: output, shape index: {}]
  %s5 = sld [smem:[#allocation0]]
  $region26: #{_lambda_.15} parent=0
    _
  %s7 = ssub.s32 1, %s5
  %s8 = scalar_select 0, %s7, %s5
  // Predicated region
  $region2: #{_lambda_.15} parent=0 // pred_check
    _
  $region3: #{_lambda_.15} parent=0 // pred_check_branch
    %10 = sbr.rel (0) target = $region5
  $region4: #{_lambda_.15} parent=0 // pred_region
    _
  $region5: #{_lambda_.15} parent=0 // pred_fallthru
    _
  // Predicated region
  $region6: #{_lambda_.15} parent=0 // pred_check
    _
  $region7: #{_lambda_.15} parent=0 // pred_check_branch
    %12 = sbr.rel (0) target = $region9
  $region8: #{_lambda_.15} parent=0 // pred_region
    _
  $region9: #{_lambda_.15} parent=0 // pred_fallthru
    _
  // Predicated region
  $region10: #{_lambda_.15} parent=0 // pred_check
    _
  $region11: #{_lambda_.15} parent=0 // pred_check_branch
    %14 = sbr.rel (0) target = $region13
  $region12: #{_lambda_.15} parent=0 // pred_region
    _
  $region13: #{_lambda_.15} parent=0 // pred_fallthru
    _
  // Predicated region
  $region14: #{_lambda_.15} parent=0 // pred_check
    _
  $region15: #{_lambda_.15} parent=0 // pred_check_branch
    %16 = sbr.rel (0) target = $region17
  $region16: #{_lambda_.15} parent=0 // pred_region
    _
  $region17: #{_lambda_.15} parent=0 // pred_fallthru
    _
  %v17 = vld [vmem:[%s0] sm:$0xff]
  %v18 = vld [vmem:[%s0 + $0x8] sm:$0xff]
  %v19 = vld [vmem:[%s0 + $0x10] sm:$0xff]
  %v20 = vld [vmem:[%s0 + $0x18] sm:$0xff]
  %v21 = vld [vmem:[%s0 + $0x20] sm:$0xff]
  %v22 = vld [vmem:[%s0 + $0x28] sm:$0xff]
  %v23 = vld [vmem:[%s0 + $0x30] sm:$0xff]
  %v24 = vld [vmem:[%s0 + $0x38] sm:$0xff]
  %v25 = vld [vmem:[%s1] sm:$0xff]
  %v26 = vld [vmem:[%s1 + $0x8] sm:$0xff]
  %v27 = vld [vmem:[%s1 + $0x10] sm:$0xff]
  %v28 = vld [vmem:[%s1 + $0x18] sm:$0xff]
  %vm29 = vcmask 261120
  %v31 = vsel %vm29, %v17, 0
  %v34 = vsel %vm29, %v18, 0
  %v37 = vsel %vm29, %v19, 0
  %v40 = vsel %vm29, %v20, 0
  %v43 = vsel %vm29, %v21, 0
  %v46 = vsel %vm29, %v22, 0
  %v49 = vsel %vm29, %v23, 0
  %v52 = vsel %vm29, %v24, 0
  %54 = vmatprep.subr.mxu0 0.0
  %55 = vmatpush1.msra.mxu0 0.0
  %56 = vmatprep.subr.mxu0 0.0
  %57 = vmatpush1.msra.mxu0 0.0
  %58 = vmatprep.subr.mxu0 0.0
  %59 = vmatpush1.msra.mxu0 0.0
  %60 = vmatprep.subr.mxu0 0.0
  %61 = vmatpush1.msra.mxu0 0.0
  %62 = vmatprep.subr.mxu0 0.0
  %63 = vmatpush1.msra.mxu0 0.0
  %64 = vmatprep.subr.mxu0 0.0
  %65 = vmatpush1.msra.mxu0 0.0
  %66 = vmatprep.subr.mxu0 0.0
  %67 = vmatpush1.msra.mxu0 0.0
  %68 = vmatprep.subr.mxu0 0.0
  %69 = vmatpush1.msra.mxu0 0.0
  %70 = vmatprep.subr.mxu0 0.0
  %71 = vmatpush1.msra.mxu0 0.0
  %72 = vmatprep.subr.mxu0 0.0
  %73 = vmatpush1.msra.mxu0 0.0
  %74 = vmatprep.subr.mxu0 0.0
  %75 = vmatpush1.msra.mxu0 0.0
  %76 = vmatprep.subr.mxu0 0.0
  %77 = vmatpush1.msra.mxu0 0.0
  %78 = vmatprep.subr.mxu0 0.0
  %79 = vmatpush1.msra.mxu0 %v28
  %80 = vmatprep.subr.mxu0 0.0
  %81 = vmatpush1.msra.mxu0 %v27
  %82 = vmatprep.subr.mxu0 0.0
  %83 = vmatpush1.msra.mxu0 %v26
  %84 = vmatprep.subr.mxu0 0.0
  %85 = vmatpush1.msra.mxu0 %v25
  %86 = vmatprep.subr.mxu0 0.0
  %87 = vmatpush2.msra.mxu0 0.0
  %88 = vmatprep.subr.mxu0 0.0
  %89 = vmatpush2.msra.mxu0 0.0
  %90 = vmatprep.subr.mxu0 0.0
  %91 = vmatpush2.msra.mxu0 0.0
  %92 = vmatprep.subr.mxu0 0.0
  %93 = vmatpush2.msra.mxu0 0.0
  %94 = vmatprep.subr.mxu0 0.0
  %95 = vmatpush2.msra.mxu0 0.0
  %96 = vmatprep.subr.mxu0 0.0
  %97 = vmatpush2.msra.mxu0 0.0
  %98 = vmatprep.subr.mxu0 0.0
  %99 = vmatpush2.msra.mxu0 0.0
  %100 = vmatprep.subr.mxu0 0.0
  %101 = vmatpush2.msra.mxu0 0.0
  %102 = vmatprep.subr.mxu0 0.0
  %103 = vmatpush2.msra.mxu0 0.0
  %104 = vmatprep.subr.mxu0 0.0
  %105 = vmatpush2.msra.mxu0 0.0
  %106 = vmatprep.subr.mxu0 0.0
  %107 = vmatpush2.msra.mxu0 0.0
  %108 = vmatprep.subr.mxu0 0.0
  %109 = vmatpush2.msra.mxu0 0.0
  %110 = vmatprep.subr.mxu0 0.0
  %111 = vmatpush2.msra.mxu0 0.0
  %112 = vmatprep.subr.mxu0 0.0
  %113 = vmatpush2.msra.mxu0 0.0
  %114 = vmatprep.subr.mxu0 0.0
  %115 = vmatpush2.msra.mxu0 0.0
  %116 = vmatprep.subr.mxu0 0.0
  %117 = vmatpush2.msra.mxu0 0.0
  %118 = vmatprep.mubr.f32.mxu0 0.0
  %119 = vmatmul.mubr.f32.gmra.mxu0 %v31
  %v120 = vpop.f32.mrf.mxu0
  %v121 = vadd.f32 0.0, %v120
  %v122 = vpop.f32.mrf.mxu0
  %123 = vmatprep.mubr.f32.mxu0 0.0
  %124 = vmatmul.mubr.f32.gmra.mxu0 %v34
  %v125 = vpop.f32.mrf.mxu0
  %v126 = vadd.f32 0.0, %v125
  %v127 = vpop.f32.mrf.mxu0
  %128 = vmatprep.mubr.f32.mxu0 0.0
  %129 = vmatmul.mubr.f32.gmra.mxu0 %v37
  %v130 = vpop.f32.mrf.mxu0
  %v131 = vadd.f32 0.0, %v130
  %v132 = vpop.f32.mrf.mxu0
  %133 = vmatprep.mubr.f32.mxu0 0.0
  %134 = vmatmul.mubr.f32.gmra.mxu0 %v40
  %v135 = vpop.f32.mrf.mxu0
  %v136 = vadd.f32 0.0, %v135
  %v137 = vpop.f32.mrf.mxu0
  %138 = vmatprep.mubr.f32.mxu0 0.0
  %139 = vmatmul.mubr.f32.gmra.mxu0 %v43
  %v140 = vpop.f32.mrf.mxu0
  %v141 = vadd.f32 0.0, %v140
  %v142 = vpop.f32.mrf.mxu0
  %143 = vmatprep.mubr.f32.mxu0 0.0
  %144 = vmatmul.mubr.f32.gmra.mxu0 %v46
  %v145 = vpop.f32.mrf.mxu0
  %v146 = vadd.f32 0.0, %v145
  %v147 = vpop.f32.mrf.mxu0
  %148 = vmatprep.mubr.f32.mxu0 0.0
  %149 = vmatmul.mubr.f32.gmra.mxu0 %v49
  %v150 = vpop.f32.mrf.mxu0
  %v151 = vadd.f32 0.0, %v150
  %v152 = vpop.f32.mrf.mxu0
  %153 = vmatprep.mubr.f32.mxu0 0.0
  %154 = vmatmul.mubr.f32.gmra.mxu0 %v52
  %v155 = vpop.f32.mrf.mxu0
  %v156 = vadd.f32 0.0, %v155
  %v157 = vpop.f32.mrf.mxu0
  %158 = vdwg.mxu0
  %v159 = vld [vmem:[%s2] sm:$0xff]
  %v160 = vld [vmem:[%s2 + $0x8] sm:$0x3]
  %v161 = vld [vmem:[%s3] sm:$0xff]
  %v162 = vld [vmem:[%s3 + $0x8] sm:$0x3]
  %164 = vset.pattern.permute.xlu0 0
  %165 = vperm.xlu0 %164, %v161
  %v166 = vpop.permute.xlu0 %165
  %169 = vset.pattern.permute.xlu0 0
  %170 = vperm.xlu0 %169, %v162
  %v171 = vpop.permute.xlu0 %170
  %vm173 = vcmask 523264
  %v175 = vsel %vm173, %v159, 0
  %v178 = vsel %vm173, %v160, 0
  %180 = vmatprep.subr.mxu0 0.0
  %181 = vmatpush1.msra.mxu0 0.0
  %182 = vmatprep.subr.mxu0 0.0
  %183 = vmatpush1.msra.mxu0 0.0
  %184 = vmatprep.subr.mxu0 0.0
  %185 = vmatpush1.msra.mxu0 0.0
  %186 = vmatprep.subr.mxu0 0.0
  %187 = vmatpush1.msra.mxu0 0.0
  %188 = vmatprep.subr.mxu0 0.0
  %189 = vmatpush1.msra.mxu0 0.0
  %190 = vmatprep.subr.mxu0 0.0
  %191 = vmatpush1.msra.mxu0 0.0
  %192 = vmatprep.subr.mxu0 0.0
  %193 = vmatpush1.msra.mxu0 0.0
  %194 = vmatprep.subr.mxu0 0.0
  %195 = vmatpush1.msra.mxu0 0.0
  %196 = vmatprep.subr.mxu0 0.0
  %197 = vmatpush1.msra.mxu0 %v156
  %198 = vmatprep.subr.mxu0 0.0
  %199 = vmatpush1.msra.mxu0 %v151
  %200 = vmatprep.subr.mxu0 0.0
  %201 = vmatpush1.msra.mxu0 %v146
  %202 = vmatprep.subr.mxu0 0.0
  %203 = vmatpush1.msra.mxu0 %v141
  %204 = vmatprep.subr.mxu0 0.0
  %205 = vmatpush1.msra.mxu0 %v136
  %206 = vmatprep.subr.mxu0 0.0
  %207 = vmatpush1.msra.mxu0 %v131
  %208 = vmatprep.subr.mxu0 0.0
  %209 = vmatpush1.msra.mxu0 %v126
  %210 = vmatprep.subr.mxu0 0.0
  %211 = vmatpush1.msra.mxu0 %v121
  %212 = vmatprep.subr.mxu0 0.0
  %213 = vmatpush2.msra.mxu0 0.0
  %214 = vmatprep.subr.mxu0 0.0
  %215 = vmatpush2.msra.mxu0 0.0
  %216 = vmatprep.subr.mxu0 0.0
  %217 = vmatpush2.msra.mxu0 0.0
  %218 = vmatprep.subr.mxu0 0.0
  %219 = vmatpush2.msra.mxu0 0.0
  %220 = vmatprep.subr.mxu0 0.0
  %221 = vmatpush2.msra.mxu0 0.0
  %222 = vmatprep.subr.mxu0 0.0
  %223 = vmatpush2.msra.mxu0 0.0
  %224 = vmatprep.subr.mxu0 0.0
  %225 = vmatpush2.msra.mxu0 0.0
  %226 = vmatprep.subr.mxu0 0.0
  %227 = vmatpush2.msra.mxu0 0.0
  %228 = vmatprep.subr.mxu0 0.0
  %229 = vmatpush2.msra.mxu0 0.0
  %230 = vmatprep.subr.mxu0 0.0
  %231 = vmatpush2.msra.mxu0 0.0
  %232 = vmatprep.subr.mxu0 0.0
  %233 = vmatpush2.msra.mxu0 0.0
  %234 = vmatprep.subr.mxu0 0.0
  %235 = vmatpush2.msra.mxu0 0.0
  %236 = vmatprep.subr.mxu0 0.0
  %237 = vmatpush2.msra.mxu0 0.0
  %238 = vmatprep.subr.mxu0 0.0
  %239 = vmatpush2.msra.mxu0 0.0
  %240 = vmatprep.subr.mxu0 0.0
  %241 = vmatpush2.msra.mxu0 0.0
  %242 = vmatprep.subr.mxu0 0.0
  %243 = vmatpush2.msra.mxu0 0.0
  %244 = vmatprep.mubr.f32.mxu0 0.0
  %245 = vmatmul.mubr.f32.gmra.mxu0 %v175
  %v246 = vpop.f32.mrf.mxu0
  %v247 = vadd.f32 %v166, %v246
  %v248 = vpop.f32.mrf.mxu0
  %249 = vmatprep.mubr.f32.mxu0 0.0
  %250 = vmatmul.mubr.f32.gmra.mxu0 %v178
  %v251 = vpop.f32.mrf.mxu0
  %v252 = vadd.f32 %v171, %v251
  %v253 = vpop.f32.mrf.mxu0
  %254 = vdwg.mxu0
  %vm255 = vcmask 15360
  %256 = vst.msk [vmem:[%s4] sm:$0xff] %vm255, %v247
  %vm257 = vcmask 9216
  %258 = vst.msk [vmem:[%s4 + $0x8] sm:$0x3] %vm257, %v252
  // Predicated region
  $region18: #{_lambda_.15} parent=0 // pred_check
    _
  $region19: #{_lambda_.15} parent=0 // pred_check_branch
    %260 = sbr.rel (0) target = $region21
  $region20: #{_lambda_.15} parent=0 // pred_region
    _
  $region21: #{_lambda_.15} parent=0 // pred_fallthru
    _
  // Predicated region
  $region22: #{_lambda_.15} parent=0 // pred_check
    _
  $region23: #{_lambda_.15} parent=0 // pred_check_branch
    %262 = sbr.rel (0) target = $region25
  $region24: #{_lambda_.15} parent=0 // pred_region
    _
  $region25: #{_lambda_.15} parent=0 // pred_fallthru
    _

// kernel: _lambda_.14
$region0: #{_lambda_.14}
  #allocation0 [shape = 'u32[]', space=smem, size = 0x4, offset = 0x4, fixed_abs, tag = 'smem constant byte address 0x4 - core index']
  #allocation1 [shape = 'u32[144,128]{1,0:T(1,128)}', space=vmem, size = 0x12000, scoped, tag = 'internal scratch']
  %s0 = inlined_call_operand.vmem [shape: bf16[64,576], index: 0, kind: input, shape index: {}]
  %s1 = inlined_call_operand.vmem [shape: bf16[576,32], index: 1, kind: input, shape index: {}]
  %s2 = inlined_call_operand.vmem [shape: f32[64,1], index: 2, kind: input, shape index: {}]
  %s3 = inlined_call_operand.vmem [shape: f32[64,1], index: 3, kind: input, shape index: {}]
  %s4 = inlined_call_operand.vmem [shape: f32[64,32], index: 4, kind: input, shape index: {}]
  %s5 = inlined_call_operand.vmem [shape: f32[64,32], index: 5, kind: output, shape index: {}]
  %s6 = sld [smem:[#allocation0]]
  $region30: #{_lambda_.14} parent=0
    _
  %s8 = ssub.s32 1, %s6
  %s9 = scalar_select 0, %s8, %s6
  // Predicated region
  $region2: #{_lambda_.14} parent=0 // pred_check
    _
  $region3: #{_lambda_.14} parent=0 // pred_check_branch
    %11 = sbr.rel (0) target = $region5
  $region4: #{_lambda_.14} parent=0 // pred_region
    _
  $region5: #{_lambda_.14} parent=0 // pred_fallthru
    _
  // Predicated region
  $region6: #{_lambda_.14} parent=0 // pred_check
    _
  $region7: #{_lambda_.14} parent=0 // pred_check_branch
    %13 = sbr.rel (0) target = $region9
  $region8: #{_lambda_.14} parent=0 // pred_region
    _
  $region9: #{_lambda_.14} parent=0 // pred_fallthru
    _
  // Predicated region
  $region10: #{_lambda_.14} parent=0 // pred_check
    _
  $region11: #{_lambda_.14} parent=0 // pred_check_branch
    %15 = sbr.rel (0) target = $region13
  $region12: #{_lambda_.14} parent=0 // pred_region
    _
  $region13: #{_lambda_.14} parent=0 // pred_fallthru
    _
  // Predicated region
  $region14: #{_lambda_.14} parent=0 // pred_check
    _
  $region15: #{_lambda_.14} parent=0 // pred_check_branch
    %17 = sbr.rel (0) target = $region17
  $region16: #{_lambda_.14} parent=0 // pred_region
    _
  $region17: #{_lambda_.14} parent=0 // pred_fallthru
    _
  // Predicated region
  $region18: #{_lambda_.14} parent=0 // pred_check
    _
  $region19: #{_lambda_.14} parent=0 // pred_check_branch
    %19 = sbr.rel (0) target = $region21
  $region20: #{_lambda_.14} parent=0 // pred_region
    _
  $region21: #{_lambda_.14} parent=0 // pred_fallthru
    _
  %v21 = vld [vmem:[%s0] sm:$0xff]
  %v22 = vld [vmem:[%s0 + $0x8] sm:$0xff]
  %v23 = vld [vmem:[%s0 + $0x10] sm:$0xf]
  %v24 = vld [vmem:[%s0 + $0x14] sm:$0xff]
  %v25 = vld [vmem:[%s0 + $0x1c] sm:$0xff]
  %v26 = vld [vmem:[%s0 + $0x24] sm:$0xf]
  %v27 = vld [vmem:[%s0 + $0x28] sm:$0xff]
  %v28 = vld [vmem:[%s0 + $0x30] sm:$0xff]
  %v29 = vld [vmem:[%s0 + $0x38] sm:$0xf]
  %v30 = vld [vmem:[%s0 + $0x3c] sm:$0xff]
  %v31 = vld [vmem:[%s0 + $0x44] sm:$0xff]
  %v32 = vld [vmem:[%s0 + $0x4c] sm:$0xf]
  %v33 = vld [vmem:[%s0 + $0x50] sm:$0xff]
  %v34 = vld [vmem:[%s0 + $0x58] sm:$0xff]
  %v35 = vld [vmem:[%s0 + $0x60] sm:$0xf]
  %v36 = vld [vmem:[%s0 + $0x64] sm:$0xff]
  %v37 = vld [vmem:[%s0 + $0x6c] sm:$0xff]
  %v38 = vld [vmem:[%s0 + $0x74] sm:$0xf]
  %v39 = vld [vmem:[%s0 + $0x78] sm:$0xff]
  %v40 = vld [vmem:[%s0 + $0x80] sm:$0xff]
  %v41 = vld [vmem:[%s0 + $0x88] sm:$0xf]
  %v42 = vld [vmem:[%s0 + $0x8c] sm:$0xff]
  %v43 = vld [vmem:[%s0 + $0x94] sm:$0xff]
  %v44 = vld [vmem:[%s0 + $0x9c] sm:$0xf]
  %v45 = vld [vmem:[%s1] sm:$0xf]
  %v46 = vld [vmem:[%s1 + $0x4] sm:$0xf]
  %v47 = vld [vmem:[%s1 + $0x8] sm:$0xf]
  %v48 = vld [vmem:[%s1 + $0xc] sm:$0xf]
  %v49 = vld [vmem:[%s1 + $0x10] sm:$0xf]
  %v50 = vld [vmem:[%s1 + $0x14] sm:$0xf]
  %v51 = vld [vmem:[%s1 + $0x18] sm:$0xf]
  %v52 = vld [vmem:[%s1 + $0x1c] sm:$0xf]
  %v53 = vld [vmem:[%s1 + $0x20] sm:$0xf]
  %v54 = vld [vmem:[%s1 + $0x24] sm:$0xf]
  %v55 = vld [vmem:[%s1 + $0x28] sm:$0xf]
  %v56 = vld [vmem:[%s1 + $0x2c] sm:$0xf]
  %v57 = vld [vmem:[%s1 + $0x30] sm:$0xf]
  %v58 = vld [vmem:[%s1 + $0x34] sm:$0xf]
  %v59 = vld [vmem:[%s1 + $0x38] sm:$0xf]
  %v60 = vld [vmem:[%s1 + $0x3c] sm:$0xf]
  %v61 = vld [vmem:[%s1 + $0x40] sm:$0xf]
  %v62 = vld [vmem:[%s1 + $0x44] sm:$0xf]
  %v63 = vld [vmem:[%s1 + $0x48] sm:$0xf]
  %v64 = vld [vmem:[%s1 + $0x4c] sm:$0xf]
  %v65 = vld [vmem:[%s1 + $0x50] sm:$0xf]
  %v66 = vld [vmem:[%s1 + $0x54] sm:$0xf]
  %v67 = vld [vmem:[%s1 + $0x58] sm:$0xf]
  %v68 = vld [vmem:[%s1 + $0x5c] sm:$0xf]
  %v69 = vld [vmem:[%s1 + $0x60] sm:$0xf]
  %v70 = vld [vmem:[%s1 + $0x64] sm:$0xf]
  %v71 = vld [vmem:[%s1 + $0x68] sm:$0xf]
  %v72 = vld [vmem:[%s1 + $0x6c] sm:$0xf]
  %v73 = vld [vmem:[%s1 + $0x70] sm:$0xf]
  %v74 = vld [vmem:[%s1 + $0x74] sm:$0xf]
  %v75 = vld [vmem:[%s1 + $0x78] sm:$0xf]
  %v76 = vld [vmem:[%s1 + $0x7c] sm:$0xf]
  %v77 = vld [vmem:[%s1 + $0x80] sm:$0xf]
  %v78 = vld [vmem:[%s1 + $0x84] sm:$0xf]
  %v79 = vld [vmem:[%s1 + $0x88] sm:$0xf]
  %v80 = vld [vmem:[%s1 + $0x8c] sm:$0xf]
  %v81 = vld [vmem:[%s1 + $0x90] sm:$0xf]
  %v82 = vld [vmem:[%s1 + $0x94] sm:$0xf]
  %v83 = vld [vmem:[%s1 + $0x98] sm:$0xf]
  %v84 = vld [vmem:[%s1 + $0x9c] sm:$0xf]
  %v85 = vld [vmem:[%s1 + $0xa0] sm:$0xf]
  %v86 = vld [vmem:[%s1 + $0xa4] sm:$0xf]
  %v87 = vld [vmem:[%s1 + $0xa8] sm:$0xf]
  %v88 = vld [vmem:[%s1 + $0xac] sm:$0xf]
  %v89 = vld [vmem:[%s1 + $0xb0] sm:$0xf]
  %v90 = vld [vmem:[%s1 + $0xb4] sm:$0xf]
  %v91 = vld [vmem:[%s1 + $0xb8] sm:$0xf]
  %v92 = vld [vmem:[%s1 + $0xbc] sm:$0xf]
  %v93 = vld [vmem:[%s1 + $0xc0] sm:$0xf]
  %v94 = vld [vmem:[%s1 + $0xc4] sm:$0xf]
  %v95 = vld [vmem:[%s1 + $0xc8] sm:$0xf]
  %v96 = vld [vmem:[%s1 + $0xcc] sm:$0xf]
  %v97 = vld [vmem:[%s1 + $0xd0] sm:$0xf]
  %v98 = vld [vmem:[%s1 + $0xd4] sm:$0xf]
  %v99 = vld [vmem:[%s1 + $0xd8] sm:$0xf]
  %v100 = vld [vmem:[%s1 + $0xdc] sm:$0xf]
  %v101 = vld [vmem:[%s1 + $0xe0] sm:$0xf]
  %v102 = vld [vmem:[%s1 + $0xe4] sm:$0xf]
  %v103 = vld [vmem:[%s1 + $0xe8] sm:$0xf]
  %v104 = vld [vmem:[%s1 + $0xec] sm:$0xf]
  %v105 = vld [vmem:[%s1 + $0xf0] sm:$0xf]
  %v106 = vld [vmem:[%s1 + $0xf4] sm:$0xf]
  %v107 = vld [vmem:[%s1 + $0xf8] sm:$0xf]
  %v108 = vld [vmem:[%s1 + $0xfc] sm:$0xf]
  %v109 = vld [vmem:[%s1 + $0x100] sm:$0xf]
  %v110 = vld [vmem:[%s1 + $0x104] sm:$0xf]
  %v111 = vld [vmem:[%s1 + $0x108] sm:$0xf]
  %v112 = vld [vmem:[%s1 + $0x10c] sm:$0xf]
  %v113 = vld [vmem:[%s1 + $0x110] sm:$0xf]
  %v114 = vld [vmem:[%s1 + $0x114] sm:$0xf]
  %v115 = vld [vmem:[%s1 + $0x118] sm:$0xf]
  %v116 = vld [vmem:[%s1 + $0x11c] sm:$0xf]
  %v141 = vunpack.c.l.b16 %v21
  %v142 = vunpack.c.h.b16 %v21
  %v143 = vunpack.c.l.b16 %v22
  %v144 = vunpack.c.h.b16 %v22
  %v145 = vunpack.c.l.b16 %v23
  %v146 = vunpack.c.l.b16 %v24
  %v147 = vunpack.c.h.b16 %v24
  %v148 = vunpack.c.l.b16 %v25
  %v149 = vunpack.c.h.b16 %v25
  %v150 = vunpack.c.l.b16 %v26
  %v151 = vunpack.c.l.b16 %v27
  %v152 = vunpack.c.h.b16 %v27
  %v153 = vunpack.c.l.b16 %v28
  %v154 = vunpack.c.h.b16 %v28
  %v155 = vunpack.c.l.b16 %v29
  %v156 = vunpack.c.l.b16 %v30
  %v157 = vunpack.c.h.b16 %v30
  %v158 = vunpack.c.l.b16 %v31
  %v159 = vunpack.c.h.b16 %v31
  %v160 = vunpack.c.l.b16 %v32
  %v161 = vunpack.c.l.b16 %v33
  %v162 = vunpack.c.h.b16 %v33
  %v163 = vunpack.c.l.b16 %v34
  %v164 = vunpack.c.h.b16 %v34
  %v165 = vunpack.c.l.b16 %v35
  %v166 = vunpack.c.l.b16 %v36
  %v167 = vunpack.c.h.b16 %v36
  %v168 = vunpack.c.l.b16 %v37
  %v169 = vunpack.c.h.b16 %v37
  %v170 = vunpack.c.l.b16 %v38
  %v171 = vunpack.c.l.b16 %v39
  %v172 = vunpack.c.h.b16 %v39
  %v173 = vunpack.c.l.b16 %v40
  %v174 = vunpack.c.h.b16 %v40
  %v175 = vunpack.c.l.b16 %v41
  %v176 = vunpack.c.l.b16 %v42
  %v177 = vunpack.c.h.b16 %v42
  %v178 = vunpack.c.l.b16 %v43
  %v179 = vunpack.c.h.b16 %v43
  %v180 = vunpack.c.l.b16 %v44
  %v181 = vpack.c.b16 %v146, %v141
  %v182 = vpack.c.b16 %v147, %v142
  %v183 = vpack.c.b16 %v148, %v143
  %v184 = vpack.c.b16 %v149, %v144
  %v185 = vpack.c.b16 %v150, %v145
  %v186 = vpack.c.b16 %v156, %v151
  %v187 = vpack.c.b16 %v157, %v152
  %v188 = vpack.c.b16 %v158, %v153
  %v189 = vpack.c.b16 %v159, %v154
  %v190 = vpack.c.b16 %v160, %v155
  %v191 = vpack.c.b16 %v166, %v161
  %v192 = vpack.c.b16 %v167, %v162
  %v193 = vpack.c.b16 %v168, %v163
  %v194 = vpack.c.b16 %v169, %v164
  %v195 = vpack.c.b16 %v170, %v165
  %v196 = vpack.c.b16 %v176, %v171
  %v197 = vpack.c.b16 %v177, %v172
  %v198 = vpack.c.b16 %v178, %v173
  %v199 = vpack.c.b16 %v179, %v174
  %v200 = vpack.c.b16 %v180, %v175
  %v289 = vunpack.c.l.b16 %v45
  %v290 = vunpack.c.l.b16 %v46
  %v291 = vunpack.c.l.b16 %v47
  %v292 = vunpack.c.l.b16 %v48
  %v293 = vunpack.c.l.b16 %v49
  %v294 = vunpack.c.l.b16 %v50
  %v295 = vunpack.c.l.b16 %v51
  %v296 = vunpack.c.l.b16 %v52
  %v297 = vunpack.c.l.b16 %v53
  %v298 = vunpack.c.l.b16 %v54
  %v299 = vunpack.c.l.b16 %v55
  %v300 = vunpack.c.l.b16 %v56
  %v301 = vunpack.c.l.b16 %v57
  %v302 = vunpack.c.l.b16 %v58
  %v303 = vunpack.c.l.b16 %v59
  %v304 = vunpack.c.l.b16 %v60
  %v305 = vunpack.c.l.b16 %v61
  %v306 = vunpack.c.l.b16 %v62
  %v307 = vunpack.c.l.b16 %v63
  %v308 = vunpack.c.l.b16 %v64
  %v309 = vunpack.c.l.b16 %v65
  %v310 = vunpack.c.l.b16 %v66
  %v311 = vunpack.c.l.b16 %v67
  %v312 = vunpack.c.l.b16 %v68
  %v313 = vunpack.c.l.b16 %v69
  %v314 = vunpack.c.l.b16 %v70
  %v315 = vunpack.c.l.b16 %v71
  %v316 = vunpack.c.l.b16 %v72
  %v317 = vunpack.c.l.b16 %v73
  %v318 = vunpack.c.l.b16 %v74
  %v319 = vunpack.c.l.b16 %v75
  %v320 = vunpack.c.l.b16 %v76
  %v321 = vunpack.c.l.b16 %v77
  %v322 = vunpack.c.l.b16 %v78
  %v323 = vunpack.c.l.b16 %v79
  %v324 = vunpack.c.l.b16 %v80
  %v325 = vunpack.c.l.b16 %v81
  %v326 = vunpack.c.l.b16 %v82
  %v327 = vunpack.c.l.b16 %v83
  %v328 = vunpack.c.l.b16 %v84
  %v329 = vunpack.c.l.b16 %v85
  %v330 = vunpack.c.l.b16 %v86
  %v331 = vunpack.c.l.b16 %v87
  %v332 = vunpack.c.l.b16 %v88
  %v333 = vunpack.c.l.b16 %v89
  %v334 = vunpack.c.l.b16 %v90
  %v335 = vunpack.c.l.b16 %v91
  %v336 = vunpack.c.l.b16 %v92
  %v337 = vunpack.c.l.b16 %v93
  %v338 = vunpack.c.l.b16 %v94
  %v339 = vunpack.c.l.b16 %v95
  %v340 = vunpack.c.l.b16 %v96
  %v341 = vunpack.c.l.b16 %v97
  %v342 = vunpack.c.l.b16 %v98
  %v343 = vunpack.c.l.b16 %v99
  %v344 = vunpack.c.l.b16 %v100
  %v345 = vunpack.c.l.b16 %v101
  %v346 = vunpack.c.l.b16 %v102
  %v347 = vunpack.c.l.b16 %v103
  %v348 = vunpack.c.l.b16 %v104
  %v349 = vunpack.c.l.b16 %v105
  %v350 = vunpack.c.l.b16 %v106
  %v351 = vunpack.c.l.b16 %v107
  %v352 = vunpack.c.l.b16 %v108
  %v353 = vunpack.c.l.b16 %v109
  %v354 = vunpack.c.l.b16 %v110
  %v355 = vunpack.c.l.b16 %v111
  %v356 = vunpack.c.l.b16 %v112
  %v357 = vunpack.c.l.b16 %v113
  %v358 = vunpack.c.l.b16 %v114
  %v359 = vunpack.c.l.b16 %v115
  %v360 = vunpack.c.l.b16 %v116
  %v361 = vpack.c.b16 %v290, %v289
  %v362 = vpack.c.b16 %v292, %v291
  %v363 = vpack.c.b16 %v294, %v293
  %v364 = vpack.c.b16 %v296, %v295
  %v365 = vpack.c.b16 %v298, %v297
  %v366 = vpack.c.b16 %v300, %v299
  %v367 = vpack.c.b16 %v302, %v301
  %v368 = vpack.c.b16 %v304, %v303
  %v369 = vpack.c.b16 %v306, %v305
  %v370 = vpack.c.b16 %v308, %v307
  %v371 = vpack.c.b16 %v310, %v309
  %v372 = vpack.c.b16 %v312, %v311
  %v373 = vpack.c.b16 %v314, %v313
  %v374 = vpack.c.b16 %v316, %v315
  %v375 = vpack.c.b16 %v318, %v317
  %v376 = vpack.c.b16 %v320, %v319
  %v377 = vpack.c.b16 %v322, %v321
  %v378 = vpack.c.b16 %v324, %v323
  %v379 = vpack.c.b16 %v326, %v325
  %v380 = vpack.c.b16 %v328, %v327
  %v381 = vpack.c.b16 %v330, %v329
  %v382 = vpack.c.b16 %v332, %v331
  %v383 = vpack.c.b16 %v334, %v333
  %v384 = vpack.c.b16 %v336, %v335
  %v385 = vpack.c.b16 %v338, %v337
  %v386 = vpack.c.b16 %v340, %v339
  %v387 = vpack.c.b16 %v342, %v341
  %v388 = vpack.c.b16 %v344, %v343
  %v389 = vpack.c.b16 %v346, %v345
  %v390 = vpack.c.b16 %v348, %v347
  %v391 = vpack.c.b16 %v350, %v349
  %v392 = vpack.c.b16 %v352, %v351
  %v393 = vpack.c.b16 %v354, %v353
  %v394 = vpack.c.b16 %v356, %v355
  %v395 = vpack.c.b16 %v358, %v357
  %v396 = vpack.c.b16 %v360, %v359
  %vm433 = vcmask 523264
  %v435 = vsel %vm433, %v185, 0
  %v438 = vsel %vm433, %v190, 0
  %v441 = vsel %vm433, %v195, 0
  %v444 = vsel %vm433, %v200, 0
  %446 = vmatprep.subr.bf16.mxu0 0
  %447 = vmatpush1.bf16.msra.mxu0 %v368
  %448 = vmatprep.subr.bf16.mxu0 0
  %449 = vmatpush1.bf16.msra.mxu0 %v367
  %450 = vmatprep.subr.bf16.mxu0 0
  %451 = vmatpush1.bf16.msra.mxu0 %v366
  %452 = vmatprep.subr.bf16.mxu0 0
  %453 = vmatpush1.bf16.msra.mxu0 %v365
  %454 = vmatprep.subr.bf16.mxu0 0
  %455 = vmatpush1.bf16.msra.mxu0 %v364
  %456 = vmatprep.subr.bf16.mxu0 0
  %457 = vmatpush1.bf16.msra.mxu0 %v363
  %458 = vmatprep.subr.bf16.mxu0 0
  %459 = vmatpush1.bf16.msra.mxu0 %v362
  %460 = vmatprep.subr.bf16.mxu0 0
  %461 = vmatpush1.bf16.msra.mxu0 %v361
  %462 = vmatprep.subr.bf16.mxu0 0
  %463 = vmatpush2.bf16.msra.mxu0 %v376
  %464 = vmatprep.subr.bf16.mxu0 0
  %465 = vmatpush2.bf16.msra.mxu0 %v375
  %466 = vmatprep.subr.bf16.mxu0 0
  %467 = vmatpush2.bf16.msra.mxu0 %v374
  %468 = vmatprep.subr.bf16.mxu0 0
  %469 = vmatpush2.bf16.msra.mxu0 %v373
  %470 = vmatprep.subr.bf16.mxu0 0
  %471 = vmatpush2.bf16.msra.mxu0 %v372
  %472 = vmatprep.subr.bf16.mxu0 0
  %473 = vmatpush2.bf16.msra.mxu0 %v371
  %474 = vmatprep.subr.bf16.mxu0 0
  %475 = vmatpush2.bf16.msra.mxu0 %v370
  %476 = vmatprep.subr.bf16.mxu0 0
  %477 = vmatpush2.bf16.msra.mxu0 %v369
  %478 = vmatprep.mubr.bf16.mxu0 %v182
  %479 = vmatmul.mubr.bf16.gmra.mxu0 %v181
  %v480 = vpop.f32.mrf.mxu0
  %v481 = vadd.f32 0.0, %v480
  %v482 = vpop.f32.mrf.mxu0
  %v483 = vpop.f32.mrf.mxu0
  %v484 = vadd.f32 0.0, %v483
  %v485 = vpop.f32.mrf.mxu0
  %486 = vmatprep.mubr.bf16.mxu0 %v187
  %487 = vmatmul.mubr.bf16.gmra.mxu0 %v186
  %v488 = vpop.f32.mrf.mxu0
  %v489 = vadd.f32 0.0, %v488
  %v490 = vpop.f32.mrf.mxu0
  %v491 = vpop.f32.mrf.mxu0
  %v492 = vadd.f32 0.0, %v491
  %v493 = vpop.f32.mrf.mxu0
  %494 = vmatprep.mubr.bf16.mxu0 %v192
  %495 = vmatmul.mubr.bf16.gmra.mxu0 %v191
  %v496 = vpop.f32.mrf.mxu0
  %v497 = vadd.f32 0.0, %v496
  %v498 = vpop.f32.mrf.mxu0
  %v499 = vpop.f32.mrf.mxu0
  %v500 = vadd.f32 0.0, %v499
  %v501 = vpop.f32.mrf.mxu0
  %502 = vmatprep.mubr.bf16.mxu0 %v197
  %503 = vmatmul.mubr.bf16.gmra.mxu0 %v196
  %v504 = vpop.f32.mrf.mxu0
  %v505 = vadd.f32 0.0, %v504
  %v506 = vpop.f32.mrf.mxu0
  %v507 = vpop.f32.mrf.mxu0
  %v508 = vadd.f32 0.0, %v507
  %v509 = vpop.f32.mrf.mxu0
  %510 = vdwg.mxu0
  %511 = vmatprep.subr.bf16.mxu0 0
  %512 = vmatpush1.bf16.msra.mxu0 %v384
  %513 = vmatprep.subr.bf16.mxu0 0
  %514 = vmatpush1.bf16.msra.mxu0 %v383
  %515 = vmatprep.subr.bf16.mxu0 0
  %516 = vmatpush1.bf16.msra.mxu0 %v382
  %517 = vmatprep.subr.bf16.mxu0 0
  %518 = vmatpush1.bf16.msra.mxu0 %v381
  %519 = vmatprep.subr.bf16.mxu0 0
  %520 = vmatpush1.bf16.msra.mxu0 %v380
  %521 = vmatprep.subr.bf16.mxu0 0
  %522 = vmatpush1.bf16.msra.mxu0 %v379
  %523 = vmatprep.subr.bf16.mxu0 0
  %524 = vmatpush1.bf16.msra.mxu0 %v378
  %525 = vmatprep.subr.bf16.mxu0 0
  %526 = vmatpush1.bf16.msra.mxu0 %v377
  %527 = vmatprep.subr.bf16.mxu0 0
  %528 = vmatpush2.bf16.msra.mxu0 %v392
  %529 = vmatprep.subr.bf16.mxu0 0
  %530 = vmatpush2.bf16.msra.mxu0 %v391
  %531 = vmatprep.subr.bf16.mxu0 0
  %532 = vmatpush2.bf16.msra.mxu0 %v390
  %533 = vmatprep.subr.bf16.mxu0 0
  %534 = vmatpush2.bf16.msra.mxu0 %v389
  %535 = vmatprep.subr.bf16.mxu0 0
  %536 = vmatpush2.bf16.msra.mxu0 %v388
  %537 = vmatprep.subr.bf16.mxu0 0
  %538 = vmatpush2.bf16.msra.mxu0 %v387
  %539 = vmatprep.subr.bf16.mxu0 0
  %540 = vmatpush2.bf16.msra.mxu0 %v386
  %541 = vmatprep.subr.bf16.mxu0 0
  %542 = vmatpush2.bf16.msra.mxu0 %v385
  %543 = vmatprep.mubr.bf16.mxu0 %v184
  %544 = vmatmul.mubr.bf16.gmra.mxu0 %v183
  %v545 = vpop.f32.mrf.mxu0
  %v546 = vadd.f32 %v481, %v545
  %v547 = vpop.f32.mrf.mxu0
  %v548 = vpop.f32.mrf.mxu0
  %v549 = vadd.f32 %v484, %v548
  %v550 = vpop.f32.mrf.mxu0
  %551 = vmatprep.mubr.bf16.mxu0 %v189
  %552 = vmatmul.mubr.bf16.gmra.mxu0 %v188
  %v553 = vpop.f32.mrf.mxu0
  %v554 = vadd.f32 %v489, %v553
  %v555 = vpop.f32.mrf.mxu0
  %v556 = vpop.f32.mrf.mxu0
  %v557 = vadd.f32 %v492, %v556
  %v558 = vpop.f32.mrf.mxu0
  %559 = vmatprep.mubr.bf16.mxu0 %v194
  %560 = vmatmul.mubr.bf16.gmra.mxu0 %v193
  %v561 = vpop.f32.mrf.mxu0
  %v562 = vadd.f32 %v497, %v561
  %v563 = vpop.f32.mrf.mxu0
  %v564 = vpop.f32.mrf.mxu0
  %v565 = vadd.f32 %v500, %v564
  %v566 = vpop.f32.mrf.mxu0
  %567 = vmatprep.mubr.bf16.mxu0 %v199
  %568 = vmatmul.mubr.bf16.gmra.mxu0 %v198
  %v569 = vpop.f32.mrf.mxu0
  %v570 = vadd.f32 %v505, %v569
  %v571 = vpop.f32.mrf.mxu0
  %v572 = vpop.f32.mrf.mxu0
  %v573 = vadd.f32 %v508, %v572
  %v574 = vpop.f32.mrf.mxu0
  %575 = vdwg.mxu0
  %576 = vmatprep.subr.bf16.mxu0 0
  %577 = vmatpush1.bf16.msra.mxu0 0
  %578 = vmatprep.subr.bf16.mxu0 0
  %579 = vmatpush1.bf16.msra.mxu0 0
  %580 = vmatprep.subr.bf16.mxu0 0
  %581 = vmatpush1.bf16.msra.mxu0 0
  %582 = vmatprep.subr.bf16.mxu0 0
  %583 = vmatpush1.bf16.msra.mxu0 0
  %584 = vmatprep.subr.bf16.mxu0 0
  %585 = vmatpush1.bf16.msra.mxu0 %v396
  %586 = vmatprep.subr.bf16.mxu0 0
  %587 = vmatpush1.bf16.msra.mxu0 %v395
  %588 = vmatprep.subr.bf16.mxu0 0
  %589 = vmatpush1.bf16.msra.mxu0 %v394
  %590 = vmatprep.subr.bf16.mxu0 0
  %591 = vmatpush1.bf16.msra.mxu0 %v393
  %592 = vmatprep.subr.bf16.mxu0 0
  %593 = vmatpush2.bf16.msra.mxu0 0
  %594 = vmatprep.subr.bf16.mxu0 0
  %595 = vmatpush2.bf16.msra.mxu0 0
  %596 = vmatprep.subr.bf16.mxu0 0
  %597 = vmatpush2.bf16.msra.mxu0 0
  %598 = vmatprep.subr.bf16.mxu0 0
  %599 = vmatpush2.bf16.msra.mxu0 0
  %600 = vmatprep.subr.bf16.mxu0 0
  %601 = vmatpush2.bf16.msra.mxu0 0
  %602 = vmatprep.subr.bf16.mxu0 0
  %603 = vmatpush2.bf16.msra.mxu0 0
  %604 = vmatprep.subr.bf16.mxu0 0
  %605 = vmatpush2.bf16.msra.mxu0 0
  %606 = vmatprep.subr.bf16.mxu0 0
  %607 = vmatpush2.bf16.msra.mxu0 0
  %608 = vmatprep.mubr.bf16.mxu0 0
  %609 = vmatmul.mubr.bf16.gmra.mxu0 %v435
  %v610 = vpop.f32.mrf.mxu0
  %v611 = vadd.f32 %v546, %v610
  %v612 = vpop.f32.mrf.mxu0
  %v613 = vpop.f32.mrf.mxu0
  %v614 = vadd.f32 %v549, %v613
  %v615 = vpop.f32.mrf.mxu0
  %616 = vmatprep.mubr.bf16.mxu0 0
  %617 = vmatmul.mubr.bf16.gmra.mxu0 %v438
  %v618 = vpop.f32.mrf.mxu0
  %v619 = vadd.f32 %v554, %v618
  %v620 = vpop.f32.mrf.mxu0
  %v621 = vpop.f32.mrf.mxu0
  %v622 = vadd.f32 %v557, %v621
  %v623 = vpop.f32.mrf.mxu0
  %624 = vmatprep.mubr.bf16.mxu0 0
  %625 = vmatmul.mubr.bf16.gmra.mxu0 %v441
  %v626 = vpop.f32.mrf.mxu0
  %v627 = vadd.f32 %v562, %v626
  %v628 = vpop.f32.mrf.mxu0
  %v629 = vpop.f32.mrf.mxu0
  %v630 = vadd.f32 %v565, %v629
  %v631 = vpop.f32.mrf.mxu0
  %632 = vmatprep.mubr.bf16.mxu0 0
  %633 = vmatmul.mubr.bf16.gmra.mxu0 %v444
  %v634 = vpop.f32.mrf.mxu0
  %v635 = vadd.f32 %v570, %v634
  %v636 = vpop.f32.mrf.mxu0
  %v637 = vpop.f32.mrf.mxu0
  %v638 = vadd.f32 %v573, %v637
  %v639 = vpop.f32.mrf.mxu0
  %640 = vdwg.mxu0
  %v641 = vld [vmem:[%s2] sm:$0xff]
  %v642 = vld [vmem:[%s2 + $0x8] sm:$0xff]
  %v643 = vld [vmem:[%s2 + $0x10] sm:$0xff]
  %v644 = vld [vmem:[%s2 + $0x18] sm:$0xff]
  %v645 = vld [vmem:[%s2 + $0x20] sm:$0xff]
  %v646 = vld [vmem:[%s2 + $0x28] sm:$0xff]
  %v647 = vld [vmem:[%s2 + $0x30] sm:$0xff]
  %v648 = vld [vmem:[%s2 + $0x38] sm:$0xff]
  %650 = vset.pattern.permute.xlu0 0
  %651 = vperm.xlu0 %650, %v641
  %v652 = vpop.permute.xlu0 %651
  %655 = vset.pattern.permute.xlu0 0
  %656 = vperm.xlu0 %655, %v642
  %v657 = vpop.permute.xlu0 %656
  %660 = vset.pattern.permute.xlu0 0
  %661 = vperm.xlu0 %660, %v643
  %v662 = vpop.permute.xlu0 %661
  %665 = vset.pattern.permute.xlu0 0
  %666 = vperm.xlu0 %665, %v644
  %v667 = vpop.permute.xlu0 %666
  %670 = vset.pattern.permute.xlu0 0
  %671 = vperm.xlu0 %670, %v645
  %v672 = vpop.permute.xlu0 %671
  %675 = vset.pattern.permute.xlu0 0
  %676 = vperm.xlu0 %675, %v646
  %v677 = vpop.permute.xlu0 %676
  %680 = vset.pattern.permute.xlu0 0
  %681 = vperm.xlu0 %680, %v647
  %v682 = vpop.permute.xlu0 %681
  %685 = vset.pattern.permute.xlu0 0
  %686 = vperm.xlu0 %685, %v648
  %v687 = vpop.permute.xlu0 %686
  %v689 = vmul.f32 %v611, %v652
  %v690 = vmul.f32 %v614, %v657
  %v691 = vmul.f32 %v619, %v662
  %v692 = vmul.f32 %v622, %v667
  %v693 = vmul.f32 %v627, %v672
  %v694 = vmul.f32 %v630, %v677
  %v695 = vmul.f32 %v635, %v682
  %v696 = vmul.f32 %v638, %v687
  %v697 = vld [vmem:[%s3] sm:$0xff]
  %v698 = vld [vmem:[%s3 + $0x8] sm:$0xff]
  %v699 = vld [vmem:[%s3 + $0x10] sm:$0xff]
  %v700 = vld [vmem:[%s3 + $0x18] sm:$0xff]
  %v701 = vld [vmem:[%s3 + $0x20] sm:$0xff]
  %v702 = vld [vmem:[%s3 + $0x28] sm:$0xff]
  %v703 = vld [vmem:[%s3 + $0x30] sm:$0xff]
  %v704 = vld [vmem:[%s3 + $0x38] sm:$0xff]
  %706 = vset.pattern.permute.xlu0 0
  %707 = vperm.xlu0 %706, %v697
  %v708 = vpop.permute.xlu0 %707
  %711 = vset.pattern.permute.xlu0 0
  %712 = vperm.xlu0 %711, %v698
  %v713 = vpop.permute.xlu0 %712
  %716 = vset.pattern.permute.xlu0 0
  %717 = vperm.xlu0 %716, %v699
  %v718 = vpop.permute.xlu0 %717
  %721 = vset.pattern.permute.xlu0 0
  %722 = vperm.xlu0 %721, %v700
  %v723 = vpop.permute.xlu0 %722
  %726 = vset.pattern.permute.xlu0 0
  %727 = vperm.xlu0 %726, %v701
  %v728 = vpop.permute.xlu0 %727
  %731 = vset.pattern.permute.xlu0 0
  %732 = vperm.xlu0 %731, %v702
  %v733 = vpop.permute.xlu0 %732
  %736 = vset.pattern.permute.xlu0 0
  %737 = vperm.xlu0 %736, %v703
  %v738 = vpop.permute.xlu0 %737
  %741 = vset.pattern.permute.xlu0 0
  %742 = vperm.xlu0 %741, %v704
  %v743 = vpop.permute.xlu0 %742
  %v745 = vadd.f32 %v689, %v708
  %v746 = vadd.f32 %v690, %v713
  %v747 = vadd.f32 %v691, %v718
  %v748 = vadd.f32 %v692, %v723
  %v749 = vadd.f32 %v693, %v728
  %v750 = vadd.f32 %v694, %v733
  %v751 = vadd.f32 %v695, %v738
  %v752 = vadd.f32 %v696, %v743
  %v753 = vld [vmem:[%s4] sm:$0xff]
  %v754 = vld [vmem:[%s4 + $0x8] sm:$0xff]
  %v755 = vld [vmem:[%s4 + $0x10] sm:$0xff]
  %v756 = vld [vmem:[%s4 + $0x18] sm:$0xff]
  %v757 = vld [vmem:[%s4 + $0x20] sm:$0xff]
  %v758 = vld [vmem:[%s4 + $0x28] sm:$0xff]
  %v759 = vld [vmem:[%s4 + $0x30] sm:$0xff]
  %v760 = vld [vmem:[%s4 + $0x38] sm:$0xff]
  %v761 = vadd.f32 %v745, %v753
  %v762 = vadd.f32 %v746, %v754
  %v763 = vadd.f32 %v747, %v755
  %v764 = vadd.f32 %v748, %v756
  %v765 = vadd.f32 %v749, %v757
  %v766 = vadd.f32 %v750, %v758
  %v767 = vadd.f32 %v751, %v759
  %v768 = vadd.f32 %v752, %v760
  %v769 = vmax.f32 %v761, 0.0
  %v770 = vmax.f32 %v762, 0.0
  %v771 = vmax.f32 %v763, 0.0
  %v772 = vmax.f32 %v764, 0.0
  %v773 = vmax.f32 %v765, 0.0
  %v774 = vmax.f32 %v766, 0.0
  %v775 = vmax.f32 %v767, 0.0
  %v776 = vmax.f32 %v768, 0.0
  %vm777 = vcmask 261120
  %778 = vst.msk [vmem:[%s5] sm:$0xff] %vm777, %v769
  %779 = vst.msk [vmem:[%s5 + $0x8] sm:$0xff] %vm777, %v770
  %780 = vst.msk [vmem:[%s5 + $0x10] sm:$0xff] %vm777, %v771
  %781 = vst.msk [vmem:[%s5 + $0x18] sm:$0xff] %vm777, %v772
  %782 = vst.msk [vmem:[%s5 + $0x20] sm:$0xff] %vm777, %v773
  %783 = vst.msk [vmem:[%s5 + $0x28] sm:$0xff] %vm777, %v774
  %784 = vst.msk [vmem:[%s5 + $0x30] sm:$0xff] %vm777, %v775
  %785 = vst.msk [vmem:[%s5 + $0x38] sm:$0xff] %vm777, %v776
  // Predicated region
  $region22: #{_lambda_.14} parent=0 // pred_check
    _
  $region23: #{_lambda_.14} parent=0 // pred_check_branch
    %787 = sbr.rel (0) target = $region25
  $region24: #{_lambda_.14} parent=0 // pred_region
    _
  $region25: #{_lambda_.14} parent=0 // pred_fallthru
    _
  // Predicated region
  $region26: #{_lambda_.14} parent=0 // pred_check
    _
  $region27: #{_lambda_.14} parent=0 // pred_check_branch
    %789 = sbr.rel (0) target = $region29
  $region28: #{_lambda_.14} parent=0 // pred_region
    _
  $region29: #{_lambda_.14} parent=0 // pred_fallthru
    _

</llo_original>
